<compile_context>
chip_gen: v5e
topology: v5e:2x2
jax: 0.10.0
libtpu: 0.0.40
codegen_flags: <defaults>
</compile_context>

<pallas_src>
import jax
import jax.numpy as jnp
import numpy as np
from jax import lax
from jax.experimental import pallas as pl
from jax.experimental.pallas import tpu as pltpu


LANE = 128  # output-channel padding / tiling granularity


def _round_up(x, m):
    return ((x + m - 1) // m) * m


# --------------------------------------------------------------------------------------
# In-kernel building blocks
# --------------------------------------------------------------------------------------

def _conv3x3_from_pad(pad_ref, w_ref, H, W):
    """pad_ref: (H+2, W+2, C) zero-padded (already ReLU'd) activation, f32.
    w_ref: (9*C, Co) tap-major weights.  Returns (H*W, Co) float32."""
    C = pad_ref.shape[2]
    wdt = w_ref.dtype

    if C % LANE == 0:
        # lane-aligned channels: assemble an im2col tile and do one long-K MXU matmul
        taps = jnp.concatenate(
            [pad_ref[dy:dy + H, dx:dx + W, :] for dy in range(3) for dx in range(3)],
            axis=-1)                                              # (H, W, 9*C)
        return jnp.dot(taps.reshape(H * W, 9 * C).astype(wdt), w_ref[...],
                       preferred_element_type=jnp.float32)        # (H*W, Co)

    # small / unaligned channel count (e.g. RGB input): 9 accumulated dots
    acc = None
    for dy in range(3):
        for dx in range(3):
            t = dy * 3 + dx
            tap = pad_ref[dy:dy + H, dx:dx + W, :].reshape(H * W, C).astype(wdt)
            part = jnp.dot(tap, w_ref[t * C:(t + 1) * C, :],
                           preferred_element_type=jnp.float32)
            acc = part if acc is None else acc + part
    return acc


def _build_h1_im2col(x_ref, w1_ref, b1_ref, padx_ref, padh1_ref, im2_ref, H, W):
    """Once per batch element (j == 0): relu(x) -> conv1 -> +b1 -> relu -> zero-pad ->
    assemble the (H*W, 9*Cm) im2col slab that every output-channel tile of conv2 reuses."""
    cm = padh1_ref.shape[2]
    cdt = im2_ref.dtype

    # zero-padded relu(x)  (relu(0) == 0 keeps the zero border exact)
    padx_ref[...] = jnp.zeros_like(padx_ref)
    padx_ref[1:H + 1, 1:W + 1, :] = jnp.maximum(x_ref[0], 0).astype(jnp.float32)

    # full conv1 (all cm output channels): h1 = conv1(relu(x)) + b1
    h1 = _conv3x3_from_pad(padx_ref, w1_ref, H, W) + b1_ref[...]        # (H*W, cm) f32

    # zero-padded relu(h1)
    padh1_ref[...] = jnp.zeros_like(padh1_ref)
    padh1_ref[1:H + 1, 1:W + 1, :] = jnp.maximum(h1, 0.0).reshape(H, W, cm)

    # im2col slab for conv2: column block t = dy*3 + dx matches the tap-major weight layout
    for dy in range(3):
        for dx in range(3):
            t = dy * 3 + dx
            im2_ref[:, t * cm:(t + 1) * cm] = (
                padh1_ref[dy:dy + H, dx:dx + W, :].reshape(H * W, cm).astype(cdt))


# --------------------------------------------------------------------------------------
# Pallas kernels (fused: conv1 + conv2 [+ avgpool2] + 1x1 skip + residual add)
# --------------------------------------------------------------------------------------

def _fused_pool_kernel(x_ref, w1_ref, b1_ref, w2_ref, b2_ref, wsk_ref, bsk_ref,
                       o_ref, padx_ref, padh1_ref, im2_ref, rowsum_ref):
    # out = avgpool2(conv2(relu(conv1(relu(x)) + b1)) + b2) + avgpool2(x) @ wsk + bsk
    # (pooling commutes with the 1x1 skip conv and with the bias adds)
    H, W, Cin = x_ref.shape[1], x_ref.shape[2], x_ref.shape[3]
    Ct = o_ref.shape[3]
    Ho, Wo = H // 2, W // 2

    @pl.when(pl.program_id(1) == 0)
    def _():
        _build_h1_im2col(x_ref, w1_ref, b1_ref, padx_ref, padh1_ref, im2_ref, H, W)

    # conv2 tile: single long-K (9*cm) MXU matmul from the prebuilt im2col slab
    h2 = jnp.dot(im2_ref[...], w2_ref[...],
                 preferred_element_type=jnp.float32)                    # (H*W, Ct) f32
    # skip branch (1x1 conv) at full resolution; pooled afterwards together with h2
    skip = jnp.dot(x_ref[0].reshape(H * W, Cin).astype(wsk_ref.dtype), wsk_ref[...],
                   preferred_element_type=jnp.float32)                  # (H*W, Ct) f32

    # 2x2 average pooling: row pairs via a free leading-dim reshape,
    # column pairs via stride-2 sublane reads from a VMEM scratch.
    s = (h2 + skip).reshape(Ho, 2, W, Ct)
    rowsum_ref[...] = s[:, 0] + s[:, 1]                                 # (Ho, W, Ct)
    pooled = (rowsum_ref[:, pl.ds(0, Wo, stride=2), :]
              + rowsum_ref[:, pl.ds(1, Wo, stride=2), :])               # (Ho, Wo, Ct)

    o_ref[0] = (0.25 * pooled + b2_ref[...] + bsk_ref[...]).astype(o_ref.dtype)


def _fused_kernel(x_ref, w1_ref, b1_ref, w2_ref, b2_ref, wsk_ref, bsk_ref,
                  o_ref, padx_ref, padh1_ref, im2_ref):
    # no-downsample variant: out = conv2(relu(conv1(relu(x)) + b1)) + b2 + x @ wsk + bsk
    H, W, Cin = x_ref.shape[1], x_ref.shape[2], x_ref.shape[3]
    Ct = o_ref.shape[3]

    @pl.when(pl.program_id(1) == 0)
    def _():
        _build_h1_im2col(x_ref, w1_ref, b1_ref, padx_ref, padh1_ref, im2_ref, H, W)

    h2 = jnp.dot(im2_ref[...], w2_ref[...],
                 preferred_element_type=jnp.float32)                    # (H*W, Ct) f32
    skip = jnp.dot(x_ref[0].reshape(H * W, Cin).astype(wsk_ref.dtype), wsk_ref[...],
                   preferred_element_type=jnp.float32)
    out = h2 + skip + b2_ref[...] + bsk_ref[...]
    o_ref[0] = out.reshape(H, W, Ct).astype(o_ref.dtype)


# --------------------------------------------------------------------------------------
# Forward pass (matches ResBlockDiscriminator.forward)
# --------------------------------------------------------------------------------------

def res_block_discriminator(x_nchw, params, out_channels, downsample=True):
    N, Cin, H, W = x_nchw.shape
    assert W % 8 == 0, "W must be a multiple of 8 (sublane-aligned in-kernel reshapes)"
    if downsample:
        assert H % 2 == 0 and W % 2 == 0, "spatial dims must be even for avg_pool2d(2)"
    cm = params["w1"].shape[1]            # lane-padded output channels
    assert cm % LANE == 0
    assert params["wsk"].shape[0] == Cin
    cdt = params["w1"].dtype              # compute/storage dtype (bf16 or f32)
    CT = LANE
    nj = cm // CT

    x = jnp.transpose(x_nchw, (0, 2, 3, 1)).astype(cdt)   # NHWC, storage dtype

    cparams = pltpu.CompilerParams(dimension_semantics=("parallel", "arbitrary"))

    in_specs = [
        pl.BlockSpec((1, H, W, Cin), lambda n, j: (n, 0, 0, 0)),   # x  (fetched once per n)
        pl.BlockSpec((9 * Cin, cm), lambda n, j: (0, 0)),          # w1 (full, fetched once)
        pl.BlockSpec((1, cm), lambda n, j: (0, 0)),                # b1 (full)
        pl.BlockSpec((9 * cm, CT), lambda n, j: (0, j)),           # w2 tile
        pl.BlockSpec((1, CT), lambda n, j: (0, j)),                # b2 tile
        pl.BlockSpec((Cin, CT), lambda n, j: (0, j)),              # wsk tile
        pl.BlockSpec((1, CT), lambda n, j: (0, j)),                # bsk tile
    ]
    scratch = [
        pltpu.VMEM((H + 2, W + 2, Cin), jnp.float32),   # padded relu(x)
        pltpu.VMEM((H + 2, W + 2, cm), jnp.float32),    # padded relu(h1)
        pltpu.VMEM((H * W, 9 * cm), cdt),               # conv2 im2col slab (reused per cout tile)
    ]

    if downsample:
        Ho, Wo = H // 2, W // 2
        out = pl.pallas_call(
            _fused_pool_kernel,
            out_shape=jax.ShapeDtypeStruct((N, Ho, Wo, cm), jnp.float32),
            grid=(N, nj),
            in_specs=in_specs,
            out_specs=pl.BlockSpec((1, Ho, Wo, CT), lambda n, j: (n, 0, 0, j)),
            scratch_shapes=scratch + [pltpu.VMEM((Ho, W, CT), jnp.float32)],
            compiler_params=cparams,
        )(x, params["w1"], params["b1"], params["w2"], params["b2"],
          params["wsk"], params["bsk"])
    else:
        out = pl.pallas_call(
            _fused_kernel,
            out_shape=jax.ShapeDtypeStruct((N, H, W, cm), jnp.float32),
            grid=(N, nj),
            in_specs=in_specs,
            out_specs=pl.BlockSpec((1, H, W, CT), lambda n, j: (n, 0, 0, j)),
            scratch_shapes=scratch,
            compiler_params=cparams,
        )(x, params["w1"], params["b1"], params["w2"], params["b2"],
          params["wsk"], params["bsk"])

    out = out[..., :out_channels]                 # drop the lane padding
    return jnp.transpose(out, (0, 3, 1, 2))       # back to NCHW


# --------------------------------------------------------------------------------------
# Parameter setup (spectral norm with one power iteration, like PyTorch) + layout prep
# --------------------------------------------------------------------------------------

def spectral_normalize(w, key, n_iter=1, eps=1e-12):
    wm = w.reshape(w.shape[0], -1)
    u = jax.random.normal(key, (wm.shape[0],), jnp.float32)
    u = u / (jnp.linalg.norm(u) + eps)
    v = None
    for _ in range(n_iter):
        v = wm.T @ u
        v = v / (jnp.linalg.norm(v) + eps)
        u = wm @ v
        u = u / (jnp.linalg.norm(u) + eps)
    sigma = u @ (wm @ v)
    return w / sigma


def init_params(key, in_channels, out_channels):
    ks = jax.random.split(key, 9)
    w1 = jax.random.normal(ks[0], (out_channels, in_channels, 3, 3), jnp.float32) * 0.2
    w2 = jax.random.normal(ks[1], (out_channels, out_channels, 3, 3), jnp.float32) * 0.2
    wsk = jax.random.normal(ks[2], (out_channels, in_channels, 1, 1), jnp.float32) * 0.2
    b1 = jax.random.normal(ks[3], (out_channels,), jnp.float32) * 0.05
    b2 = jax.random.normal(ks[4], (out_channels,), jnp.float32) * 0.05
    bsk = jax.random.normal(ks[5], (out_channels,), jnp.float32) * 0.05
    w1 = spectral_normalize(w1, ks[6])
    w2 = spectral_normalize(w2, ks[7])
    wsk = spectral_normalize(wsk, ks[8])
    return dict(w1=w1, b1=b1, w2=w2, b2=b2, wsk=wsk, bsk=bsk)   # torch OIHW layout


def convert_params(p, compute_dtype=jnp.bfloat16):
    """Torch OIHW params -> kernel layout: 2-D tap-major conv weights (9*Cin, Cm),
    output channels zero-padded to a multiple of 128 (lane-dense stores)."""
    cout, cin = p["w1"].shape[0], p["w1"].shape[1]
    cm = _round_up(cout, LANE)

    def conv3x3_w(w, ci_pad):
        o, i = w.shape[0], w.shape[1]
        wt = jnp.transpose(w, (2, 3, 1, 0))                              # (ky, kx, ci, co)
        wt = jnp.pad(wt, ((0, 0), (0, 0), (0, ci_pad - i), (0, cm - o)))
        return wt.reshape(9 * ci_pad, cm).astype(compute_dtype)          # row = (ky*3+kx)*ci_pad + ci

    def bias(b):
        return jnp.pad(b, (0, cm - b.shape[0])).astype(jnp.float32).reshape(1, cm)

    wsk = jnp.transpose(p["wsk"][:, :, 0, 0], (1, 0))                    # (ci, co)
    wsk = jnp.pad(wsk, ((0, 0), (0, cm - cout))).astype(compute_dtype)

    return dict(
        w1=conv3x3_w(p["w1"], cin),     # conv1: true input channels
        w2=conv3x3_w(p["w2"], cm),      # conv2: consumes the lane-padded h1
        wsk=wsk,
        b1=bias(p["b1"]), b2=bias(p["b2"]), bsk=bias(p["bsk"]),
    )


# --------------------------------------------------------------------------------------
# Pure-JAX reference (mirrors the PyTorch forward) for validation
# --------------------------------------------------------------------------------------

def _avg_pool2(a):  # NCHW, kernel 2, stride 2
    N, C, H, W = a.shape
    return a.reshape(N, C, H // 2, 2, W // 2, 2).mean(axis=(3, 5))


def ref_forward(x, p, downsample=True):
    dn = ("NCHW", "OIHW", "NCHW")
    h = jax.nn.relu(x)
    h = lax.conv_general_dilated(h, p["w1"], (1, 1), ((1, 1), (1, 1)), dimension_numbers=dn)
    h = h + p["b1"][None, :, None, None]
    h = jax.nn.relu(h)
    h = lax.conv_general_dilated(h, p["w2"], (1, 1), ((1, 1), (1, 1)), dimension_numbers=dn)
    h = h + p["b2"][None, :, None, None]
    xs = x
    if downsample:
        h = _avg_pool2(h)
        xs = _avg_pool2(x)
    skip = lax.conv_general_dilated(xs, p["wsk"], (1, 1), ((0, 0), (0, 0)), dimension_numbers=dn)
    skip = skip + p["bsk"][None, :, None, None]
    return h + skip


# --------------------------------------------------------------------------------------

def _check(name, got, ref, rtol, atol):
    got = np.asarray(got, np.float32)
    ref = np.asarray(ref, np.float32)
    if not np.allclose(got, ref, rtol=rtol, atol=atol):
        err = float(np.max(np.abs(got - ref)))
        raise AssertionError(f"{name}: Pallas kernel mismatch vs reference, max abs err {err}")


if __name__ == "__main__":
    in_channels, out_channels = 4, 8
    N, H, W = 2, 16, 16

    key = jax.random.PRNGKey(0)
    kx, kp = jax.random.split(key)
    x = jax.random.normal(kx, (N, in_channels, H, W), jnp.float32)
    torch_p = init_params(kp, in_channels, out_channels)

    # f32 compute path: tight check against the pure-JAX reference (both variants)
    p32 = convert_params(torch_p, jnp.float32)

    out_ds = jax.block_until_ready(res_block_discriminator(x, p32, out_channels, downsample=True))
    assert out_ds.shape == (N, out_channels, H // 2, W // 2), out_ds.shape
    ref_ds = jax.block_until_ready(ref_forward(x, torch_p, downsample=True))
    _check("downsample/f32", out_ds, ref_ds, rtol=1e-4, atol=1e-4)

    out_nd = jax.block_until_ready(res_block_discriminator(x, p32, out_channels, downsample=False))
    assert out_nd.shape == (N, out_channels, H, W), out_nd.shape
    ref_nd = jax.block_until_ready(ref_forward(x, torch_p, downsample=False))
    _check("no-downsample/f32", out_nd, ref_nd, rtol=1e-4, atol=1e-4)

    # bf16 storage path (performance default on v6e/v7x): looser numerical check
    pbf = convert_params(torch_p, jnp.bfloat16)
    out_bf = jax.block_until_ready(res_block_discriminator(x, pbf, out_channels, downsample=True))
    assert out_bf.shape == (N, out_channels, H // 2, W // 2), out_bf.shape
    _check("downsample/bf16", out_bf, ref_ds, rtol=5e-2, atol=5e-2)

    print("KERNEL_OK")
</pallas_src>

<mosaic_0001>
module attributes {stable_mosaic.version = 11 : i64} {
  func.func @_fused_pool_kernel(%arg0: i32, %arg1: i32, %arg2: memref<1x16x16x4xf32, #tpu.memory_space<vmem>>, %arg3: memref<36x128xf32, #tpu.memory_space<vmem>>, %arg4: memref<1x128xf32, #tpu.memory_space<vmem>>, %arg5: memref<1152x128xf32, #tpu.memory_space<vmem>>, %arg6: memref<1x128xf32, #tpu.memory_space<vmem>>, %arg7: memref<4x128xf32, #tpu.memory_space<vmem>>, %arg8: memref<1x128xf32, #tpu.memory_space<vmem>>, %arg9: memref<1x8x8x128xf32, #tpu.memory_space<vmem>>, %arg10: memref<18x18x4xf32, #tpu.memory_space<vmem>>, %arg11: memref<18x18x128xf32, #tpu.memory_space<vmem>>, %arg12: memref<256x1152xf32, #tpu.memory_space<vmem>>, %arg13: memref<8x16x128xf32, #tpu.memory_space<vmem>>) attributes {dimension_semantics = [#tpu.dimension_semantics<parallel>, #tpu.dimension_semantics<arbitrary>], iteration_bounds = array<i64: 2, 1>, scalar_prefetch = 0 : i64, scratch_operands = 4 : i64, tpu.core_type = #tpu.core_type<tc>, window_params = [{transform_indices = @transform_0, window_bounds = array<i64: 1, 16, 16, 4>}, {pipeline_mode = #tpu.pipeline_mode<synchronous>, transform_indices = @transform_1, window_bounds = array<i64: 36, 128>}, {pipeline_mode = #tpu.pipeline_mode<synchronous>, transform_indices = @transform_2, window_bounds = array<i64: 1, 128>}, {transform_indices = @transform_3, window_bounds = array<i64: 1152, 128>}, {transform_indices = @transform_4, window_bounds = array<i64: 1, 128>}, {transform_indices = @transform_5, window_bounds = array<i64: 4, 128>}, {transform_indices = @transform_6, window_bounds = array<i64: 1, 128>}, {transform_indices = @transform_7, window_bounds = array<i64: 1, 8, 8, 128>}]} {
    %c0_i32 = arith.constant 0 : i32
    %0 = arith.cmpi eq, %arg1, %c0_i32 : i32
    %1 = arith.extui %0 : i1 to i32
    %c0_i32_0 = arith.constant 0 : i32
    %2 = arith.cmpi ne, %1, %c0_i32_0 : i32
    scf.if %2 {
      %cst_28 = arith.constant 0.000000e+00 : f32
      %35 = vector.broadcast %cst_28 : f32 to vector<18x18x4xf32>
      %c0_29 = arith.constant 0 : index
      %c0_30 = arith.constant 0 : index
      %c0_31 = arith.constant 0 : index
      %36 = vector.load %arg10[%c0_29, %c0_30, %c0_31] : memref<18x18x4xf32, #tpu.memory_space<vmem>>, vector<18x18x4xf32>
      tpu.vector_store %arg10[%c0_29, %c0_30, %c0_31], %35 {strides = array<i32>} : memref<18x18x4xf32, #tpu.memory_space<vmem>>, vector<18x18x4xf32>,
      %c0_32 = arith.constant 0 : index
      %c0_33 = arith.constant 0 : index
      %c0_34 = arith.constant 0 : index
      %c0_35 = arith.constant 0 : index
      %37 = vector.load %arg2[%c0_32, %c0_33, %c0_34, %c0_35] : memref<1x16x16x4xf32, #tpu.memory_space<vmem>>, vector<1x16x16x4xf32>
      %38 = vector.shape_cast %37 : vector<1x16x16x4xf32> to vector<16x16x4xf32>
      %cst_36 = arith.constant 0.000000e+00 : f32
      %39 = vector.broadcast %cst_36 : f32 to vector<16x16x4xf32>
      %40 = arith.maximumf %38, %39 : vector<16x16x4xf32>
      %c1_37 = arith.constant 1 : index
      %c1_38 = arith.constant 1 : index
      %c0_39 = arith.constant 0 : index
      %41 = vector.load %arg10[%c1_37, %c1_38, %c0_39] : memref<18x18x4xf32, #tpu.memory_space<vmem>>, vector<16x16x4xf32>
      tpu.vector_store %arg10[%c1_37, %c1_38, %c0_39], %40 {strides = array<i32>} : memref<18x18x4xf32, #tpu.memory_space<vmem>>, vector<16x16x4xf32>,
      %c0_40 = arith.constant 0 : index
      %c0_41 = arith.constant 0 : index
      %c0_42 = arith.constant 0 : index
      %42 = vector.load %arg10[%c0_40, %c0_41, %c0_42] : memref<18x18x4xf32, #tpu.memory_space<vmem>>, vector<16x16x4xf32>
      %43 = vector.shape_cast %42 : vector<16x16x4xf32> to vector<256x4xf32>
      %c0_43 = arith.constant 0 : index
      %c0_44 = arith.constant 0 : index
      %44 = vector.load %arg3[%c0_43, %c0_44] : memref<36x128xf32, #tpu.memory_space<vmem>>, vector<4x128xf32>
      %cst_45 = arith.constant dense<0.000000e+00> : vector<256x128xf32>
      %45 = tpu.matmul %43, %44, %cst_45 {dimension_numbers = #tpu.dot_dimension_numbers<[1], [0], [0], [1], [0, 0, 1, 1], [], []>} : vector<256x4xf32>, vector<4x128xf32>, vector<256x128xf32> -> vector<256x128xf32>
      %c0_46 = arith.constant 0 : index
      %c1_47 = arith.constant 1 : index
      %c0_48 = arith.constant 0 : index
      %46 = vector.load %arg10[%c0_46, %c1_47, %c0_48] : memref<18x18x4xf32, #tpu.memory_space<vmem>>, vector<16x16x4xf32>
      %47 = vector.shape_cast %46 : vector<16x16x4xf32> to vector<256x4xf32>
      %c4 = arith.constant 4 : index
      %c0_49 = arith.constant 0 : index
      %48 = vector.load %arg3[%c4, %c0_49] : memref<36x128xf32, #tpu.memory_space<vmem>>, vector<4x128xf32>
      %cst_50 = arith.constant dense<0.000000e+00> : vector<256x128xf32>
      %49 = tpu.matmul %47, %48, %cst_50 {dimension_numbers = #tpu.dot_dimension_numbers<[1], [0], [0], [1], [0, 0, 1, 1], [], []>} : vector<256x4xf32>, vector<4x128xf32>, vector<256x128xf32> -> vector<256x128xf32>
      %50 = arith.addf %45, %49 : vector<256x128xf32>
      %c0_51 = arith.constant 0 : index
      %c2 = arith.constant 2 : index
      %c0_52 = arith.constant 0 : index
      %51 = vector.load %arg10[%c0_51, %c2, %c0_52] : memref<18x18x4xf32, #tpu.memory_space<vmem>>, vector<16x16x4xf32>
      %52 = vector.shape_cast %51 : vector<16x16x4xf32> to vector<256x4xf32>
      %c8 = arith.constant 8 : index
      %c0_53 = arith.constant 0 : index
      %53 = vector.load %arg3[%c8, %c0_53] : memref<36x128xf32, #tpu.memory_space<vmem>>, vector<4x128xf32>
      %cst_54 = arith.constant dense<0.000000e+00> : vector<256x128xf32>
      %54 = tpu.matmul %52, %53, %cst_54 {dimension_numbers = #tpu.dot_dimension_numbers<[1], [0], [0], [1], [0, 0, 1, 1], [], []>} : vector<256x4xf32>, vector<4x128xf32>, vector<256x128xf32> -> vector<256x128xf32>
      %55 = arith.addf %50, %54 : vector<256x128xf32>
      %c1_55 = arith.constant 1 : index
      %c0_56 = arith.constant 0 : index
      %c0_57 = arith.constant 0 : index
      %56 = vector.load %arg10[%c1_55, %c0_56, %c0_57] : memref<18x18x4xf32, #tpu.memory_space<vmem>>, vector<16x16x4xf32>
      %57 = vector.shape_cast %56 : vector<16x16x4xf32> to vector<256x4xf32>
      %c12 = arith.constant 12 : index
      %c0_58 = arith.constant 0 : index
      %58 = vector.load %arg3[%c12, %c0_58] : memref<36x128xf32, #tpu.memory_space<vmem>>, vector<4x128xf32>
      %cst_59 = arith.constant dense<0.000000e+00> : vector<256x128xf32>
      %59 = tpu.matmul %57, %58, %cst_59 {dimension_numbers = #tpu.dot_dimension_numbers<[1], [0], [0], [1], [0, 0, 1, 1], [], []>} : vector<256x4xf32>, vector<4x128xf32>, vector<256x128xf32> -> vector<256x128xf32>
      %60 = arith.addf %55, %59 : vector<256x128xf32>
      %c1_60 = arith.constant 1 : index
      %c1_61 = arith.constant 1 : index
      %c0_62 = arith.constant 0 : index
      %61 = vector.load %arg10[%c1_60, %c1_61, %c0_62] : memref<18x18x4xf32, #tpu.memory_space<vmem>>, vector<16x16x4xf32>
      %62 = vector.shape_cast %61 : vector<16x16x4xf32> to vector<256x4xf32>
      %c16 = arith.constant 16 : index
      %c0_63 = arith.constant 0 : index
      %63 = vector.load %arg3[%c16, %c0_63] : memref<36x128xf32, #tpu.memory_space<vmem>>, vector<4x128xf32>
      %cst_64 = arith.constant dense<0.000000e+00> : vector<256x128xf32>
      %64 = tpu.matmul %62, %63, %cst_64 {dimension_numbers = #tpu.dot_dimension_numbers<[1], [0], [0], [1], [0, 0, 1, 1], [], []>} : vector<256x4xf32>, vector<4x128xf32>, vector<256x128xf32> -> vector<256x128xf32>
      %65 = arith.addf %60, %64 : vector<256x128xf32>
      %c1_65 = arith.constant 1 : index
      %c2_66 = arith.constant 2 : index
      %c0_67 = arith.constant 0 : index
      %66 = vector.load %arg10[%c1_65, %c2_66, %c0_67] : memref<18x18x4xf32, #tpu.memory_space<vmem>>, vector<16x16x4xf32>
      %67 = vector.shape_cast %66 : vector<16x16x4xf32> to vector<256x4xf32>
      %c20 = arith.constant 20 : index
      %c0_68 = arith.constant 0 : index
      %68 = vector.load %arg3[%c20, %c0_68] : memref<36x128xf32, #tpu.memory_space<vmem>>, vector<4x128xf32>
      %cst_69 = arith.constant dense<0.000000e+00> : vector<256x128xf32>
      %69 = tpu.matmul %67, %68, %cst_69 {dimension_numbers = #tpu.dot_dimension_numbers<[1], [0], [0], [1], [0, 0, 1, 1], [], []>} : vector<256x4xf32>, vector<4x128xf32>, vector<256x128xf32> -> vector<256x128xf32>
      %70 = arith.addf %65, %69 : vector<256x128xf32>
      %c2_70 = arith.constant 2 : index
      %c0_71 = arith.constant 0 : index
      %c0_72 = arith.constant 0 : index
      %71 = vector.load %arg10[%c2_70, %c0_71, %c0_72] : memref<18x18x4xf32, #tpu.memory_space<vmem>>, vector<16x16x4xf32>
      %72 = vector.shape_cast %71 : vector<16x16x4xf32> to vector<256x4xf32>
      %c24 = arith.constant 24 : index
      %c0_73 = arith.constant 0 : index
      %73 = vector.load %arg3[%c24, %c0_73] : memref<36x128xf32, #tpu.memory_space<vmem>>, vector<4x128xf32>
      %cst_74 = arith.constant dense<0.000000e+00> : vector<256x128xf32>
      %74 = tpu.matmul %72, %73, %cst_74 {dimension_numbers = #tpu.dot_dimension_numbers<[1], [0], [0], [1], [0, 0, 1, 1], [], []>} : vector<256x4xf32>, vector<4x128xf32>, vector<256x128xf32> -> vector<256x128xf32>
      %75 = arith.addf %70, %74 : vector<256x128xf32>
      %c2_75 = arith.constant 2 : index
      %c1_76 = arith.constant 1 : index
      %c0_77 = arith.constant 0 : index
      %76 = vector.load %arg10[%c2_75, %c1_76, %c0_77] : memref<18x18x4xf32, #tpu.memory_space<vmem>>, vector<16x16x4xf32>
      %77 = vector.shape_cast %76 : vector<16x16x4xf32> to vector<256x4xf32>
      %c28 = arith.constant 28 : index
      %c0_78 = arith.constant 0 : index
      %78 = vector.load %arg3[%c28, %c0_78] : memref<36x128xf32, #tpu.memory_space<vmem>>, vector<4x128xf32>
      %cst_79 = arith.constant dense<0.000000e+00> : vector<256x128xf32>
      %79 = tpu.matmul %77, %78, %cst_79 {dimension_numbers = #tpu.dot_dimension_numbers<[1], [0], [0], [1], [0, 0, 1, 1], [], []>} : vector<256x4xf32>, vector<4x128xf32>, vector<256x128xf32> -> vector<256x128xf32>
      %80 = arith.addf %75, %79 : vector<256x128xf32>
      %c2_80 = arith.constant 2 : index
      %c2_81 = arith.constant 2 : index
      %c0_82 = arith.constant 0 : index
      %81 = vector.load %arg10[%c2_80, %c2_81, %c0_82] : memref<18x18x4xf32, #tpu.memory_space<vmem>>, vector<16x16x4xf32>
      %82 = vector.shape_cast %81 : vector<16x16x4xf32> to vector<256x4xf32>
      %c32 = arith.constant 32 : index
      %c0_83 = arith.constant 0 : index
      %83 = vector.load %arg3[%c32, %c0_83] : memref<36x128xf32, #tpu.memory_space<vmem>>, vector<4x128xf32>
      %cst_84 = arith.constant dense<0.000000e+00> : vector<256x128xf32>
      %84 = tpu.matmul %82, %83, %cst_84 {dimension_numbers = #tpu.dot_dimension_numbers<[1], [0], [0], [1], [0, 0, 1, 1], [], []>} : vector<256x4xf32>, vector<4x128xf32>, vector<256x128xf32> -> vector<256x128xf32>
      %85 = arith.addf %80, %84 : vector<256x128xf32>
      %c0_85 = arith.constant 0 : index
      %c0_86 = arith.constant 0 : index
      %86 = vector.load %arg4[%c0_85, %c0_86] : memref<1x128xf32, #tpu.memory_space<vmem>>, vector<1x128xf32>
      %87 = vector.broadcast %86 : vector<1x128xf32> to vector<256x128xf32>
      %88 = arith.addf %85, %87 : vector<256x128xf32>
      %cst_87 = arith.constant 0.000000e+00 : f32
      %89 = vector.broadcast %cst_87 : f32 to vector<18x18x128xf32>
      %c0_88 = arith.constant 0 : index
      %c0_89 = arith.constant 0 : index
      %c0_90 = arith.constant 0 : index
      %90 = vector.load %arg11[%c0_88, %c0_89, %c0_90] : memref<18x18x128xf32, #tpu.memory_space<vmem>>, vector<18x18x128xf32>
      tpu.vector_store %arg11[%c0_88, %c0_89, %c0_90], %89 {strides = array<i32>} : memref<18x18x128xf32, #tpu.memory_space<vmem>>, vector<18x18x128xf32>,
      %cst_91 = arith.constant 0.000000e+00 : f32
      %91 = vector.broadcast %cst_91 : f32 to vector<256x128xf32>
      %92 = arith.maximumf %88, %91 : vector<256x128xf32>
      %93 = vector.shape_cast %92 : vector<256x128xf32> to vector<16x16x128xf32>
      %c1_92 = arith.constant 1 : index
      %c1_93 = arith.constant 1 : index
      %c0_94 = arith.constant 0 : index
      %94 = vector.load %arg11[%c1_92, %c1_93, %c0_94] : memref<18x18x128xf32, #tpu.memory_space<vmem>>, vector<16x16x128xf32>
      tpu.vector_store %arg11[%c1_92, %c1_93, %c0_94], %93 {strides = array<i32>} : memref<18x18x128xf32, #tpu.memory_space<vmem>>, vector<16x16x128xf32>,
      %c0_95 = arith.constant 0 : index
      %c0_96 = arith.constant 0 : index
      %c0_97 = arith.constant 0 : index
      %95 = vector.load %arg11[%c0_95, %c0_96, %c0_97] : memref<18x18x128xf32, #tpu.memory_space<vmem>>, vector<16x16x128xf32>
      %96 = vector.shape_cast %95 : vector<16x16x128xf32> to vector<256x128xf32>
      %c0_98 = arith.constant 0 : index
      %c0_99 = arith.constant 0 : index
      %97 = vector.load %arg12[%c0_98, %c0_99] : memref<256x1152xf32, #tpu.memory_space<vmem>>, vector<256x128xf32>
      tpu.vector_store %arg12[%c0_98, %c0_99], %96 {strides = array<i32>} : memref<256x1152xf32, #tpu.memory_space<vmem>>, vector<256x128xf32>,
      %c0_100 = arith.constant 0 : index
      %c1_101 = arith.constant 1 : index
      %c0_102 = arith.constant 0 : index
      %98 = vector.load %arg11[%c0_100, %c1_101, %c0_102] : memref<18x18x128xf32, #tpu.memory_space<vmem>>, vector<16x16x128xf32>
      %99 = vector.shape_cast %98 : vector<16x16x128xf32> to vector<256x128xf32>
      %c0_103 = arith.constant 0 : index
      %c128 = arith.constant 128 : index
      %100 = vector.load %arg12[%c0_103, %c128] : memref<256x1152xf32, #tpu.memory_space<vmem>>, vector<256x128xf32>
      tpu.vector_store %arg12[%c0_103, %c128], %99 {strides = array<i32>} : memref<256x1152xf32, #tpu.memory_space<vmem>>, vector<256x128xf32>,
      %c0_104 = arith.constant 0 : index
      %c2_105 = arith.constant 2 : index
      %c0_106 = arith.constant 0 : index
      %101 = vector.load %arg11[%c0_104, %c2_105, %c0_106] : memref<18x18x128xf32, #tpu.memory_space<vmem>>, vector<16x16x128xf32>
      %102 = vector.shape_cast %101 : vector<16x16x128xf32> to vector<256x128xf32>
      %c0_107 = arith.constant 0 : index
      %c256 = arith.constant 256 : index
      %103 = vector.load %arg12[%c0_107, %c256] : memref<256x1152xf32, #tpu.memory_space<vmem>>, vector<256x128xf32>
      tpu.vector_store %arg12[%c0_107, %c256], %102 {strides = array<i32>} : memref<256x1152xf32, #tpu.memory_space<vmem>>, vector<256x128xf32>,
      %c1_108 = arith.constant 1 : index
      %c0_109 = arith.constant 0 : index
      %c0_110 = arith.constant 0 : index
      %104 = vector.load %arg11[%c1_108, %c0_109, %c0_110] : memref<18x18x128xf32, #tpu.memory_space<vmem>>, vector<16x16x128xf32>
      %105 = vector.shape_cast %104 : vector<16x16x128xf32> to vector<256x128xf32>
      %c0_111 = arith.constant 0 : index
      %c384 = arith.constant 384 : index
      %106 = vector.load %arg12[%c0_111, %c384] : memref<256x1152xf32, #tpu.memory_space<vmem>>, vector<256x128xf32>
      tpu.vector_store %arg12[%c0_111, %c384], %105 {strides = array<i32>} : memref<256x1152xf32, #tpu.memory_space<vmem>>, vector<256x128xf32>,
      %c1_112 = arith.constant 1 : index
      %c1_113 = arith.constant 1 : index
      %c0_114 = arith.constant 0 : index
      %107 = vector.load %arg11[%c1_112, %c1_113, %c0_114] : memref<18x18x128xf32, #tpu.memory_space<vmem>>, vector<16x16x128xf32>
      %108 = vector.shape_cast %107 : vector<16x16x128xf32> to vector<256x128xf32>
      %c0_115 = arith.constant 0 : index
      %c512 = arith.constant 512 : index
      %109 = vector.load %arg12[%c0_115, %c512] : memref<256x1152xf32, #tpu.memory_space<vmem>>, vector<256x128xf32>
      tpu.vector_store %arg12[%c0_115, %c512], %108 {strides = array<i32>} : memref<256x1152xf32, #tpu.memory_space<vmem>>, vector<256x128xf32>,
      %c1_116 = arith.constant 1 : index
      %c2_117 = arith.constant 2 : index
      %c0_118 = arith.constant 0 : index
      %110 = vector.load %arg11[%c1_116, %c2_117, %c0_118] : memref<18x18x128xf32, #tpu.memory_space<vmem>>, vector<16x16x128xf32>
      %111 = vector.shape_cast %110 : vector<16x16x128xf32> to vector<256x128xf32>
      %c0_119 = arith.constant 0 : index
      %c640 = arith.constant 640 : index
      %112 = vector.load %arg12[%c0_119, %c640] : memref<256x1152xf32, #tpu.memory_space<vmem>>, vector<256x128xf32>
      tpu.vector_store %arg12[%c0_119, %c640], %111 {strides = array<i32>} : memref<256x1152xf32, #tpu.memory_space<vmem>>, vector<256x128xf32>,
      %c2_120 = arith.constant 2 : index
      %c0_121 = arith.constant 0 : index
      %c0_122 = arith.constant 0 : index
      %113 = vector.load %arg11[%c2_120, %c0_121, %c0_122] : memref<18x18x128xf32, #tpu.memory_space<vmem>>, vector<16x16x128xf32>
      %114 = vector.shape_cast %113 : vector<16x16x128xf32> to vector<256x128xf32>
      %c0_123 = arith.constant 0 : index
      %c768 = arith.constant 768 : index
      %115 = vector.load %arg12[%c0_123, %c768] : memref<256x1152xf32, #tpu.memory_space<vmem>>, vector<256x128xf32>
      tpu.vector_store %arg12[%c0_123, %c768], %114 {strides = array<i32>} : memref<256x1152xf32, #tpu.memory_space<vmem>>, vector<256x128xf32>,
      %c2_124 = arith.constant 2 : index
      %c1_125 = arith.constant 1 : index
      %c0_126 = arith.constant 0 : index
      %116 = vector.load %arg11[%c2_124, %c1_125, %c0_126] : memref<18x18x128xf32, #tpu.memory_space<vmem>>, vector<16x16x128xf32>
      %117 = vector.shape_cast %116 : vector<16x16x128xf32> to vector<256x128xf32>
      %c0_127 = arith.constant 0 : index
      %c896 = arith.constant 896 : index
      %118 = vector.load %arg12[%c0_127, %c896] : memref<256x1152xf32, #tpu.memory_space<vmem>>, vector<256x128xf32>
      tpu.vector_store %arg12[%c0_127, %c896], %117 {strides = array<i32>} : memref<256x1152xf32, #tpu.memory_space<vmem>>, vector<256x128xf32>,
      %c2_128 = arith.constant 2 : index
      %c2_129 = arith.constant 2 : index
      %c0_130 = arith.constant 0 : index
      %119 = vector.load %arg11[%c2_128, %c2_129, %c0_130] : memref<18x18x128xf32, #tpu.memory_space<vmem>>, vector<16x16x128xf32>
      %120 = vector.shape_cast %119 : vector<16x16x128xf32> to vector<256x128xf32>
      %c0_131 = arith.constant 0 : index
      %c1024 = arith.constant 1024 : index
      %121 = vector.load %arg12[%c0_131, %c1024] : memref<256x1152xf32, #tpu.memory_space<vmem>>, vector<256x128xf32>
      tpu.vector_store %arg12[%c0_131, %c1024], %120 {strides = array<i32>} : memref<256x1152xf32, #tpu.memory_space<vmem>>, vector<256x128xf32>,
    } else {
    }
    %c0 = arith.constant 0 : index
    %c0_1 = arith.constant 0 : index
    %3 = vector.load %arg12[%c0, %c0_1] : memref<256x1152xf32, #tpu.memory_space<vmem>>, vector<256x1152xf32>
    %c0_2 = arith.constant 0 : index
    %c0_3 = arith.constant 0 : index
    %4 = vector.load %arg5[%c0_2, %c0_3] : memref<1152x128xf32, #tpu.memory_space<vmem>>, vector<1152x128xf32>
    %cst = arith.constant dense<0.000000e+00> : vector<256x128xf32>
    %5 = tpu.matmul %3, %4, %cst {dimension_numbers = #tpu.dot_dimension_numbers<[1], [0], [0], [1], [0, 0, 1, 1], [], []>} : vector<256x1152xf32>, vector<1152x128xf32>, vector<256x128xf32> -> vector<256x128xf32>
    %c0_4 = arith.constant 0 : index
    %c0_5 = arith.constant 0 : index
    %c0_6 = arith.constant 0 : index
    %c0_7 = arith.constant 0 : index
    %6 = vector.load %arg2[%c0_4, %c0_5, %c0_6, %c0_7] : memref<1x16x16x4xf32, #tpu.memory_space<vmem>>, vector<1x16x16x4xf32>
    %7 = vector.shape_cast %6 : vector<1x16x16x4xf32> to vector<16x16x4xf32>
    %8 = vector.shape_cast %7 : vector<16x16x4xf32> to vector<256x4xf32>
    %c0_8 = arith.constant 0 : index
    %c0_9 = arith.constant 0 : index
    %9 = vector.load %arg7[%c0_8, %c0_9] : memref<4x128xf32, #tpu.memory_space<vmem>>, vector<4x128xf32>
    %cst_10 = arith.constant dense<0.000000e+00> : vector<256x128xf32>
    %10 = tpu.matmul %8, %9, %cst_10 {dimension_numbers = #tpu.dot_dimension_numbers<[1], [0], [0], [1], [0, 0, 1, 1], [], []>} : vector<256x4xf32>, vector<4x128xf32>, vector<256x128xf32> -> vector<256x128xf32>
    %11 = arith.addf %5, %10 : vector<256x128xf32>
    %12 = vector.shape_cast %11 : vector<256x128xf32> to vector<8x2x16x128xf32>
    %13 = vector.extract_strided_slice %12 {offsets = [0, 0, 0, 0], sizes = [8, 1, 16, 128], strides = [1, 1, 1, 1]} : vector<8x2x16x128xf32> to vector<8x1x16x128xf32>
    %14 = vector.shape_cast %13 : vector<8x1x16x128xf32> to vector<8x16x128xf32>
    %15 = vector.extract_strided_slice %12 {offsets = [0, 1, 0, 0], sizes = [8, 1, 16, 128], strides = [1, 1, 1, 1]} : vector<8x2x16x128xf32> to vector<8x1x16x128xf32>
    %16 = vector.shape_cast %15 : vector<8x1x16x128xf32> to vector<8x16x128xf32>
    %17 = arith.addf %14, %16 : vector<8x16x128xf32>
    %c0_11 = arith.constant 0 : index
    %c0_12 = arith.constant 0 : index
    %c0_13 = arith.constant 0 : index
    %18 = vector.load %arg13[%c0_11, %c0_12, %c0_13] : memref<8x16x128xf32, #tpu.memory_space<vmem>>, vector<8x16x128xf32>
    tpu.vector_store %arg13[%c0_11, %c0_12, %c0_13], %17 {strides = array<i32>} : memref<8x16x128xf32, #tpu.memory_space<vmem>>, vector<8x16x128xf32>,
    %c0_14 = arith.constant 0 : index
    %c0_15 = arith.constant 0 : index
    %c0_16 = arith.constant 0 : index
    %19 = tpu.strided_load %arg13[%c0_14, %c0_15, %c0_16] {strides = array<i32: 1, 2, 1>} : memref<8x16x128xf32, #tpu.memory_space<vmem>>, vector<8x8x128xf32>
    %c0_17 = arith.constant 0 : index
    %c1 = arith.constant 1 : index
    %c0_18 = arith.constant 0 : index
    %20 = tpu.strided_load %arg13[%c0_17, %c1, %c0_18] {strides = array<i32: 1, 2, 1>} : memref<8x16x128xf32, #tpu.memory_space<vmem>>, vector<8x8x128xf32>
    %21 = arith.addf %19, %20 : vector<8x8x128xf32>
    %cst_19 = arith.constant 2.500000e-01 : f32
    %22 = vector.broadcast %cst_19 : f32 to vector<8x8x128xf32>
    %23 = arith.mulf %22, %21 : vector<8x8x128xf32>
    %c0_20 = arith.constant 0 : index
    %c0_21 = arith.constant 0 : index
    %24 = vector.load %arg6[%c0_20, %c0_21] : memref<1x128xf32, #tpu.memory_space<vmem>>, vector<1x128xf32>
    %25 = vector.shape_cast %24 : vector<1x128xf32> to vector<1x1x128xf32>
    %26 = vector.broadcast %25 : vector<1x1x128xf32> to vector<8x8x128xf32>
    %27 = arith.addf %23, %26 : vector<8x8x128xf32>
    %c0_22 = arith.constant 0 : index
    %c0_23 = arith.constant 0 : index
    %28 = vector.load %arg8[%c0_22, %c0_23] : memref<1x128xf32, #tpu.memory_space<vmem>>, vector<1x128xf32>
    %29 = vector.shape_cast %28 : vector<1x128xf32> to vector<1x1x128xf32>
    %30 = vector.broadcast %29 : vector<1x1x128xf32> to vector<8x8x128xf32>
    %31 = arith.addf %27, %30 : vector<8x8x128xf32>
    %c0_24 = arith.constant 0 : index
    %c0_25 = arith.constant 0 : index
    %c0_26 = arith.constant 0 : index
    %c0_27 = arith.constant 0 : index
    %32 = vector.load %arg9[%c0_24, %c0_25, %c0_26, %c0_27] : memref<1x8x8x128xf32, #tpu.memory_space<vmem>>, vector<1x8x8x128xf32>
    %33 = vector.shape_cast %32 : vector<1x8x8x128xf32> to vector<8x8x128xf32>
    %34 = vector.shape_cast %31 : vector<8x8x128xf32> to vector<1x8x8x128xf32>
    tpu.vector_store %arg9[%c0_24, %c0_25, %c0_26, %c0_27], %34 {strides = array<i32>} : memref<1x8x8x128xf32, #tpu.memory_space<vmem>>, vector<1x8x8x128xf32>,
    return
  }
  func.func @transform_0(%arg0: i32, %arg1: i32) -> (i32, i32, i32, i32) {
    %c0_i32 = arith.constant 0 : i32
    %c0_i32_0 = arith.constant 0 : i32
    %c0_i32_1 = arith.constant 0 : i32
    %c0_i32_2 = arith.constant 0 : i32
    return %arg0, %c0_i32, %c0_i32_0, %c0_i32_1 : i32, i32, i32, i32
  }
  func.func @transform_1(%arg0: i32, %arg1: i32) -> (i32, i32) {
    %c0_i32 = arith.constant 0 : i32
    %c0_i32_0 = arith.constant 0 : i32
    %c0_i32_1 = arith.constant 0 : i32
    return %c0_i32, %c0_i32_0 : i32, i32
  }
  func.func @transform_2(%arg0: i32, %arg1: i32) -> (i32, i32) {
    %c0_i32 = arith.constant 0 : i32
    %c0_i32_0 = arith.constant 0 : i32
    %c0_i32_1 = arith.constant 0 : i32
    return %c0_i32, %c0_i32_0 : i32, i32
  }
  func.func @transform_3(%arg0: i32, %arg1: i32) -> (i32, i32) {
    %c0_i32 = arith.constant 0 : i32
    %c0_i32_0 = arith.constant 0 : i32
    return %c0_i32, %arg1 : i32, i32
  }
  func.func @transform_4(%arg0: i32, %arg1: i32) -> (i32, i32) {
    %c0_i32 = arith.constant 0 : i32
    %c0_i32_0 = arith.constant 0 : i32
    return %c0_i32, %arg1 : i32, i32
  }
  func.func @transform_5(%arg0: i32, %arg1: i32) -> (i32, i32) {
    %c0_i32 = arith.constant 0 : i32
    %c0_i32_0 = arith.constant 0 : i32
    return %c0_i32, %arg1 : i32, i32
  }
  func.func @transform_6(%arg0: i32, %arg1: i32) -> (i32, i32) {
    %c0_i32 = arith.constant 0 : i32
    %c0_i32_0 = arith.constant 0 : i32
    return %c0_i32, %arg1 : i32, i32
  }
  func.func @transform_7(%arg0: i32, %arg1: i32) -> (i32, i32, i32, i32) {
    %c0_i32 = arith.constant 0 : i32
    %c0_i32_0 = arith.constant 0 : i32
    %c0_i32_1 = arith.constant 0 : i32
    return %arg0, %c0_i32, %c0_i32_0, %arg1 : i32, i32, i32, i32
  }
}

</mosaic_0001>

<llo_original>
// kernel: tpu_custom_call.1
$region0: #{tpu_custom_call.1}
  #allocation0 [shape = 'u32[]', space=smem, size = 0x4, offset = 0x4, fixed_abs, tag = 'smem constant byte address 0x4 - core index']
  #allocation1 [shape = 'u32[72,128]{1,0:T(1,128)}', space=vmem, size = 0x9000, scoped, tag = 'internal scratch']
  #allocation2 [shape = 'f32[18,18,4]{2,1,0:T(8,128)}', space=vmem, size = 0x36000, scoped, tag = 'scratch operand']
  #allocation3 [shape = 'f32[18,18,128]{2,1,0:T(8,128)}', space=vmem, size = 0x36000, scoped, tag = 'scratch operand']
  #allocation4 [shape = 'f32[256,1152]{1,0:T(8,128)}', space=vmem, size = 0x120000, scoped, tag = 'scratch operand']
  #allocation5 [shape = 'f32[8,16,128]{2,1,0:T(8,128)}', space=vmem, size = 0x10000, scoped, tag = 'scratch operand']
  %s0 = inlined_call_operand.vmem [shape: f32[2,16,16,4], index: 0, kind: input, shape index: {}]
  %s1 = inlined_call_operand.vmem [shape: f32[36,128], index: 1, kind: input, shape index: {}]
  %s2 = inlined_call_operand.vmem [shape: f32[1,128], index: 2, kind: input, shape index: {}]
  %s3 = inlined_call_operand.hbm [shape: f32[1152,128], index: 3, kind: input, shape index: {}]
  %s4 = inlined_call_operand.vmem [shape: f32[1,128], index: 4, kind: input, shape index: {}]
  %s5 = inlined_call_operand.vmem [shape: f32[4,128], index: 5, kind: input, shape index: {}]
  %s6 = inlined_call_operand.vmem [shape: f32[1,128], index: 6, kind: input, shape index: {}]
  %s7 = inlined_call_operand.hbm [shape: f32[2,8,8,128], index: 7, kind: output, shape index: {}]
  %s8 = sld [smem:[#allocation0]]
  $region69: #{tpu_custom_call.1} parent=0
    _
  %s10 = ssub.s32 1, %s8
  %s11 = scalar_select 0, %s10, %s8
  $region1: #{tpu_custom_call.1} parent=0
    #allocation6 [shape = 'u8[589824]{0}', space=vmem, size = 0x90000, scoped, tag = 'input window, operand 3, single buffered']
    #allocation7 [shape = 's32[2]{0}', space=sflag, size = 0x8, scoped, tag = 'scoped memory for tpu_custom_call.1']
    #allocation8 [shape = 's32[2]{0}', space=sflag, size = 0x8, scoped, tag = 'scoped memory for tpu_custom_call.1']
    #allocation9 [shape = 'u8[65536]{0}', space=vmem, size = 0x10000, scoped, tag = 'output window, operand 0']
    %12 = vsyncpa [#allocation7], 0
    %13 = vsyncpa [#allocation8], 0
    %s14 = scalar_lea.sflag [#allocation8], 1
    %15 = vsyncpa %s14, 0
    loop: start=0, step=1, limit=4
    $region2: #{tpu_custom_call.1} parent=1 // loop_pre_header
      _
    $region3: #{tpu_custom_call.1} parent=1 // loop_header
      %s17 = sphi 0, %s21
      %p18 = scmp.ge.s32.totalorder %s17, 4
      %s24 = sphi 0, %s36
      %s25 = sphi 0, %s32
      %s26 = sphi 0, %s24
      %s27 = sphi 0, %s25
      %s28 = sphi 0, %s26
      %s29 = sphi 0, %s27
      %s39 = sphi 0, %s41
      %s42 = sphi 0, %s39
      %s43 = sphi 0, %s42
      %s59 = sphi 0, %s43
      %s63 = sphi 0, %s63
      %s65 = sphi 0, %s63
      %s66 = sphi 0, %s65
      %s80 = sphi 0, %s66
      %s84 = sphi 0, %s84
      %s86 = sphi 0, %s84
      %s87 = sphi 0, %s86
      %s101 = sphi 0, %s87
      %s107 = sphi 0, %s109
      %s110 = sphi 0, %s107
      %s111 = sphi 0, %s110
      %s127 = sphi 0, %s111
      %s133 = sphi 0, %s135
      %s136 = sphi 0, %s133
      %s137 = sphi 0, %s136
      %s153 = sphi 0, %s137
      %s159 = sphi 0, %s161
      %s162 = sphi 0, %s159
      %s163 = sphi 0, %s162
      %s179 = sphi 0, %s163
      %s185 = sphi 0, %s187
      %s188 = sphi 0, %s185
      %s189 = sphi 0, %s188
      %s205 = sphi 0, %s189
      %s213 = sphi 0, %s215
      %s216 = sphi 0, %s213
      %s217 = sphi 0, %s216
      %s233 = sphi 0, %s217
    $region4: #{tpu_custom_call.1} parent=1 // loop_header_branch
      %20 = sbr.rel (%p18) target = $region8
    $region5: #{tpu_custom_call.1} parent=1 // loop_body
      %s22 = ssub.s32 %s17, 1
      %s23 = ssub.s32 %s17, 2
      %s30 = sadd.s32 1, %s25
      %p31 = scmp.ge.s32.totalorder %s30, 1
      %s32 = scalar_select %p31, 0, %s30
      %s33 = sadd.s32 1, %s24
      %s34 = scalar_select %p31, %s33, %s24
      %p35 = scmp.ge.s32.totalorder %s34, 2
      %s36 = scalar_select %p35, 0, %s34
      %s37 = ssub.s32 %s24, %s36
      %p38 = scmp.eq.s32.totalorder %s37, 0
      %s40 = sadd.s32 %s39, 1
      %s41 = scalar_select %p38, %s39, %s40
      %p44 = pneg %p38
      %p45 = scmp.eq.s32.totalorder %s17, 1
      %p46 = por %p44, %p45
      %p47 = scmp.ne.s32.totalorder %s39, %s42
      %p48 = scmp.eq.s32.totalorder %s17, 0
      %p49 = por %p47, %p48
      %p50 = scmp.ne.s32.totalorder %s39, %s42
      %p51 = scmp.eq.s32.totalorder %s22, 1
      %p52 = por %p50, %p51
      %p53 = scmp.ne.s32.totalorder %s42, %s43
      %p54 = scmp.eq.s32.totalorder %s22, 0
      %p55 = por %p53, %p54
      %p56 = scmp.ne.s32.totalorder %s42, %s43
      %p57 = scmp.eq.s32.totalorder %s23, 1
      %p58 = por %p56, %p57
      %p60 = scmp.ne.s32.totalorder %s43, %s59
      %p61 = scmp.eq.s32.totalorder %s23, 0
      %p62 = por %p60, %p61
      %s64 = sadd.s32 %s63, 1
      %p67 = scmp.eq.s32.totalorder %s17, 1
      %p68 = scmp.ne.s32.totalorder %s63, %s65
      %p69 = scmp.eq.s32.totalorder %s17, 0
      %p70 = por %p68, %p69
      %p71 = scmp.ne.s32.totalorder %s63, %s65
      %p72 = scmp.eq.s32.totalorder %s22, 1
      %p73 = por %p71, %p72
      %p74 = scmp.ne.s32.totalorder %s65, %s66
      %p75 = scmp.eq.s32.totalorder %s22, 0
      %p76 = por %p74, %p75
      %p77 = scmp.ne.s32.totalorder %s65, %s66
      %p78 = scmp.eq.s32.totalorder %s23, 1
      %p79 = por %p77, %p78
      %p81 = scmp.ne.s32.totalorder %s66, %s80
      %p82 = scmp.eq.s32.totalorder %s23, 0
      %p83 = por %p81, %p82
      %s85 = sadd.s32 %s84, 1
      %p88 = scmp.eq.s32.totalorder %s17, 1
      %p89 = scmp.ne.s32.totalorder %s84, %s86
      %p90 = scmp.eq.s32.totalorder %s17, 0
      %p91 = por %p89, %p90
      %p92 = scmp.ne.s32.totalorder %s84, %s86
      %p93 = scmp.eq.s32.totalorder %s22, 1
      %p94 = por %p92, %p93
      %p95 = scmp.ne.s32.totalorder %s86, %s87
      %p96 = scmp.eq.s32.totalorder %s22, 0
      %p97 = por %p95, %p96
      %p98 = scmp.ne.s32.totalorder %s86, %s87
      %p99 = scmp.eq.s32.totalorder %s23, 1
      %p100 = por %p98, %p99
      %p102 = scmp.ne.s32.totalorder %s87, %s101
      %p103 = scmp.eq.s32.totalorder %s23, 0
      %p104 = por %p102, %p103
      %s105 = ssub.s32 %s25, %s32
      %p106 = scmp.eq.s32.totalorder %s105, 0
      %s108 = sadd.s32 %s107, 1
      %s109 = scalar_select %p106, %s107, %s108
      %p112 = pneg %p106
      %p113 = scmp.eq.s32.totalorder %s17, 1
      %p114 = por %p112, %p113
      %p115 = scmp.ne.s32.totalorder %s107, %s110
      %p116 = scmp.eq.s32.totalorder %s17, 0
      %p117 = por %p115, %p116
      %p118 = scmp.ne.s32.totalorder %s107, %s110
      %p119 = scmp.eq.s32.totalorder %s22, 1
      %p120 = por %p118, %p119
      %p121 = scmp.ne.s32.totalorder %s110, %s111
      %p122 = scmp.eq.s32.totalorder %s22, 0
      %p123 = por %p121, %p122
      %p124 = scmp.ne.s32.totalorder %s110, %s111
      %p125 = scmp.eq.s32.totalorder %s23, 1
      %p126 = por %p124, %p125
      %p128 = scmp.ne.s32.totalorder %s111, %s127
      %p129 = scmp.eq.s32.totalorder %s23, 0
      %p130 = por %p128, %p129
      %s131 = ssub.s32 %s25, %s32
      %p132 = scmp.eq.s32.totalorder %s131, 0
      %s134 = sadd.s32 %s133, 1
      %s135 = scalar_select %p132, %s133, %s134
      %p138 = pneg %p132
      %p139 = scmp.eq.s32.totalorder %s17, 1
      %p140 = por %p138, %p139
      %p141 = scmp.ne.s32.totalorder %s133, %s136
      %p142 = scmp.eq.s32.totalorder %s17, 0
      %p143 = por %p141, %p142
      %p144 = scmp.ne.s32.totalorder %s133, %s136
      %p145 = scmp.eq.s32.totalorder %s22, 1
      %p146 = por %p144, %p145
      %p147 = scmp.ne.s32.totalorder %s136, %s137
      %p148 = scmp.eq.s32.totalorder %s22, 0
      %p149 = por %p147, %p148
      %p150 = scmp.ne.s32.totalorder %s136, %s137
      %p151 = scmp.eq.s32.totalorder %s23, 1
      %p152 = por %p150, %p151
      %p154 = scmp.ne.s32.totalorder %s137, %s153
      %p155 = scmp.eq.s32.totalorder %s23, 0
      %p156 = por %p154, %p155
      %s157 = ssub.s32 %s25, %s32
      %p158 = scmp.eq.s32.totalorder %s157, 0
      %s160 = sadd.s32 %s159, 1
      %s161 = scalar_select %p158, %s159, %s160
      %p164 = pneg %p158
      %p165 = scmp.eq.s32.totalorder %s17, 1
      %p166 = por %p164, %p165
      %p167 = scmp.ne.s32.totalorder %s159, %s162
      %p168 = scmp.eq.s32.totalorder %s17, 0
      %p169 = por %p167, %p168
      %p170 = scmp.ne.s32.totalorder %s159, %s162
      %p171 = scmp.eq.s32.totalorder %s22, 1
      %p172 = por %p170, %p171
      %p173 = scmp.ne.s32.totalorder %s162, %s163
      %p174 = scmp.eq.s32.totalorder %s22, 0
      %p175 = por %p173, %p174
      %p176 = scmp.ne.s32.totalorder %s162, %s163
      %p177 = scmp.eq.s32.totalorder %s23, 1
      %p178 = por %p176, %p177
      %p180 = scmp.ne.s32.totalorder %s163, %s179
      %p181 = scmp.eq.s32.totalorder %s23, 0
      %p182 = por %p180, %p181
      %s183 = ssub.s32 %s25, %s32
      %p184 = scmp.eq.s32.totalorder %s183, 0
      %s186 = sadd.s32 %s185, 1
      %s187 = scalar_select %p184, %s185, %s186
      %p190 = pneg %p184
      %p191 = scmp.eq.s32.totalorder %s17, 1
      %p192 = por %p190, %p191
      %p193 = scmp.ne.s32.totalorder %s185, %s188
      %p194 = scmp.eq.s32.totalorder %s17, 0
      %p195 = por %p193, %p194
      %p196 = scmp.ne.s32.totalorder %s185, %s188
      %p197 = scmp.eq.s32.totalorder %s22, 1
      %p198 = por %p196, %p197
      %p199 = scmp.ne.s32.totalorder %s188, %s189
      %p200 = scmp.eq.s32.totalorder %s22, 0
      %p201 = por %p199, %p200
      %p202 = scmp.ne.s32.totalorder %s188, %s189
      %p203 = scmp.eq.s32.totalorder %s23, 1
      %p204 = por %p202, %p203
      %p206 = scmp.ne.s32.totalorder %s189, %s205
      %p207 = scmp.eq.s32.totalorder %s23, 0
      %p208 = por %p206, %p207
      %s209 = ssub.s32 %s24, %s36
      %s210 = ssub.s32 %s25, %s32
      %s211 = sor.u32 %s209, %s210
      %p212 = scmp.eq.s32.totalorder %s211, 0
      %s214 = sadd.s32 %s213, 1
      %s215 = scalar_select %p212, %s213, %s214
      %p218 = pneg %p212
      %p219 = scmp.eq.s32.totalorder %s17, 1
      %p220 = por %p218, %p219
      %p221 = scmp.ne.s32.totalorder %s213, %s216
      %p222 = scmp.eq.s32.totalorder %s17, 0
      %p223 = por %p221, %p222
      %p224 = scmp.ne.s32.totalorder %s213, %s216
      %p225 = scmp.eq.s32.totalorder %s22, 1
      %p226 = por %p224, %p225
      %p227 = scmp.ne.s32.totalorder %s216, %s217
      %p228 = scmp.eq.s32.totalorder %s22, 0
      %p229 = por %p227, %p228
      %p230 = scmp.ne.s32.totalorder %s216, %s217
      %p231 = scmp.eq.s32.totalorder %s23, 1
      %p232 = por %p230, %p231
      %p234 = scmp.ne.s32.totalorder %s217, %s233
      %p235 = scmp.eq.s32.totalorder %s23, 0
      %p236 = por %p234, %p235
      %p237 = scmp.le.s32.totalorder 1, %s17
      %p238 = scmp.lt.s32.totalorder %s17, 3
      %p239 = pnand %p237, %p238
      %p240 = pneg %p239
      // Predicated region
      $region9: #{tpu_custom_call.1} parent=5 // pred_check
        _
      $region10: #{tpu_custom_call.1} parent=5 // pred_check_branch
        %242 = sbr.rel (%p239) target = $region12
      $region11: #{tpu_custom_call.1} parent=5 // pred_region
        %s243 = ssub.s32 %s17, 1
        // Predicated region
        $region13: #{tpu_custom_call.1} parent=11 // pred_check
          %p244 = pneg %p76
        $region14: #{tpu_custom_call.1} parent=11 // pred_check_branch
          %246 = sbr.rel (%p244) target = $region16
        $region15: #{tpu_custom_call.1} parent=11 // pred_region
          _
        $region16: #{tpu_custom_call.1} parent=11 // pred_fallthru
          _
        // Predicated region
        $region17: #{tpu_custom_call.1} parent=11 // pred_check
          %p247 = pneg %p97
        $region18: #{tpu_custom_call.1} parent=11 // pred_check_branch
          %249 = sbr.rel (%p247) target = $region20
        $region19: #{tpu_custom_call.1} parent=11 // pred_region
          _
        $region20: #{tpu_custom_call.1} parent=11 // pred_fallthru
          _
        // Predicated region
        $region21: #{tpu_custom_call.1} parent=11 // pred_check
          %p250 = pneg %p123
        $region22: #{tpu_custom_call.1} parent=11 // pred_check_branch
          %252 = sbr.rel (%p250) target = $region24
        $region23: #{tpu_custom_call.1} parent=11 // pred_region
          %254 = vsyncadd [#allocation7], 0
          %s255 = smul.addr %s27, 8
          %s256 = scalar_lea.hbm %s3, %s255
          %s257 = sshll.u32 %s256, 4
          %s258 = int_to_ptr.hbm [resolvable:$true] %s257
          %s259 = sshll.u32 [#allocation6], 4
          %s260 = int_to_ptr.vmem [resolvable:$true] %s259
          %265 = dma.hbm_to_vmem [thread:$0]  %s258, 18432, %s260, [#allocation7], 128, 128, 8
        $region24: #{tpu_custom_call.1} parent=11 // pred_fallthru
          _
        // Predicated region
        $region25: #{tpu_custom_call.1} parent=11 // pred_check
          %p266 = pneg %p149
        $region26: #{tpu_custom_call.1} parent=11 // pred_check_branch
          %268 = sbr.rel (%p266) target = $region28
        $region27: #{tpu_custom_call.1} parent=11 // pred_region
          %p269 = scmp.lt.s32.totalorder %s27, 0
          %s270 = scalar_select %p269, %s27, 0
          %s271 = scalar_lea.vmem %s4, %s270
        $region28: #{tpu_custom_call.1} parent=11 // pred_fallthru
          _
        // Predicated region
        $region29: #{tpu_custom_call.1} parent=11 // pred_check
          %p272 = pneg %p175
        $region30: #{tpu_custom_call.1} parent=11 // pred_check_branch
          %274 = sbr.rel (%p272) target = $region32
        $region31: #{tpu_custom_call.1} parent=11 // pred_region
          %p275 = scmp.lt.s32.totalorder %s27, 0
          %s276 = scalar_select %p275, %s27, 0
          %s277 = smul.addr %s276, 4
          %s278 = scalar_lea.vmem %s5, %s277
        $region32: #{tpu_custom_call.1} parent=11 // pred_fallthru
          _
        // Predicated region
        $region33: #{tpu_custom_call.1} parent=11 // pred_check
          %p279 = pneg %p201
        $region34: #{tpu_custom_call.1} parent=11 // pred_check_branch
          %281 = sbr.rel (%p279) target = $region36
        $region35: #{tpu_custom_call.1} parent=11 // pred_region
          %p282 = scmp.lt.s32.totalorder %s27, 0
          %s283 = scalar_select %p282, %s27, 0
          %s284 = scalar_lea.vmem %s6, %s283
        $region36: #{tpu_custom_call.1} parent=11 // pred_fallthru
          _
      $region12: #{tpu_custom_call.1} parent=5 // pred_fallthru
        _
      %p285 = scmp.lt.s32.totalorder %s17, 2
      // Predicated region
      $region37: #{tpu_custom_call.1} parent=5 // pred_check
        %p286 = pneg %p285
      $region38: #{tpu_custom_call.1} parent=5 // pred_check_branch
        %288 = sbr.rel (%p286) target = $region40
      $region39: #{tpu_custom_call.1} parent=5 // pred_region
        // Predicated region
        $region41: #{tpu_custom_call.1} parent=39 // pred_check
          %p289 = pneg %p49
        $region42: #{tpu_custom_call.1} parent=39 // pred_check_branch
          %291 = sbr.rel (%p289) target = $region44
        $region43: #{tpu_custom_call.1} parent=39 // pred_region
          %p292 = scmp.lt.s32.totalorder %s24, 1
          %s293 = scalar_select %p292, %s24, 1
          %s294 = smul.addr %s293, 32
          %s295 = smul.addr %s294, 8
          %s296 = scalar_lea.vmem %s0, %s295
        $region44: #{tpu_custom_call.1} parent=39 // pred_fallthru
          _
      $region40: #{tpu_custom_call.1} parent=5 // pred_fallthru
        _
      %p297 = scmp.le.s32.totalorder 1, %s17
      %p298 = scmp.lt.s32.totalorder %s17, 3
      %p299 = pnand %p297, %p298
      %p300 = pneg %p299
      // Predicated region
      $region45: #{tpu_custom_call.1} parent=5 // pred_check
        _
      $region46: #{tpu_custom_call.1} parent=5 // pred_check_branch
        %302 = sbr.rel (%p299) target = $region48
      $region47: #{tpu_custom_call.1} parent=5 // pred_region
        %s303 = ssub.s32 %s17, 1
        // Predicated region
        $region49: #{tpu_custom_call.1} parent=47 // pred_check
          %p304 = pneg %p123
        $region50: #{tpu_custom_call.1} parent=47 // pred_check_branch
          %306 = sbr.rel (%p304) target = $region52
        $region51: #{tpu_custom_call.1} parent=47 // pred_region
          %308 = dma.done [#allocation7], 18432
        $region52: #{tpu_custom_call.1} parent=47 // pred_fallthru
          _
        %p309 = scmp.lt.s32.totalorder %s26, 1
        %s310 = scalar_select %p309, %s26, 1
        %s311 = smul.addr %s310, 32
        %s312 = smul.addr %s311, 8
        %s313 = scalar_lea.vmem %s0, %s312
        %p314 = pneg %p55
        %p315 = pneg %p52
        %p316 = pneg %p76
        %p317 = pneg %p73
        %p318 = pneg %p97
        %p319 = pneg %p94
        %p320 = pneg %p123
        %p321 = pneg %p120
        %p322 = scmp.lt.s32.totalorder %s27, 0
        %s323 = scalar_select %p322, %s27, 0
        %s324 = scalar_lea.vmem %s4, %s323
        %p325 = pneg %p149
        %p326 = pneg %p146
        %p327 = scmp.lt.s32.totalorder %s27, 0
        %s328 = scalar_select %p327, %s27, 0
        %s329 = smul.addr %s328, 4
        %s330 = scalar_lea.vmem %s5, %s329
        %p331 = pneg %p175
        %p332 = pneg %p172
        %p333 = scmp.lt.s32.totalorder %s27, 0
        %s334 = scalar_select %p333, %s27, 0
        %s335 = scalar_lea.vmem %s6, %s334
        %p336 = pneg %p201
        %p337 = pneg %p198
        %p338 = pneg %p229
        %p339 = pneg %p226
        %s340 = sand.u32 %s216, 1
        %s341 = scalar_lea.sflag [#allocation8], %s340
        %s342 = sand.u32 %s216, 1
        %s343 = smul.addr %s342, 64
        %s344 = scalar_lea.vmem [#allocation9], %s343
        %p345 = scmp.lt.s32.totalorder %s26, 1
        %s346 = scalar_select %p345, %s26, 1
        %s347 = smul.addr %s346, 32
        %s348 = smul.addr %s347, 8
        %s349 = scalar_lea.vmem %s0, %s348
        %p350 = scmp.lt.s32.totalorder %s27, 0
        %s351 = scalar_select %p350, %s27, 0
        %s352 = scalar_lea.vmem %s4, %s351
        %p353 = scmp.lt.s32.totalorder %s27, 0
        %s354 = scalar_select %p353, %s27, 0
        %s355 = smul.addr %s354, 4
        %s356 = scalar_lea.vmem %s5, %s355
        %p357 = scmp.lt.s32.totalorder %s27, 0
        %s358 = scalar_select %p357, %s27, 0
        %s359 = scalar_lea.vmem %s6, %s358
        %p360 = scmp.eq.s32.totalorder %s27, 0
        // Predicated region
        $region53: #{tpu_custom_call.1} parent=47 // pred_check
          %p361 = pneg %p360
        $region54: #{tpu_custom_call.1} parent=47 // pred_check_branch
          %363 = sbr.rel (%p361) target = $region56
        $region55: #{tpu_custom_call.1} parent=47 // pred_region
          %vm364 = vcmask 31744
          %365 = vst.msk [vmem:[#allocation2] sm:$0xff] %vm364, 0.0
          %366 = vst.msk [vmem:[#allocation2 + $0x8] sm:$0xff] %vm364, 0.0
          %vm367 = vcmask 25600
          %368 = vst.msk [vmem:[#allocation2 + $0x10] sm:$0x3] %vm367, 0.0
          %369 = vst.msk [vmem:[#allocation2 + $0x18] sm:$0xff] %vm364, 0.0
          %370 = vst.msk [vmem:[#allocation2 + $0x20] sm:$0xff] %vm364, 0.0
          %371 = vst.msk [vmem:[#allocation2 + $0x28] sm:$0x3] %vm367, 0.0
          %372 = vst.msk [vmem:[#allocation2 + $0x30] sm:$0xff] %vm364, 0.0
          %373 = vst.msk [vmem:[#allocation2 + $0x38] sm:$0xff] %vm364, 0.0
          %374 = vst.msk [vmem:[#allocation2 + $0x40] sm:$0x3] %vm367, 0.0
          %375 = vst.msk [vmem:[#allocation2 + $0x48] sm:$0xff] %vm364, 0.0
          %376 = vst.msk [vmem:[#allocation2 + $0x50] sm:$0xff] %vm364, 0.0
          %377 = vst.msk [vmem:[#allocation2 + $0x58] sm:$0x3] %vm367, 0.0
          %378 = vst.msk [vmem:[#allocation2 + $0x60] sm:$0xff] %vm364, 0.0
          %379 = vst.msk [vmem:[#allocation2 + $0x68] sm:$0xff] %vm364, 0.0
          %380 = vst.msk [vmem:[#allocation2 + $0x70] sm:$0x3] %vm367, 0.0
          %381 = vst.msk [vmem:[#allocation2 + $0x78] sm:$0xff] %vm364, 0.0
          %382 = vst.msk [vmem:[#allocation2 + $0x80] sm:$0xff] %vm364, 0.0
          %383 = vst.msk [vmem:[#allocation2 + $0x88] sm:$0x3] %vm367, 0.0
          %384 = vst.msk [vmem:[#allocation2 + $0x90] sm:$0xff] %vm364, 0.0
          %385 = vst.msk [vmem:[#allocation2 + $0x98] sm:$0xff] %vm364, 0.0
          %386 = vst.msk [vmem:[#allocation2 + $0xa0] sm:$0x3] %vm367, 0.0
          %387 = vst.msk [vmem:[#allocation2 + $0xa8] sm:$0xff] %vm364, 0.0
          %388 = vst.msk [vmem:[#allocation2 + $0xb0] sm:$0xff] %vm364, 0.0
          %389 = vst.msk [vmem:[#allocation2 + $0xb8] sm:$0x3] %vm367, 0.0
          %390 = vst.msk [vmem:[#allocation2 + $0xc0] sm:$0xff] %vm364, 0.0
          %391 = vst.msk [vmem:[#allocation2 + $0xc8] sm:$0xff] %vm364, 0.0
          %392 = vst.msk [vmem:[#allocation2 + $0xd0] sm:$0x3] %vm367, 0.0
          %393 = vst.msk [vmem:[#allocation2 + $0xd8] sm:$0xff] %vm364, 0.0
          %394 = vst.msk [vmem:[#allocation2 + $0xe0] sm:$0xff] %vm364, 0.0
          %395 = vst.msk [vmem:[#allocation2 + $0xe8] sm:$0x3] %vm367, 0.0
          %396 = vst.msk [vmem:[#allocation2 + $0xf0] sm:$0xff] %vm364, 0.0
          %397 = vst.msk [vmem:[#allocation2 + $0xf8] sm:$0xff] %vm364, 0.0
          %398 = vst.msk [vmem:[#allocation2 + $0x100] sm:$0x3] %vm367, 0.0
          %399 = vst.msk [vmem:[#allocation2 + $0x108] sm:$0xff] %vm364, 0.0
          %400 = vst.msk [vmem:[#allocation2 + $0x110] sm:$0xff] %vm364, 0.0
          %401 = vst.msk [vmem:[#allocation2 + $0x118] sm:$0x3] %vm367, 0.0
          %402 = vst.msk [vmem:[#allocation2 + $0x120] sm:$0xff] %vm364, 0.0
          %403 = vst.msk [vmem:[#allocation2 + $0x128] sm:$0xff] %vm364, 0.0
          %404 = vst.msk [vmem:[#allocation2 + $0x130] sm:$0x3] %vm367, 0.0
          %405 = vst.msk [vmem:[#allocation2 + $0x138] sm:$0xff] %vm364, 0.0
          %406 = vst.msk [vmem:[#allocation2 + $0x140] sm:$0xff] %vm364, 0.0
          %407 = vst.msk [vmem:[#allocation2 + $0x148] sm:$0x3] %vm367, 0.0
          %408 = vst.msk [vmem:[#allocation2 + $0x150] sm:$0xff] %vm364, 0.0
          %409 = vst.msk [vmem:[#allocation2 + $0x158] sm:$0xff] %vm364, 0.0
          %410 = vst.msk [vmem:[#allocation2 + $0x160] sm:$0x3] %vm367, 0.0
          %411 = vst.msk [vmem:[#allocation2 + $0x168] sm:$0xff] %vm364, 0.0
          %412 = vst.msk [vmem:[#allocation2 + $0x170] sm:$0xff] %vm364, 0.0
          %413 = vst.msk [vmem:[#allocation2 + $0x178] sm:$0x3] %vm367, 0.0
          %414 = vst.msk [vmem:[#allocation2 + $0x180] sm:$0xff] %vm364, 0.0
          %415 = vst.msk [vmem:[#allocation2 + $0x188] sm:$0xff] %vm364, 0.0
          %416 = vst.msk [vmem:[#allocation2 + $0x190] sm:$0x3] %vm367, 0.0
          %417 = vst.msk [vmem:[#allocation2 + $0x198] sm:$0xff] %vm364, 0.0
          %418 = vst.msk [vmem:[#allocation2 + $0x1a0] sm:$0xff] %vm364, 0.0
          %419 = vst.msk [vmem:[#allocation2 + $0x1a8] sm:$0x3] %vm367, 0.0
          %v420 = vld [vmem:[%s349] sm:$0xff]
          %v421 = vld [vmem:[%s349 + $0x8] sm:$0xff]
          %v422 = vld [vmem:[%s349 + $0x10] sm:$0xff]
          %v423 = vld [vmem:[%s349 + $0x18] sm:$0xff]
          %v424 = vld [vmem:[%s349 + $0x20] sm:$0xff]
          %v425 = vld [vmem:[%s349 + $0x28] sm:$0xff]
          %v426 = vld [vmem:[%s349 + $0x30] sm:$0xff]
          %v427 = vld [vmem:[%s349 + $0x38] sm:$0xff]
          %v428 = vld [vmem:[%s349 + $0x40] sm:$0xff]
          %v429 = vld [vmem:[%s349 + $0x48] sm:$0xff]
          %v430 = vld [vmem:[%s349 + $0x50] sm:$0xff]
          %v431 = vld [vmem:[%s349 + $0x58] sm:$0xff]
          %v432 = vld [vmem:[%s349 + $0x60] sm:$0xff]
          %v433 = vld [vmem:[%s349 + $0x68] sm:$0xff]
          %v434 = vld [vmem:[%s349 + $0x70] sm:$0xff]
          %v435 = vld [vmem:[%s349 + $0x78] sm:$0xff]
          %v436 = vld [vmem:[%s349 + $0x80] sm:$0xff]
          %v437 = vld [vmem:[%s349 + $0x88] sm:$0xff]
          %v438 = vld [vmem:[%s349 + $0x90] sm:$0xff]
          %v439 = vld [vmem:[%s349 + $0x98] sm:$0xff]
          %v440 = vld [vmem:[%s349 + $0xa0] sm:$0xff]
          %v441 = vld [vmem:[%s349 + $0xa8] sm:$0xff]
          %v442 = vld [vmem:[%s349 + $0xb0] sm:$0xff]
          %v443 = vld [vmem:[%s349 + $0xb8] sm:$0xff]
          %v444 = vld [vmem:[%s349 + $0xc0] sm:$0xff]
          %v445 = vld [vmem:[%s349 + $0xc8] sm:$0xff]
          %v446 = vld [vmem:[%s349 + $0xd0] sm:$0xff]
          %v447 = vld [vmem:[%s349 + $0xd8] sm:$0xff]
          %v448 = vld [vmem:[%s349 + $0xe0] sm:$0xff]
          %v449 = vld [vmem:[%s349 + $0xe8] sm:$0xff]
          %v450 = vld [vmem:[%s349 + $0xf0] sm:$0xff]
          %v451 = vld [vmem:[%s349 + $0xf8] sm:$0xff]
          %v452 = vmax.f32 %v420, 0.0
          %v453 = vmax.f32 %v421, 0.0
          %v454 = vmax.f32 %v422, 0.0
          %v455 = vmax.f32 %v423, 0.0
          %v456 = vmax.f32 %v424, 0.0
          %v457 = vmax.f32 %v425, 0.0
          %v458 = vmax.f32 %v426, 0.0
          %v459 = vmax.f32 %v427, 0.0
          %v460 = vmax.f32 %v428, 0.0
          %v461 = vmax.f32 %v429, 0.0
          %v462 = vmax.f32 %v430, 0.0
          %v463 = vmax.f32 %v431, 0.0
          %v464 = vmax.f32 %v432, 0.0
          %v465 = vmax.f32 %v433, 0.0
          %v466 = vmax.f32 %v434, 0.0
          %v467 = vmax.f32 %v435, 0.0
          %v468 = vmax.f32 %v436, 0.0
          %v469 = vmax.f32 %v437, 0.0
          %v470 = vmax.f32 %v438, 0.0
          %v471 = vmax.f32 %v439, 0.0
          %v472 = vmax.f32 %v440, 0.0
          %v473 = vmax.f32 %v441, 0.0
          %v474 = vmax.f32 %v442, 0.0
          %v475 = vmax.f32 %v443, 0.0
          %v476 = vmax.f32 %v444, 0.0
          %v477 = vmax.f32 %v445, 0.0
          %v478 = vmax.f32 %v446, 0.0
          %v479 = vmax.f32 %v447, 0.0
          %v480 = vmax.f32 %v448, 0.0
          %v481 = vmax.f32 %v449, 0.0
          %v482 = vmax.f32 %v450, 0.0
          %v483 = vmax.f32 %v451, 0.0
          %s484 = scalar_lea.vmem [#allocation2], 24
          %485 = vst.msk [vmem:[%s484 + $0x1] sm:$0xff] %vm364, %v452
          %486 = vst.msk [vmem:[%s484 + $0x9] sm:$0xff] %vm364, %v453
          %487 = vst.msk [vmem:[%s484 + $0x19] sm:$0xff] %vm364, %v454
          %488 = vst.msk [vmem:[%s484 + $0x21] sm:$0xff] %vm364, %v455
          %489 = vst.msk [vmem:[%s484 + $0x31] sm:$0xff] %vm364, %v456
          %490 = vst.msk [vmem:[%s484 + $0x39] sm:$0xff] %vm364, %v457
          %491 = vst.msk [vmem:[%s484 + $0x49] sm:$0xff] %vm364, %v458
          %492 = vst.msk [vmem:[%s484 + $0x51] sm:$0xff] %vm364, %v459
          %493 = vst.msk [vmem:[%s484 + $0x61] sm:$0xff] %vm364, %v460
          %494 = vst.msk [vmem:[%s484 + $0x69] sm:$0xff] %vm364, %v461
          %495 = vst.msk [vmem:[%s484 + $0x79] sm:$0xff] %vm364, %v462
          %496 = vst.msk [vmem:[%s484 + $0x81] sm:$0xff] %vm364, %v463
          %497 = vst.msk [vmem:[%s484 + $0x91] sm:$0xff] %vm364, %v464
          %498 = vst.msk [vmem:[%s484 + $0x99] sm:$0xff] %vm364, %v465
          %499 = vst.msk [vmem:[%s484 + $0xa9] sm:$0xff] %vm364, %v466
          %500 = vst.msk [vmem:[%s484 + $0xb1] sm:$0xff] %vm364, %v467
          %501 = vst.msk [vmem:[%s484 + $0xc1] sm:$0xff] %vm364, %v468
          %502 = vst.msk [vmem:[%s484 + $0xc9] sm:$0xff] %vm364, %v469
          %503 = vst.msk [vmem:[%s484 + $0xd9] sm:$0xff] %vm364, %v470
          %504 = vst.msk [vmem:[%s484 + $0xe1] sm:$0xff] %vm364, %v471
          %505 = vst.msk [vmem:[%s484 + $0xf1] sm:$0xff] %vm364, %v472
          %506 = vst.msk [vmem:[%s484 + $0xf9] sm:$0xff] %vm364, %v473
          %507 = vst.msk [vmem:[%s484 + $0x109] sm:$0xff] %vm364, %v474
          %508 = vst.msk [vmem:[%s484 + $0x111] sm:$0xff] %vm364, %v475
          %509 = vst.msk [vmem:[%s484 + $0x121] sm:$0xff] %vm364, %v476
          %510 = vst.msk [vmem:[%s484 + $0x129] sm:$0xff] %vm364, %v477
          %511 = vst.msk [vmem:[%s484 + $0x139] sm:$0xff] %vm364, %v478
          %512 = vst.msk [vmem:[%s484 + $0x141] sm:$0xff] %vm364, %v479
          %513 = vst.msk [vmem:[%s484 + $0x151] sm:$0xff] %vm364, %v480
          %514 = vst.msk [vmem:[%s484 + $0x159] sm:$0xff] %vm364, %v481
          %515 = vst.msk [vmem:[%s484 + $0x169] sm:$0xff] %vm364, %v482
          %516 = vst.msk [vmem:[%s484 + $0x171] sm:$0xff] %vm364, %v483
          %v517 = vld [vmem:[#allocation2] sm:$0xff]
          %v518 = vld [vmem:[#allocation2 + $0x8] sm:$0xff]
          %v519 = vld [vmem:[#allocation2 + $0x18] sm:$0xff]
          %v520 = vld [vmem:[#allocation2 + $0x20] sm:$0xff]
          %v521 = vld [vmem:[#allocation2 + $0x30] sm:$0xff]
          %v522 = vld [vmem:[#allocation2 + $0x38] sm:$0xff]
          %v523 = vld [vmem:[#allocation2 + $0x48] sm:$0xff]
          %v524 = vld [vmem:[#allocation2 + $0x50] sm:$0xff]
          %v525 = vld [vmem:[#allocation2 + $0x60] sm:$0xff]
          %v526 = vld [vmem:[#allocation2 + $0x68] sm:$0xff]
          %v527 = vld [vmem:[#allocation2 + $0x78] sm:$0xff]
          %v528 = vld [vmem:[#allocation2 + $0x80] sm:$0xff]
          %v529 = vld [vmem:[#allocation2 + $0x90] sm:$0xff]
          %v530 = vld [vmem:[#allocation2 + $0x98] sm:$0xff]
          %v531 = vld [vmem:[#allocation2 + $0xa8] sm:$0xff]
          %v532 = vld [vmem:[#allocation2 + $0xb0] sm:$0xff]
          %v533 = vld [vmem:[#allocation2 + $0xc0] sm:$0xff]
          %v534 = vld [vmem:[#allocation2 + $0xc8] sm:$0xff]
          %v535 = vld [vmem:[#allocation2 + $0xd8] sm:$0xff]
          %v536 = vld [vmem:[#allocation2 + $0xe0] sm:$0xff]
          %v537 = vld [vmem:[#allocation2 + $0xf0] sm:$0xff]
          %v538 = vld [vmem:[#allocation2 + $0xf8] sm:$0xff]
          %v539 = vld [vmem:[#allocation2 + $0x108] sm:$0xff]
          %v540 = vld [vmem:[#allocation2 + $0x110] sm:$0xff]
          %v541 = vld [vmem:[#allocation2 + $0x120] sm:$0xff]
          %v542 = vld [vmem:[#allocation2 + $0x128] sm:$0xff]
          %v543 = vld [vmem:[#allocation2 + $0x138] sm:$0xff]
          %v544 = vld [vmem:[#allocation2 + $0x140] sm:$0xff]
          %v545 = vld [vmem:[#allocation2 + $0x150] sm:$0xff]
          %v546 = vld [vmem:[#allocation2 + $0x158] sm:$0xff]
          %v547 = vld [vmem:[#allocation2 + $0x168] sm:$0xff]
          %v548 = vld [vmem:[#allocation2 + $0x170] sm:$0xff]
          %v549 = vld [vmem:[%s1] sm:$0xf]
          %v550 = vld [vmem:[#allocation2 + $0x1] sm:$0xff]
          %v551 = vld [vmem:[#allocation2 + $0x9] sm:$0xff]
          %v552 = vld [vmem:[#allocation2 + $0x19] sm:$0xff]
          %v553 = vld [vmem:[#allocation2 + $0x21] sm:$0xff]
          %v554 = vld [vmem:[#allocation2 + $0x31] sm:$0xff]
          %v555 = vld [vmem:[#allocation2 + $0x39] sm:$0xff]
          %v556 = vld [vmem:[#allocation2 + $0x49] sm:$0xff]
          %v557 = vld [vmem:[#allocation2 + $0x51] sm:$0xff]
          %v558 = vld [vmem:[#allocation2 + $0x61] sm:$0xff]
          %v559 = vld [vmem:[#allocation2 + $0x69] sm:$0xff]
          %v560 = vld [vmem:[#allocation2 + $0x79] sm:$0xff]
          %v561 = vld [vmem:[#allocation2 + $0x81] sm:$0xff]
          %v562 = vld [vmem:[#allocation2 + $0x91] sm:$0xff]
          %v563 = vld [vmem:[#allocation2 + $0x99] sm:$0xff]
          %v564 = vld [vmem:[#allocation2 + $0xa9] sm:$0xff]
          %v565 = vld [vmem:[#allocation2 + $0xb1] sm:$0xff]
          %v566 = vld [vmem:[#allocation2 + $0xc1] sm:$0xff]
          %v567 = vld [vmem:[#allocation2 + $0xc9] sm:$0xff]
          %v568 = vld [vmem:[#allocation2 + $0xd9] sm:$0xff]
          %v569 = vld [vmem:[#allocation2 + $0xe1] sm:$0xff]
          %v570 = vld [vmem:[#allocation2 + $0xf1] sm:$0xff]
          %v571 = vld [vmem:[#allocation2 + $0xf9] sm:$0xff]
          %v572 = vld [vmem:[#allocation2 + $0x109] sm:$0xff]
          %v573 = vld [vmem:[#allocation2 + $0x111] sm:$0xff]
          %v574 = vld [vmem:[#allocation2 + $0x121] sm:$0xff]
          %v575 = vld [vmem:[#allocation2 + $0x129] sm:$0xff]
          %v576 = vld [vmem:[#allocation2 + $0x139] sm:$0xff]
          %v577 = vld [vmem:[#allocation2 + $0x141] sm:$0xff]
          %v578 = vld [vmem:[#allocation2 + $0x151] sm:$0xff]
          %v579 = vld [vmem:[#allocation2 + $0x159] sm:$0xff]
          %v580 = vld [vmem:[#allocation2 + $0x169] sm:$0xff]
          %v581 = vld [vmem:[#allocation2 + $0x171] sm:$0xff]
          %v582 = vld [vmem:[%s1 + $0x4] sm:$0xf]
          %v584 = vsel %vm364, %v550, 0
          %v587 = vsel %vm364, %v551, 0
          %v590 = vsel %vm364, %v552, 0
          %v593 = vsel %vm364, %v553, 0
          %v596 = vsel %vm364, %v554, 0
          %v599 = vsel %vm364, %v555, 0
          %v602 = vsel %vm364, %v556, 0
          %v605 = vsel %vm364, %v557, 0
          %v608 = vsel %vm364, %v558, 0
          %v611 = vsel %vm364, %v559, 0
          %v614 = vsel %vm364, %v560, 0
          %v617 = vsel %vm364, %v561, 0
          %v620 = vsel %vm364, %v562, 0
          %v623 = vsel %vm364, %v563, 0
          %v626 = vsel %vm364, %v564, 0
          %v629 = vsel %vm364, %v565, 0
          %v632 = vsel %vm364, %v566, 0
          %v635 = vsel %vm364, %v567, 0
          %v638 = vsel %vm364, %v568, 0
          %v641 = vsel %vm364, %v569, 0
          %v644 = vsel %vm364, %v570, 0
          %v647 = vsel %vm364, %v571, 0
          %v650 = vsel %vm364, %v572, 0
          %v653 = vsel %vm364, %v573, 0
          %v656 = vsel %vm364, %v574, 0
          %v659 = vsel %vm364, %v575, 0
          %v662 = vsel %vm364, %v576, 0
          %v665 = vsel %vm364, %v577, 0
          %v668 = vsel %vm364, %v578, 0
          %v671 = vsel %vm364, %v579, 0
          %v674 = vsel %vm364, %v580, 0
          %v677 = vsel %vm364, %v581, 0
          %vm679 = vcmask 1043456
          %v681 = vsel %vm679, %v582, 0
          %683 = vmatpush.msra.mxu0 0.0
          %684 = vmatpush.msra.mxu0 0.0
          %685 = vmatpush.msra.mxu0 0.0
          %686 = vmatpush.msra.mxu0 0.0
          %687 = vmatpush.msra.mxu0 0.0
          %688 = vmatpush.msra.mxu0 0.0
          %689 = vmatpush.msra.mxu0 0.0
          %690 = vmatpush.msra.mxu0 0.0
          %691 = vmatpush.msra.mxu0 0.0
          %692 = vmatpush.msra.mxu0 0.0
          %693 = vmatpush.msra.mxu0 0.0
          %694 = vmatpush.msra.mxu0 0.0
          %695 = vmatpush.msra.mxu0 0.0
          %696 = vmatpush.msra.mxu0 0.0
          %697 = vmatpush.msra.mxu0 0.0
          %698 = vmatpush.msra.mxu0 %v681
          %699 = vmatmul.f32.gmra.mxu0 %v584
          %v700 = vpop.f32.mrf.mxu0
          %v701 = vadd.f32 0.0, %v700
          %702 = vmatmul.f32.gmra.mxu0 %v587
          %v703 = vpop.f32.mrf.mxu0
          %v704 = vadd.f32 0.0, %v703
          %705 = vmatmul.f32.gmra.mxu0 %v590
          %v706 = vpop.f32.mrf.mxu0
          %v707 = vadd.f32 0.0, %v706
          %708 = vmatmul.f32.gmra.mxu0 %v593
          %v709 = vpop.f32.mrf.mxu0
          %v710 = vadd.f32 0.0, %v709
          %711 = vmatmul.f32.gmra.mxu0 %v596
          %v712 = vpop.f32.mrf.mxu0
          %v713 = vadd.f32 0.0, %v712
          %714 = vmatmul.f32.gmra.mxu0 %v599
          %v715 = vpop.f32.mrf.mxu0
          %v716 = vadd.f32 0.0, %v715
          %717 = vmatmul.f32.gmra.mxu0 %v602
          %v718 = vpop.f32.mrf.mxu0
          %v719 = vadd.f32 0.0, %v718
          %720 = vmatmul.f32.gmra.mxu0 %v605
          %v721 = vpop.f32.mrf.mxu0
          %v722 = vadd.f32 0.0, %v721
          %723 = vmatmul.f32.gmra.mxu0 %v608
          %v724 = vpop.f32.mrf.mxu0
          %v725 = vadd.f32 0.0, %v724
          %726 = vmatmul.f32.gmra.mxu0 %v611
          %v727 = vpop.f32.mrf.mxu0
          %v728 = vadd.f32 0.0, %v727
          %729 = vmatmul.f32.gmra.mxu0 %v614
          %v730 = vpop.f32.mrf.mxu0
          %v731 = vadd.f32 0.0, %v730
          %732 = vmatmul.f32.gmra.mxu0 %v617
          %v733 = vpop.f32.mrf.mxu0
          %v734 = vadd.f32 0.0, %v733
          %735 = vmatmul.f32.gmra.mxu0 %v620
          %v736 = vpop.f32.mrf.mxu0
          %v737 = vadd.f32 0.0, %v736
          %738 = vmatmul.f32.gmra.mxu0 %v623
          %v739 = vpop.f32.mrf.mxu0
          %v740 = vadd.f32 0.0, %v739
          %741 = vmatmul.f32.gmra.mxu0 %v626
          %v742 = vpop.f32.mrf.mxu0
          %v743 = vadd.f32 0.0, %v742
          %744 = vmatmul.f32.gmra.mxu0 %v629
          %v745 = vpop.f32.mrf.mxu0
          %v746 = vadd.f32 0.0, %v745
          %747 = vmatmul.f32.gmra.mxu0 %v632
          %v748 = vpop.f32.mrf.mxu0
          %v749 = vadd.f32 0.0, %v748
          %750 = vmatmul.f32.gmra.mxu0 %v635
          %v751 = vpop.f32.mrf.mxu0
          %v752 = vadd.f32 0.0, %v751
          %753 = vmatmul.f32.gmra.mxu0 %v638
          %v754 = vpop.f32.mrf.mxu0
          %v755 = vadd.f32 0.0, %v754
          %756 = vmatmul.f32.gmra.mxu0 %v641
          %v757 = vpop.f32.mrf.mxu0
          %v758 = vadd.f32 0.0, %v757
          %759 = vmatmul.f32.gmra.mxu0 %v644
          %v760 = vpop.f32.mrf.mxu0
          %v761 = vadd.f32 0.0, %v760
          %762 = vmatmul.f32.gmra.mxu0 %v647
          %v763 = vpop.f32.mrf.mxu0
          %v764 = vadd.f32 0.0, %v763
          %765 = vmatmul.f32.gmra.mxu0 %v650
          %v766 = vpop.f32.mrf.mxu0
          %v767 = vadd.f32 0.0, %v766
          %768 = vmatmul.f32.gmra.mxu0 %v653
          %v769 = vpop.f32.mrf.mxu0
          %v770 = vadd.f32 0.0, %v769
          %771 = vmatmul.f32.gmra.mxu0 %v656
          %v772 = vpop.f32.mrf.mxu0
          %v773 = vadd.f32 0.0, %v772
          %774 = vmatmul.f32.gmra.mxu0 %v659
          %v775 = vpop.f32.mrf.mxu0
          %v776 = vadd.f32 0.0, %v775
          %777 = vmatmul.f32.gmra.mxu0 %v662
          %v778 = vpop.f32.mrf.mxu0
          %v779 = vadd.f32 0.0, %v778
          %780 = vmatmul.f32.gmra.mxu0 %v665
          %v781 = vpop.f32.mrf.mxu0
          %v782 = vadd.f32 0.0, %v781
          %783 = vmatmul.f32.gmra.mxu0 %v668
          %v784 = vpop.f32.mrf.mxu0
          %v785 = vadd.f32 0.0, %v784
          %786 = vmatmul.f32.gmra.mxu0 %v671
          %v787 = vpop.f32.mrf.mxu0
          %v788 = vadd.f32 0.0, %v787
          %789 = vmatmul.f32.gmra.mxu0 %v674
          %v790 = vpop.f32.mrf.mxu0
          %v791 = vadd.f32 0.0, %v790
          %792 = vmatmul.f32.gmra.mxu0 %v677
          %v793 = vpop.f32.mrf.mxu0
          %v794 = vadd.f32 0.0, %v793
          %795 = vdwg.mxu0
          %v797 = vsel %vm364, %v517, 0
          %v800 = vsel %vm364, %v518, 0
          %v803 = vsel %vm364, %v519, 0
          %v806 = vsel %vm364, %v520, 0
          %v809 = vsel %vm364, %v521, 0
          %v812 = vsel %vm364, %v522, 0
          %v815 = vsel %vm364, %v523, 0
          %v818 = vsel %vm364, %v524, 0
          %v821 = vsel %vm364, %v525, 0
          %v824 = vsel %vm364, %v526, 0
          %v827 = vsel %vm364, %v527, 0
          %v830 = vsel %vm364, %v528, 0
          %v833 = vsel %vm364, %v529, 0
          %v836 = vsel %vm364, %v530, 0
          %v839 = vsel %vm364, %v531, 0
          %v842 = vsel %vm364, %v532, 0
          %v845 = vsel %vm364, %v533, 0
          %v848 = vsel %vm364, %v534, 0
          %v851 = vsel %vm364, %v535, 0
          %v854 = vsel %vm364, %v536, 0
          %v857 = vsel %vm364, %v537, 0
          %v860 = vsel %vm364, %v538, 0
          %v863 = vsel %vm364, %v539, 0
          %v866 = vsel %vm364, %v540, 0
          %v869 = vsel %vm364, %v541, 0
          %v872 = vsel %vm364, %v542, 0
          %v875 = vsel %vm364, %v543, 0
          %v878 = vsel %vm364, %v544, 0
          %v881 = vsel %vm364, %v545, 0
          %v884 = vsel %vm364, %v546, 0
          %v887 = vsel %vm364, %v547, 0
          %v890 = vsel %vm364, %v548, 0
          %v893 = vsel %vm679, %v549, 0
          %895 = vmatpush.msra.mxu0 0.0
          %896 = vmatpush.msra.mxu0 0.0
          %897 = vmatpush.msra.mxu0 0.0
          %898 = vmatpush.msra.mxu0 0.0
          %899 = vmatpush.msra.mxu0 0.0
          %900 = vmatpush.msra.mxu0 0.0
          %901 = vmatpush.msra.mxu0 0.0
          %902 = vmatpush.msra.mxu0 0.0
          %903 = vmatpush.msra.mxu0 0.0
          %904 = vmatpush.msra.mxu0 0.0
          %905 = vmatpush.msra.mxu0 0.0
          %906 = vmatpush.msra.mxu0 0.0
          %907 = vmatpush.msra.mxu0 0.0
          %908 = vmatpush.msra.mxu0 0.0
          %909 = vmatpush.msra.mxu0 0.0
          %910 = vmatpush.msra.mxu0 %v893
          %911 = vmatmul.f32.gmra.mxu0 %v797
          %v912 = vpop.f32.mrf.mxu0
          %v913 = vadd.f32 %v701, %v912
          %914 = vmatmul.f32.gmra.mxu0 %v800
          %v915 = vpop.f32.mrf.mxu0
          %v916 = vadd.f32 %v704, %v915
          %917 = vmatmul.f32.gmra.mxu0 %v803
          %v918 = vpop.f32.mrf.mxu0
          %v919 = vadd.f32 %v707, %v918
          %920 = vmatmul.f32.gmra.mxu0 %v806
          %v921 = vpop.f32.mrf.mxu0
          %v922 = vadd.f32 %v710, %v921
          %923 = vmatmul.f32.gmra.mxu0 %v809
          %v924 = vpop.f32.mrf.mxu0
          %v925 = vadd.f32 %v713, %v924
          %926 = vmatmul.f32.gmra.mxu0 %v812
          %v927 = vpop.f32.mrf.mxu0
          %v928 = vadd.f32 %v716, %v927
          %929 = vmatmul.f32.gmra.mxu0 %v815
          %v930 = vpop.f32.mrf.mxu0
          %v931 = vadd.f32 %v719, %v930
          %932 = vmatmul.f32.gmra.mxu0 %v818
          %v933 = vpop.f32.mrf.mxu0
          %v934 = vadd.f32 %v722, %v933
          %935 = vmatmul.f32.gmra.mxu0 %v821
          %v936 = vpop.f32.mrf.mxu0
          %v937 = vadd.f32 %v725, %v936
          %938 = vmatmul.f32.gmra.mxu0 %v824
          %v939 = vpop.f32.mrf.mxu0
          %v940 = vadd.f32 %v728, %v939
          %941 = vmatmul.f32.gmra.mxu0 %v827
          %v942 = vpop.f32.mrf.mxu0
          %v943 = vadd.f32 %v731, %v942
          %944 = vmatmul.f32.gmra.mxu0 %v830
          %v945 = vpop.f32.mrf.mxu0
          %v946 = vadd.f32 %v734, %v945
          %947 = vmatmul.f32.gmra.mxu0 %v833
          %v948 = vpop.f32.mrf.mxu0
          %v949 = vadd.f32 %v737, %v948
          %950 = vmatmul.f32.gmra.mxu0 %v836
          %v951 = vpop.f32.mrf.mxu0
          %v952 = vadd.f32 %v740, %v951
          %953 = vmatmul.f32.gmra.mxu0 %v839
          %v954 = vpop.f32.mrf.mxu0
          %v955 = vadd.f32 %v743, %v954
          %956 = vmatmul.f32.gmra.mxu0 %v842
          %v957 = vpop.f32.mrf.mxu0
          %v958 = vadd.f32 %v746, %v957
          %959 = vmatmul.f32.gmra.mxu0 %v845
          %v960 = vpop.f32.mrf.mxu0
          %v961 = vadd.f32 %v749, %v960
          %962 = vmatmul.f32.gmra.mxu0 %v848
          %v963 = vpop.f32.mrf.mxu0
          %v964 = vadd.f32 %v752, %v963
          %965 = vmatmul.f32.gmra.mxu0 %v851
          %v966 = vpop.f32.mrf.mxu0
          %v967 = vadd.f32 %v755, %v966
          %968 = vmatmul.f32.gmra.mxu0 %v854
          %v969 = vpop.f32.mrf.mxu0
          %v970 = vadd.f32 %v758, %v969
          %971 = vmatmul.f32.gmra.mxu0 %v857
          %v972 = vpop.f32.mrf.mxu0
          %v973 = vadd.f32 %v761, %v972
          %974 = vmatmul.f32.gmra.mxu0 %v860
          %v975 = vpop.f32.mrf.mxu0
          %v976 = vadd.f32 %v764, %v975
          %977 = vmatmul.f32.gmra.mxu0 %v863
          %v978 = vpop.f32.mrf.mxu0
          %v979 = vadd.f32 %v767, %v978
          %980 = vmatmul.f32.gmra.mxu0 %v866
          %v981 = vpop.f32.mrf.mxu0
          %v982 = vadd.f32 %v770, %v981
          %983 = vmatmul.f32.gmra.mxu0 %v869
          %v984 = vpop.f32.mrf.mxu0
          %v985 = vadd.f32 %v773, %v984
          %986 = vmatmul.f32.gmra.mxu0 %v872
          %v987 = vpop.f32.mrf.mxu0
          %v988 = vadd.f32 %v776, %v987
          %989 = vmatmul.f32.gmra.mxu0 %v875
          %v990 = vpop.f32.mrf.mxu0
          %v991 = vadd.f32 %v779, %v990
          %992 = vmatmul.f32.gmra.mxu0 %v878
          %v993 = vpop.f32.mrf.mxu0
          %v994 = vadd.f32 %v782, %v993
          %995 = vmatmul.f32.gmra.mxu0 %v881
          %v996 = vpop.f32.mrf.mxu0
          %v997 = vadd.f32 %v785, %v996
          %998 = vmatmul.f32.gmra.mxu0 %v884
          %v999 = vpop.f32.mrf.mxu0
          %v1000 = vadd.f32 %v788, %v999
          %1001 = vmatmul.f32.gmra.mxu0 %v887
          %v1002 = vpop.f32.mrf.mxu0
          %v1003 = vadd.f32 %v791, %v1002
          %1004 = vmatmul.f32.gmra.mxu0 %v890
          %v1005 = vpop.f32.mrf.mxu0
          %v1006 = vadd.f32 %v794, %v1005
          %1007 = vdwg.mxu0
          %v1008 = vld [vmem:[#allocation2 + $0x2] sm:$0xff]
          %v1009 = vld [vmem:[#allocation2 + $0xa] sm:$0xff]
          %v1010 = vld [vmem:[#allocation2 + $0x1a] sm:$0xff]
          %v1011 = vld [vmem:[#allocation2 + $0x22] sm:$0xff]
          %v1012 = vld [vmem:[#allocation2 + $0x32] sm:$0xff]
          %v1013 = vld [vmem:[#allocation2 + $0x3a] sm:$0xff]
          %v1014 = vld [vmem:[#allocation2 + $0x4a] sm:$0xff]
          %v1015 = vld [vmem:[#allocation2 + $0x52] sm:$0xff]
          %v1016 = vld [vmem:[#allocation2 + $0x62] sm:$0xff]
          %v1017 = vld [vmem:[#allocation2 + $0x6a] sm:$0xff]
          %v1018 = vld [vmem:[#allocation2 + $0x7a] sm:$0xff]
          %v1019 = vld [vmem:[#allocation2 + $0x82] sm:$0xff]
          %v1020 = vld [vmem:[#allocation2 + $0x92] sm:$0xff]
          %v1021 = vld [vmem:[#allocation2 + $0x9a] sm:$0xff]
          %v1022 = vld [vmem:[#allocation2 + $0xaa] sm:$0xff]
          %v1023 = vld [vmem:[#allocation2 + $0xb2] sm:$0xff]
          %v1024 = vld [vmem:[#allocation2 + $0xc2] sm:$0xff]
          %v1025 = vld [vmem:[#allocation2 + $0xca] sm:$0xff]
          %v1026 = vld [vmem:[#allocation2 + $0xda] sm:$0xff]
          %v1027 = vld [vmem:[#allocation2 + $0xe2] sm:$0xff]
          %v1028 = vld [vmem:[#allocation2 + $0xf2] sm:$0xff]
          %v1029 = vld [vmem:[#allocation2 + $0xfa] sm:$0xff]
          %v1030 = vld [vmem:[#allocation2 + $0x10a] sm:$0xff]
          %v1031 = vld [vmem:[#allocation2 + $0x112] sm:$0xff]
          %v1032 = vld [vmem:[#allocation2 + $0x122] sm:$0xff]
          %v1033 = vld [vmem:[#allocation2 + $0x12a] sm:$0xff]
          %v1034 = vld [vmem:[#allocation2 + $0x13a] sm:$0xff]
          %v1035 = vld [vmem:[#allocation2 + $0x142] sm:$0xff]
          %v1036 = vld [vmem:[#allocation2 + $0x152] sm:$0xff]
          %v1037 = vld [vmem:[#allocation2 + $0x15a] sm:$0xff]
          %v1038 = vld [vmem:[#allocation2 + $0x16a] sm:$0xff]
          %v1039 = vld [vmem:[#allocation2 + $0x172] sm:$0xff]
          %v1040 = vld [vmem:[%s1 + $0x8] sm:$0xf]
          %v1042 = vsel %vm364, %v1008, 0
          %v1045 = vsel %vm364, %v1009, 0
          %v1048 = vsel %vm364, %v1010, 0
          %v1051 = vsel %vm364, %v1011, 0
          %v1054 = vsel %vm364, %v1012, 0
          %v1057 = vsel %vm364, %v1013, 0
          %v1060 = vsel %vm364, %v1014, 0
          %v1063 = vsel %vm364, %v1015, 0
          %v1066 = vsel %vm364, %v1016, 0
          %v1069 = vsel %vm364, %v1017, 0
          %v1072 = vsel %vm364, %v1018, 0
          %v1075 = vsel %vm364, %v1019, 0
          %v1078 = vsel %vm364, %v1020, 0
          %v1081 = vsel %vm364, %v1021, 0
          %v1084 = vsel %vm364, %v1022, 0
          %v1087 = vsel %vm364, %v1023, 0
          %v1090 = vsel %vm364, %v1024, 0
          %v1093 = vsel %vm364, %v1025, 0
          %v1096 = vsel %vm364, %v1026, 0
          %v1099 = vsel %vm364, %v1027, 0
          %v1102 = vsel %vm364, %v1028, 0
          %v1105 = vsel %vm364, %v1029, 0
          %v1108 = vsel %vm364, %v1030, 0
          %v1111 = vsel %vm364, %v1031, 0
          %v1114 = vsel %vm364, %v1032, 0
          %v1117 = vsel %vm364, %v1033, 0
          %v1120 = vsel %vm364, %v1034, 0
          %v1123 = vsel %vm364, %v1035, 0
          %v1126 = vsel %vm364, %v1036, 0
          %v1129 = vsel %vm364, %v1037, 0
          %v1132 = vsel %vm364, %v1038, 0
          %v1135 = vsel %vm364, %v1039, 0
          %v1138 = vsel %vm679, %v1040, 0
          %1140 = vmatpush.msra.mxu0 0.0
          %1141 = vmatpush.msra.mxu0 0.0
          %1142 = vmatpush.msra.mxu0 0.0
          %1143 = vmatpush.msra.mxu0 0.0
          %1144 = vmatpush.msra.mxu0 0.0
          %1145 = vmatpush.msra.mxu0 0.0
          %1146 = vmatpush.msra.mxu0 0.0
          %1147 = vmatpush.msra.mxu0 0.0
          %1148 = vmatpush.msra.mxu0 0.0
          %1149 = vmatpush.msra.mxu0 0.0
          %1150 = vmatpush.msra.mxu0 0.0
          %1151 = vmatpush.msra.mxu0 0.0
          %1152 = vmatpush.msra.mxu0 0.0
          %1153 = vmatpush.msra.mxu0 0.0
          %1154 = vmatpush.msra.mxu0 0.0
          %1155 = vmatpush.msra.mxu0 %v1138
          %1156 = vmatmul.f32.gmra.mxu0 %v1042
          %v1157 = vpop.f32.mrf.mxu0
          %v1158 = vadd.f32 0.0, %v1157
          %1159 = vmatmul.f32.gmra.mxu0 %v1045
          %v1160 = vpop.f32.mrf.mxu0
          %v1161 = vadd.f32 0.0, %v1160
          %1162 = vmatmul.f32.gmra.mxu0 %v1048
          %v1163 = vpop.f32.mrf.mxu0
          %v1164 = vadd.f32 0.0, %v1163
          %1165 = vmatmul.f32.gmra.mxu0 %v1051
          %v1166 = vpop.f32.mrf.mxu0
          %v1167 = vadd.f32 0.0, %v1166
          %1168 = vmatmul.f32.gmra.mxu0 %v1054
          %v1169 = vpop.f32.mrf.mxu0
          %v1170 = vadd.f32 0.0, %v1169
          %1171 = vmatmul.f32.gmra.mxu0 %v1057
          %v1172 = vpop.f32.mrf.mxu0
          %v1173 = vadd.f32 0.0, %v1172
          %1174 = vmatmul.f32.gmra.mxu0 %v1060
          %v1175 = vpop.f32.mrf.mxu0
          %v1176 = vadd.f32 0.0, %v1175
          %1177 = vmatmul.f32.gmra.mxu0 %v1063
          %v1178 = vpop.f32.mrf.mxu0
          %v1179 = vadd.f32 0.0, %v1178
          %1180 = vmatmul.f32.gmra.mxu0 %v1066
          %v1181 = vpop.f32.mrf.mxu0
          %v1182 = vadd.f32 0.0, %v1181
          %1183 = vmatmul.f32.gmra.mxu0 %v1069
          %v1184 = vpop.f32.mrf.mxu0
          %v1185 = vadd.f32 0.0, %v1184
          %1186 = vmatmul.f32.gmra.mxu0 %v1072
          %v1187 = vpop.f32.mrf.mxu0
          %v1188 = vadd.f32 0.0, %v1187
          %1189 = vmatmul.f32.gmra.mxu0 %v1075
          %v1190 = vpop.f32.mrf.mxu0
          %v1191 = vadd.f32 0.0, %v1190
          %1192 = vmatmul.f32.gmra.mxu0 %v1078
          %v1193 = vpop.f32.mrf.mxu0
          %v1194 = vadd.f32 0.0, %v1193
          %1195 = vmatmul.f32.gmra.mxu0 %v1081
          %v1196 = vpop.f32.mrf.mxu0
          %v1197 = vadd.f32 0.0, %v1196
          %1198 = vmatmul.f32.gmra.mxu0 %v1084
          %v1199 = vpop.f32.mrf.mxu0
          %v1200 = vadd.f32 0.0, %v1199
          %1201 = vmatmul.f32.gmra.mxu0 %v1087
          %v1202 = vpop.f32.mrf.mxu0
          %v1203 = vadd.f32 0.0, %v1202
          %1204 = vmatmul.f32.gmra.mxu0 %v1090
          %v1205 = vpop.f32.mrf.mxu0
          %v1206 = vadd.f32 0.0, %v1205
          %1207 = vmatmul.f32.gmra.mxu0 %v1093
          %v1208 = vpop.f32.mrf.mxu0
          %v1209 = vadd.f32 0.0, %v1208
          %1210 = vmatmul.f32.gmra.mxu0 %v1096
          %v1211 = vpop.f32.mrf.mxu0
          %v1212 = vadd.f32 0.0, %v1211
          %1213 = vmatmul.f32.gmra.mxu0 %v1099
          %v1214 = vpop.f32.mrf.mxu0
          %v1215 = vadd.f32 0.0, %v1214
          %1216 = vmatmul.f32.gmra.mxu0 %v1102
          %v1217 = vpop.f32.mrf.mxu0
          %v1218 = vadd.f32 0.0, %v1217
          %1219 = vmatmul.f32.gmra.mxu0 %v1105
          %v1220 = vpop.f32.mrf.mxu0
          %v1221 = vadd.f32 0.0, %v1220
          %1222 = vmatmul.f32.gmra.mxu0 %v1108
          %v1223 = vpop.f32.mrf.mxu0
          %v1224 = vadd.f32 0.0, %v1223
          %1225 = vmatmul.f32.gmra.mxu0 %v1111
          %v1226 = vpop.f32.mrf.mxu0
          %v1227 = vadd.f32 0.0, %v1226
          %1228 = vmatmul.f32.gmra.mxu0 %v1114
          %v1229 = vpop.f32.mrf.mxu0
          %v1230 = vadd.f32 0.0, %v1229
          %1231 = vmatmul.f32.gmra.mxu0 %v1117
          %v1232 = vpop.f32.mrf.mxu0
          %v1233 = vadd.f32 0.0, %v1232
          %1234 = vmatmul.f32.gmra.mxu0 %v1120
          %v1235 = vpop.f32.mrf.mxu0
          %v1236 = vadd.f32 0.0, %v1235
          %1237 = vmatmul.f32.gmra.mxu0 %v1123
          %v1238 = vpop.f32.mrf.mxu0
          %v1239 = vadd.f32 0.0, %v1238
          %1240 = vmatmul.f32.gmra.mxu0 %v1126
          %v1241 = vpop.f32.mrf.mxu0
          %v1242 = vadd.f32 0.0, %v1241
          %1243 = vmatmul.f32.gmra.mxu0 %v1129
          %v1244 = vpop.f32.mrf.mxu0
          %v1245 = vadd.f32 0.0, %v1244
          %1246 = vmatmul.f32.gmra.mxu0 %v1132
          %v1247 = vpop.f32.mrf.mxu0
          %v1248 = vadd.f32 0.0, %v1247
          %1249 = vmatmul.f32.gmra.mxu0 %v1135
          %v1250 = vpop.f32.mrf.mxu0
          %v1251 = vadd.f32 0.0, %v1250
          %1252 = vdwg.mxu0
          %v1253 = vadd.f32 %v913, %v1158
          %v1254 = vadd.f32 %v916, %v1161
          %v1255 = vadd.f32 %v919, %v1164
          %v1256 = vadd.f32 %v922, %v1167
          %v1257 = vadd.f32 %v925, %v1170
          %v1258 = vadd.f32 %v928, %v1173
          %v1259 = vadd.f32 %v931, %v1176
          %v1260 = vadd.f32 %v934, %v1179
          %v1261 = vadd.f32 %v937, %v1182
          %v1262 = vadd.f32 %v940, %v1185
          %v1263 = vadd.f32 %v943, %v1188
          %v1264 = vadd.f32 %v946, %v1191
          %v1265 = vadd.f32 %v949, %v1194
          %v1266 = vadd.f32 %v952, %v1197
          %v1267 = vadd.f32 %v955, %v1200
          %v1268 = vadd.f32 %v958, %v1203
          %v1269 = vadd.f32 %v961, %v1206
          %v1270 = vadd.f32 %v964, %v1209
          %v1271 = vadd.f32 %v967, %v1212
          %v1272 = vadd.f32 %v970, %v1215
          %v1273 = vadd.f32 %v973, %v1218
          %v1274 = vadd.f32 %v976, %v1221
          %v1275 = vadd.f32 %v979, %v1224
          %v1276 = vadd.f32 %v982, %v1227
          %v1277 = vadd.f32 %v985, %v1230
          %v1278 = vadd.f32 %v988, %v1233
          %v1279 = vadd.f32 %v991, %v1236
          %v1280 = vadd.f32 %v994, %v1239
          %v1281 = vadd.f32 %v997, %v1242
          %v1282 = vadd.f32 %v1000, %v1245
          %v1283 = vadd.f32 %v1003, %v1248
          %v1284 = vadd.f32 %v1006, %v1251
          %v1285 = vld [vmem:[%s484] sm:$0xff]
          %v1286 = vld [vmem:[%s484 + $0x8] sm:$0xff]
          %v1287 = vld [vmem:[%s484 + $0x18] sm:$0xff]
          %v1288 = vld [vmem:[%s484 + $0x20] sm:$0xff]
          %v1289 = vld [vmem:[%s484 + $0x30] sm:$0xff]
          %v1290 = vld [vmem:[%s484 + $0x38] sm:$0xff]
          %v1291 = vld [vmem:[%s484 + $0x48] sm:$0xff]
          %v1292 = vld [vmem:[%s484 + $0x50] sm:$0xff]
          %v1293 = vld [vmem:[%s484 + $0x60] sm:$0xff]
          %v1294 = vld [vmem:[%s484 + $0x68] sm:$0xff]
          %v1295 = vld [vmem:[%s484 + $0x78] sm:$0xff]
          %v1296 = vld [vmem:[%s484 + $0x80] sm:$0xff]
          %v1297 = vld [vmem:[%s484 + $0x90] sm:$0xff]
          %v1298 = vld [vmem:[%s484 + $0x98] sm:$0xff]
          %v1299 = vld [vmem:[%s484 + $0xa8] sm:$0xff]
          %v1300 = vld [vmem:[%s484 + $0xb0] sm:$0xff]
          %v1301 = vld [vmem:[%s484 + $0xc0] sm:$0xff]
          %v1302 = vld [vmem:[%s484 + $0xc8] sm:$0xff]
          %v1303 = vld [vmem:[%s484 + $0xd8] sm:$0xff]
          %v1304 = vld [vmem:[%s484 + $0xe0] sm:$0xff]
          %v1305 = vld [vmem:[%s484 + $0xf0] sm:$0xff]
          %v1306 = vld [vmem:[%s484 + $0xf8] sm:$0xff]
          %v1307 = vld [vmem:[%s484 + $0x108] sm:$0xff]
          %v1308 = vld [vmem:[%s484 + $0x110] sm:$0xff]
          %v1309 = vld [vmem:[%s484 + $0x120] sm:$0xff]
          %v1310 = vld [vmem:[%s484 + $0x128] sm:$0xff]
          %v1311 = vld [vmem:[%s484 + $0x138] sm:$0xff]
          %v1312 = vld [vmem:[%s484 + $0x140] sm:$0xff]
          %v1313 = vld [vmem:[%s484 + $0x150] sm:$0xff]
          %v1314 = vld [vmem:[%s484 + $0x158] sm:$0xff]
          %v1315 = vld [vmem:[%s484 + $0x168] sm:$0xff]
          %v1316 = vld [vmem:[%s484 + $0x170] sm:$0xff]
          %v1317 = vld [vmem:[%s1 + $0xc] sm:$0xf]
          %v1319 = vsel %vm364, %v1285, 0
          %v1322 = vsel %vm364, %v1286, 0
          %v1325 = vsel %vm364, %v1287, 0
          %v1328 = vsel %vm364, %v1288, 0
          %v1331 = vsel %vm364, %v1289, 0
          %v1334 = vsel %vm364, %v1290, 0
          %v1337 = vsel %vm364, %v1291, 0
          %v1340 = vsel %vm364, %v1292, 0
          %v1343 = vsel %vm364, %v1293, 0
          %v1346 = vsel %vm364, %v1294, 0
          %v1349 = vsel %vm364, %v1295, 0
          %v1352 = vsel %vm364, %v1296, 0
          %v1355 = vsel %vm364, %v1297, 0
          %v1358 = vsel %vm364, %v1298, 0
          %v1361 = vsel %vm364, %v1299, 0
          %v1364 = vsel %vm364, %v1300, 0
          %v1367 = vsel %vm364, %v1301, 0
          %v1370 = vsel %vm364, %v1302, 0
          %v1373 = vsel %vm364, %v1303, 0
          %v1376 = vsel %vm364, %v1304, 0
          %v1379 = vsel %vm364, %v1305, 0
          %v1382 = vsel %vm364, %v1306, 0
          %v1385 = vsel %vm364, %v1307, 0
          %v1388 = vsel %vm364, %v1308, 0
          %v1391 = vsel %vm364, %v1309, 0
          %v1394 = vsel %vm364, %v1310, 0
          %v1397 = vsel %vm364, %v1311, 0
          %v1400 = vsel %vm364, %v1312, 0
          %v1403 = vsel %vm364, %v1313, 0
          %v1406 = vsel %vm364, %v1314, 0
          %v1409 = vsel %vm364, %v1315, 0
          %v1412 = vsel %vm364, %v1316, 0
          %v1415 = vsel %vm679, %v1317, 0
          %1417 = vmatpush.msra.mxu0 0.0
          %1418 = vmatpush.msra.mxu0 0.0
          %1419 = vmatpush.msra.mxu0 0.0
          %1420 = vmatpush.msra.mxu0 0.0
          %1421 = vmatpush.msra.mxu0 0.0
          %1422 = vmatpush.msra.mxu0 0.0
          %1423 = vmatpush.msra.mxu0 0.0
          %1424 = vmatpush.msra.mxu0 0.0
          %1425 = vmatpush.msra.mxu0 0.0
          %1426 = vmatpush.msra.mxu0 0.0
          %1427 = vmatpush.msra.mxu0 0.0
          %1428 = vmatpush.msra.mxu0 0.0
          %1429 = vmatpush.msra.mxu0 0.0
          %1430 = vmatpush.msra.mxu0 0.0
          %1431 = vmatpush.msra.mxu0 0.0
          %1432 = vmatpush.msra.mxu0 %v1415
          %1433 = vmatmul.f32.gmra.mxu0 %v1319
          %v1434 = vpop.f32.mrf.mxu0
          %v1435 = vadd.f32 0.0, %v1434
          %1436 = vmatmul.f32.gmra.mxu0 %v1322
          %v1437 = vpop.f32.mrf.mxu0
          %v1438 = vadd.f32 0.0, %v1437
          %1439 = vmatmul.f32.gmra.mxu0 %v1325
          %v1440 = vpop.f32.mrf.mxu0
          %v1441 = vadd.f32 0.0, %v1440
          %1442 = vmatmul.f32.gmra.mxu0 %v1328
          %v1443 = vpop.f32.mrf.mxu0
          %v1444 = vadd.f32 0.0, %v1443
          %1445 = vmatmul.f32.gmra.mxu0 %v1331
          %v1446 = vpop.f32.mrf.mxu0
          %v1447 = vadd.f32 0.0, %v1446
          %1448 = vmatmul.f32.gmra.mxu0 %v1334
          %v1449 = vpop.f32.mrf.mxu0
          %v1450 = vadd.f32 0.0, %v1449
          %1451 = vmatmul.f32.gmra.mxu0 %v1337
          %v1452 = vpop.f32.mrf.mxu0
          %v1453 = vadd.f32 0.0, %v1452
          %1454 = vmatmul.f32.gmra.mxu0 %v1340
          %v1455 = vpop.f32.mrf.mxu0
          %v1456 = vadd.f32 0.0, %v1455
          %1457 = vmatmul.f32.gmra.mxu0 %v1343
          %v1458 = vpop.f32.mrf.mxu0
          %v1459 = vadd.f32 0.0, %v1458
          %1460 = vmatmul.f32.gmra.mxu0 %v1346
          %v1461 = vpop.f32.mrf.mxu0
          %v1462 = vadd.f32 0.0, %v1461
          %1463 = vmatmul.f32.gmra.mxu0 %v1349
          %v1464 = vpop.f32.mrf.mxu0
          %v1465 = vadd.f32 0.0, %v1464
          %1466 = vmatmul.f32.gmra.mxu0 %v1352
          %v1467 = vpop.f32.mrf.mxu0
          %v1468 = vadd.f32 0.0, %v1467
          %1469 = vmatmul.f32.gmra.mxu0 %v1355
          %v1470 = vpop.f32.mrf.mxu0
          %v1471 = vadd.f32 0.0, %v1470
          %1472 = vmatmul.f32.gmra.mxu0 %v1358
          %v1473 = vpop.f32.mrf.mxu0
          %v1474 = vadd.f32 0.0, %v1473
          %1475 = vmatmul.f32.gmra.mxu0 %v1361
          %v1476 = vpop.f32.mrf.mxu0
          %v1477 = vadd.f32 0.0, %v1476
          %1478 = vmatmul.f32.gmra.mxu0 %v1364
          %v1479 = vpop.f32.mrf.mxu0
          %v1480 = vadd.f32 0.0, %v1479
          %1481 = vmatmul.f32.gmra.mxu0 %v1367
          %v1482 = vpop.f32.mrf.mxu0
          %v1483 = vadd.f32 0.0, %v1482
          %1484 = vmatmul.f32.gmra.mxu0 %v1370
          %v1485 = vpop.f32.mrf.mxu0
          %v1486 = vadd.f32 0.0, %v1485
          %1487 = vmatmul.f32.gmra.mxu0 %v1373
          %v1488 = vpop.f32.mrf.mxu0
          %v1489 = vadd.f32 0.0, %v1488
          %1490 = vmatmul.f32.gmra.mxu0 %v1376
          %v1491 = vpop.f32.mrf.mxu0
          %v1492 = vadd.f32 0.0, %v1491
          %1493 = vmatmul.f32.gmra.mxu0 %v1379
          %v1494 = vpop.f32.mrf.mxu0
          %v1495 = vadd.f32 0.0, %v1494
          %1496 = vmatmul.f32.gmra.mxu0 %v1382
          %v1497 = vpop.f32.mrf.mxu0
          %v1498 = vadd.f32 0.0, %v1497
          %1499 = vmatmul.f32.gmra.mxu0 %v1385
          %v1500 = vpop.f32.mrf.mxu0
          %v1501 = vadd.f32 0.0, %v1500
          %1502 = vmatmul.f32.gmra.mxu0 %v1388
          %v1503 = vpop.f32.mrf.mxu0
          %v1504 = vadd.f32 0.0, %v1503
          %1505 = vmatmul.f32.gmra.mxu0 %v1391
          %v1506 = vpop.f32.mrf.mxu0
          %v1507 = vadd.f32 0.0, %v1506
          %1508 = vmatmul.f32.gmra.mxu0 %v1394
          %v1509 = vpop.f32.mrf.mxu0
          %v1510 = vadd.f32 0.0, %v1509
          %1511 = vmatmul.f32.gmra.mxu0 %v1397
          %v1512 = vpop.f32.mrf.mxu0
          %v1513 = vadd.f32 0.0, %v1512
          %1514 = vmatmul.f32.gmra.mxu0 %v1400
          %v1515 = vpop.f32.mrf.mxu0
          %v1516 = vadd.f32 0.0, %v1515
          %1517 = vmatmul.f32.gmra.mxu0 %v1403
          %v1518 = vpop.f32.mrf.mxu0
          %v1519 = vadd.f32 0.0, %v1518
          %1520 = vmatmul.f32.gmra.mxu0 %v1406
          %v1521 = vpop.f32.mrf.mxu0
          %v1522 = vadd.f32 0.0, %v1521
          %1523 = vmatmul.f32.gmra.mxu0 %v1409
          %v1524 = vpop.f32.mrf.mxu0
          %v1525 = vadd.f32 0.0, %v1524
          %1526 = vmatmul.f32.gmra.mxu0 %v1412
          %v1527 = vpop.f32.mrf.mxu0
          %v1528 = vadd.f32 0.0, %v1527
          %1529 = vdwg.mxu0
          %v1530 = vadd.f32 %v1253, %v1435
          %v1531 = vadd.f32 %v1254, %v1438
          %v1532 = vadd.f32 %v1255, %v1441
          %v1533 = vadd.f32 %v1256, %v1444
          %v1534 = vadd.f32 %v1257, %v1447
          %v1535 = vadd.f32 %v1258, %v1450
          %v1536 = vadd.f32 %v1259, %v1453
          %v1537 = vadd.f32 %v1260, %v1456
          %v1538 = vadd.f32 %v1261, %v1459
          %v1539 = vadd.f32 %v1262, %v1462
          %v1540 = vadd.f32 %v1263, %v1465
          %v1541 = vadd.f32 %v1264, %v1468
          %v1542 = vadd.f32 %v1265, %v1471
          %v1543 = vadd.f32 %v1266, %v1474
          %v1544 = vadd.f32 %v1267, %v1477
          %v1545 = vadd.f32 %v1268, %v1480
          %v1546 = vadd.f32 %v1269, %v1483
          %v1547 = vadd.f32 %v1270, %v1486
          %v1548 = vadd.f32 %v1271, %v1489
          %v1549 = vadd.f32 %v1272, %v1492
          %v1550 = vadd.f32 %v1273, %v1495
          %v1551 = vadd.f32 %v1274, %v1498
          %v1552 = vadd.f32 %v1275, %v1501
          %v1553 = vadd.f32 %v1276, %v1504
          %v1554 = vadd.f32 %v1277, %v1507
          %v1555 = vadd.f32 %v1278, %v1510
          %v1556 = vadd.f32 %v1279, %v1513
          %v1557 = vadd.f32 %v1280, %v1516
          %v1558 = vadd.f32 %v1281, %v1519
          %v1559 = vadd.f32 %v1282, %v1522
          %v1560 = vadd.f32 %v1283, %v1525
          %v1561 = vadd.f32 %v1284, %v1528
          %v1562 = vld [vmem:[%s484 + $0x1] sm:$0xff]
          %v1563 = vld [vmem:[%s484 + $0x9] sm:$0xff]
          %v1564 = vld [vmem:[%s484 + $0x19] sm:$0xff]
          %v1565 = vld [vmem:[%s484 + $0x21] sm:$0xff]
          %v1566 = vld [vmem:[%s484 + $0x31] sm:$0xff]
          %v1567 = vld [vmem:[%s484 + $0x39] sm:$0xff]
          %v1568 = vld [vmem:[%s484 + $0x49] sm:$0xff]
          %v1569 = vld [vmem:[%s484 + $0x51] sm:$0xff]
          %v1570 = vld [vmem:[%s484 + $0x61] sm:$0xff]
          %v1571 = vld [vmem:[%s484 + $0x69] sm:$0xff]
          %v1572 = vld [vmem:[%s484 + $0x79] sm:$0xff]
          %v1573 = vld [vmem:[%s484 + $0x81] sm:$0xff]
          %v1574 = vld [vmem:[%s484 + $0x91] sm:$0xff]
          %v1575 = vld [vmem:[%s484 + $0x99] sm:$0xff]
          %v1576 = vld [vmem:[%s484 + $0xa9] sm:$0xff]
          %v1577 = vld [vmem:[%s484 + $0xb1] sm:$0xff]
          %v1578 = vld [vmem:[%s484 + $0xc1] sm:$0xff]
          %v1579 = vld [vmem:[%s484 + $0xc9] sm:$0xff]
          %v1580 = vld [vmem:[%s484 + $0xd9] sm:$0xff]
          %v1581 = vld [vmem:[%s484 + $0xe1] sm:$0xff]
          %v1582 = vld [vmem:[%s484 + $0xf1] sm:$0xff]
          %v1583 = vld [vmem:[%s484 + $0xf9] sm:$0xff]
          %v1584 = vld [vmem:[%s484 + $0x109] sm:$0xff]
          %v1585 = vld [vmem:[%s484 + $0x111] sm:$0xff]
          %v1586 = vld [vmem:[%s484 + $0x121] sm:$0xff]
          %v1587 = vld [vmem:[%s484 + $0x129] sm:$0xff]
          %v1588 = vld [vmem:[%s484 + $0x139] sm:$0xff]
          %v1589 = vld [vmem:[%s484 + $0x141] sm:$0xff]
          %v1590 = vld [vmem:[%s484 + $0x151] sm:$0xff]
          %v1591 = vld [vmem:[%s484 + $0x159] sm:$0xff]
          %v1592 = vld [vmem:[%s484 + $0x169] sm:$0xff]
          %v1593 = vld [vmem:[%s484 + $0x171] sm:$0xff]
          %v1594 = vld [vmem:[%s1 + $0x10] sm:$0xf]
          %v1596 = vsel %vm364, %v1562, 0
          %v1599 = vsel %vm364, %v1563, 0
          %v1602 = vsel %vm364, %v1564, 0
          %v1605 = vsel %vm364, %v1565, 0
          %v1608 = vsel %vm364, %v1566, 0
          %v1611 = vsel %vm364, %v1567, 0
          %v1614 = vsel %vm364, %v1568, 0
          %v1617 = vsel %vm364, %v1569, 0
          %v1620 = vsel %vm364, %v1570, 0
          %v1623 = vsel %vm364, %v1571, 0
          %v1626 = vsel %vm364, %v1572, 0
          %v1629 = vsel %vm364, %v1573, 0
          %v1632 = vsel %vm364, %v1574, 0
          %v1635 = vsel %vm364, %v1575, 0
          %v1638 = vsel %vm364, %v1576, 0
          %v1641 = vsel %vm364, %v1577, 0
          %v1644 = vsel %vm364, %v1578, 0
          %v1647 = vsel %vm364, %v1579, 0
          %v1650 = vsel %vm364, %v1580, 0
          %v1653 = vsel %vm364, %v1581, 0
          %v1656 = vsel %vm364, %v1582, 0
          %v1659 = vsel %vm364, %v1583, 0
          %v1662 = vsel %vm364, %v1584, 0
          %v1665 = vsel %vm364, %v1585, 0
          %v1668 = vsel %vm364, %v1586, 0
          %v1671 = vsel %vm364, %v1587, 0
          %v1674 = vsel %vm364, %v1588, 0
          %v1677 = vsel %vm364, %v1589, 0
          %v1680 = vsel %vm364, %v1590, 0
          %v1683 = vsel %vm364, %v1591, 0
          %v1686 = vsel %vm364, %v1592, 0
          %v1689 = vsel %vm364, %v1593, 0
          %v1692 = vsel %vm679, %v1594, 0
          %1694 = vmatpush.msra.mxu0 0.0
          %1695 = vmatpush.msra.mxu0 0.0
          %1696 = vmatpush.msra.mxu0 0.0
          %1697 = vmatpush.msra.mxu0 0.0
          %1698 = vmatpush.msra.mxu0 0.0
          %1699 = vmatpush.msra.mxu0 0.0
          %1700 = vmatpush.msra.mxu0 0.0
          %1701 = vmatpush.msra.mxu0 0.0
          %1702 = vmatpush.msra.mxu0 0.0
          %1703 = vmatpush.msra.mxu0 0.0
          %1704 = vmatpush.msra.mxu0 0.0
          %1705 = vmatpush.msra.mxu0 0.0
          %1706 = vmatpush.msra.mxu0 0.0
          %1707 = vmatpush.msra.mxu0 0.0
          %1708 = vmatpush.msra.mxu0 0.0
          %1709 = vmatpush.msra.mxu0 %v1692
          %1710 = vmatmul.f32.gmra.mxu0 %v1596
          %v1711 = vpop.f32.mrf.mxu0
          %v1712 = vadd.f32 0.0, %v1711
          %1713 = vmatmul.f32.gmra.mxu0 %v1599
          %v1714 = vpop.f32.mrf.mxu0
          %v1715 = vadd.f32 0.0, %v1714
          %1716 = vmatmul.f32.gmra.mxu0 %v1602
          %v1717 = vpop.f32.mrf.mxu0
          %v1718 = vadd.f32 0.0, %v1717
          %1719 = vmatmul.f32.gmra.mxu0 %v1605
          %v1720 = vpop.f32.mrf.mxu0
          %v1721 = vadd.f32 0.0, %v1720
          %1722 = vmatmul.f32.gmra.mxu0 %v1608
          %v1723 = vpop.f32.mrf.mxu0
          %v1724 = vadd.f32 0.0, %v1723
          %1725 = vmatmul.f32.gmra.mxu0 %v1611
          %v1726 = vpop.f32.mrf.mxu0
          %v1727 = vadd.f32 0.0, %v1726
          %1728 = vmatmul.f32.gmra.mxu0 %v1614
          %v1729 = vpop.f32.mrf.mxu0
          %v1730 = vadd.f32 0.0, %v1729
          %1731 = vmatmul.f32.gmra.mxu0 %v1617
          %v1732 = vpop.f32.mrf.mxu0
          %v1733 = vadd.f32 0.0, %v1732
          %1734 = vmatmul.f32.gmra.mxu0 %v1620
          %v1735 = vpop.f32.mrf.mxu0
          %v1736 = vadd.f32 0.0, %v1735
          %1737 = vmatmul.f32.gmra.mxu0 %v1623
          %v1738 = vpop.f32.mrf.mxu0
          %v1739 = vadd.f32 0.0, %v1738
          %1740 = vmatmul.f32.gmra.mxu0 %v1626
          %v1741 = vpop.f32.mrf.mxu0
          %v1742 = vadd.f32 0.0, %v1741
          %1743 = vmatmul.f32.gmra.mxu0 %v1629
          %v1744 = vpop.f32.mrf.mxu0
          %v1745 = vadd.f32 0.0, %v1744
          %1746 = vmatmul.f32.gmra.mxu0 %v1632
          %v1747 = vpop.f32.mrf.mxu0
          %v1748 = vadd.f32 0.0, %v1747
          %1749 = vmatmul.f32.gmra.mxu0 %v1635
          %v1750 = vpop.f32.mrf.mxu0
          %v1751 = vadd.f32 0.0, %v1750
          %1752 = vmatmul.f32.gmra.mxu0 %v1638
          %v1753 = vpop.f32.mrf.mxu0
          %v1754 = vadd.f32 0.0, %v1753
          %1755 = vmatmul.f32.gmra.mxu0 %v1641
          %v1756 = vpop.f32.mrf.mxu0
          %v1757 = vadd.f32 0.0, %v1756
          %1758 = vmatmul.f32.gmra.mxu0 %v1644
          %v1759 = vpop.f32.mrf.mxu0
          %v1760 = vadd.f32 0.0, %v1759
          %1761 = vmatmul.f32.gmra.mxu0 %v1647
          %v1762 = vpop.f32.mrf.mxu0
          %v1763 = vadd.f32 0.0, %v1762
          %1764 = vmatmul.f32.gmra.mxu0 %v1650
          %v1765 = vpop.f32.mrf.mxu0
          %v1766 = vadd.f32 0.0, %v1765
          %1767 = vmatmul.f32.gmra.mxu0 %v1653
          %v1768 = vpop.f32.mrf.mxu0
          %v1769 = vadd.f32 0.0, %v1768
          %1770 = vmatmul.f32.gmra.mxu0 %v1656
          %v1771 = vpop.f32.mrf.mxu0
          %v1772 = vadd.f32 0.0, %v1771
          %1773 = vmatmul.f32.gmra.mxu0 %v1659
          %v1774 = vpop.f32.mrf.mxu0
          %v1775 = vadd.f32 0.0, %v1774
          %1776 = vmatmul.f32.gmra.mxu0 %v1662
          %v1777 = vpop.f32.mrf.mxu0
          %v1778 = vadd.f32 0.0, %v1777
          %1779 = vmatmul.f32.gmra.mxu0 %v1665
          %v1780 = vpop.f32.mrf.mxu0
          %v1781 = vadd.f32 0.0, %v1780
          %1782 = vmatmul.f32.gmra.mxu0 %v1668
          %v1783 = vpop.f32.mrf.mxu0
          %v1784 = vadd.f32 0.0, %v1783
          %1785 = vmatmul.f32.gmra.mxu0 %v1671
          %v1786 = vpop.f32.mrf.mxu0
          %v1787 = vadd.f32 0.0, %v1786
          %1788 = vmatmul.f32.gmra.mxu0 %v1674
          %v1789 = vpop.f32.mrf.mxu0
          %v1790 = vadd.f32 0.0, %v1789
          %1791 = vmatmul.f32.gmra.mxu0 %v1677
          %v1792 = vpop.f32.mrf.mxu0
          %v1793 = vadd.f32 0.0, %v1792
          %1794 = vmatmul.f32.gmra.mxu0 %v1680
          %v1795 = vpop.f32.mrf.mxu0
          %v1796 = vadd.f32 0.0, %v1795
          %1797 = vmatmul.f32.gmra.mxu0 %v1683
          %v1798 = vpop.f32.mrf.mxu0
          %v1799 = vadd.f32 0.0, %v1798
          %1800 = vmatmul.f32.gmra.mxu0 %v1686
          %v1801 = vpop.f32.mrf.mxu0
          %v1802 = vadd.f32 0.0, %v1801
          %1803 = vmatmul.f32.gmra.mxu0 %v1689
          %v1804 = vpop.f32.mrf.mxu0
          %v1805 = vadd.f32 0.0, %v1804
          %1806 = vdwg.mxu0
          %v1807 = vadd.f32 %v1530, %v1712
          %v1808 = vadd.f32 %v1531, %v1715
          %v1809 = vadd.f32 %v1532, %v1718
          %v1810 = vadd.f32 %v1533, %v1721
          %v1811 = vadd.f32 %v1534, %v1724
          %v1812 = vadd.f32 %v1535, %v1727
          %v1813 = vadd.f32 %v1536, %v1730
          %v1814 = vadd.f32 %v1537, %v1733
          %v1815 = vadd.f32 %v1538, %v1736
          %v1816 = vadd.f32 %v1539, %v1739
          %v1817 = vadd.f32 %v1540, %v1742
          %v1818 = vadd.f32 %v1541, %v1745
          %v1819 = vadd.f32 %v1542, %v1748
          %v1820 = vadd.f32 %v1543, %v1751
          %v1821 = vadd.f32 %v1544, %v1754
          %v1822 = vadd.f32 %v1545, %v1757
          %v1823 = vadd.f32 %v1546, %v1760
          %v1824 = vadd.f32 %v1547, %v1763
          %v1825 = vadd.f32 %v1548, %v1766
          %v1826 = vadd.f32 %v1549, %v1769
          %v1827 = vadd.f32 %v1550, %v1772
          %v1828 = vadd.f32 %v1551, %v1775
          %v1829 = vadd.f32 %v1552, %v1778
          %v1830 = vadd.f32 %v1553, %v1781
          %v1831 = vadd.f32 %v1554, %v1784
          %v1832 = vadd.f32 %v1555, %v1787
          %v1833 = vadd.f32 %v1556, %v1790
          %v1834 = vadd.f32 %v1557, %v1793
          %v1835 = vadd.f32 %v1558, %v1796
          %v1836 = vadd.f32 %v1559, %v1799
          %v1837 = vadd.f32 %v1560, %v1802
          %v1838 = vadd.f32 %v1561, %v1805
          %v1839 = vld [vmem:[%s484 + $0x2] sm:$0xff]
          %v1840 = vld [vmem:[%s484 + $0xa] sm:$0xff]
          %v1841 = vld [vmem:[%s484 + $0x1a] sm:$0xff]
          %v1842 = vld [vmem:[%s484 + $0x22] sm:$0xff]
          %v1843 = vld [vmem:[%s484 + $0x32] sm:$0xff]
          %v1844 = vld [vmem:[%s484 + $0x3a] sm:$0xff]
          %v1845 = vld [vmem:[%s484 + $0x4a] sm:$0xff]
          %v1846 = vld [vmem:[%s484 + $0x52] sm:$0xff]
          %v1847 = vld [vmem:[%s484 + $0x62] sm:$0xff]
          %v1848 = vld [vmem:[%s484 + $0x6a] sm:$0xff]
          %v1849 = vld [vmem:[%s484 + $0x7a] sm:$0xff]
          %v1850 = vld [vmem:[%s484 + $0x82] sm:$0xff]
          %v1851 = vld [vmem:[%s484 + $0x92] sm:$0xff]
          %v1852 = vld [vmem:[%s484 + $0x9a] sm:$0xff]
          %v1853 = vld [vmem:[%s484 + $0xaa] sm:$0xff]
          %v1854 = vld [vmem:[%s484 + $0xb2] sm:$0xff]
          %v1855 = vld [vmem:[%s484 + $0xc2] sm:$0xff]
          %v1856 = vld [vmem:[%s484 + $0xca] sm:$0xff]
          %v1857 = vld [vmem:[%s484 + $0xda] sm:$0xff]
          %v1858 = vld [vmem:[%s484 + $0xe2] sm:$0xff]
          %v1859 = vld [vmem:[%s484 + $0xf2] sm:$0xff]
          %v1860 = vld [vmem:[%s484 + $0xfa] sm:$0xff]
          %v1861 = vld [vmem:[%s484 + $0x10a] sm:$0xff]
          %v1862 = vld [vmem:[%s484 + $0x112] sm:$0xff]
          %v1863 = vld [vmem:[%s484 + $0x122] sm:$0xff]
          %v1864 = vld [vmem:[%s484 + $0x12a] sm:$0xff]
          %v1865 = vld [vmem:[%s484 + $0x13a] sm:$0xff]
          %v1866 = vld [vmem:[%s484 + $0x142] sm:$0xff]
          %v1867 = vld [vmem:[%s484 + $0x152] sm:$0xff]
          %v1868 = vld [vmem:[%s484 + $0x15a] sm:$0xff]
          %v1869 = vld [vmem:[%s484 + $0x16a] sm:$0xff]
          %v1870 = vld [vmem:[%s484 + $0x172] sm:$0xff]
          %v1871 = vld [vmem:[%s1 + $0x14] sm:$0xf]
          %v1873 = vsel %vm364, %v1839, 0
          %v1876 = vsel %vm364, %v1840, 0
          %v1879 = vsel %vm364, %v1841, 0
          %v1882 = vsel %vm364, %v1842, 0
          %v1885 = vsel %vm364, %v1843, 0
          %v1888 = vsel %vm364, %v1844, 0
          %v1891 = vsel %vm364, %v1845, 0
          %v1894 = vsel %vm364, %v1846, 0
          %v1897 = vsel %vm364, %v1847, 0
          %v1900 = vsel %vm364, %v1848, 0
          %v1903 = vsel %vm364, %v1849, 0
          %v1906 = vsel %vm364, %v1850, 0
          %v1909 = vsel %vm364, %v1851, 0
          %v1912 = vsel %vm364, %v1852, 0
          %v1915 = vsel %vm364, %v1853, 0
          %v1918 = vsel %vm364, %v1854, 0
          %v1921 = vsel %vm364, %v1855, 0
          %v1924 = vsel %vm364, %v1856, 0
          %v1927 = vsel %vm364, %v1857, 0
          %v1930 = vsel %vm364, %v1858, 0
          %v1933 = vsel %vm364, %v1859, 0
          %v1936 = vsel %vm364, %v1860, 0
          %v1939 = vsel %vm364, %v1861, 0
          %v1942 = vsel %vm364, %v1862, 0
          %v1945 = vsel %vm364, %v1863, 0
          %v1948 = vsel %vm364, %v1864, 0
          %v1951 = vsel %vm364, %v1865, 0
          %v1954 = vsel %vm364, %v1866, 0
          %v1957 = vsel %vm364, %v1867, 0
          %v1960 = vsel %vm364, %v1868, 0
          %v1963 = vsel %vm364, %v1869, 0
          %v1966 = vsel %vm364, %v1870, 0
          %v1969 = vsel %vm679, %v1871, 0
          %1971 = vmatpush.msra.mxu0 0.0
          %1972 = vmatpush.msra.mxu0 0.0
          %1973 = vmatpush.msra.mxu0 0.0
          %1974 = vmatpush.msra.mxu0 0.0
          %1975 = vmatpush.msra.mxu0 0.0
          %1976 = vmatpush.msra.mxu0 0.0
          %1977 = vmatpush.msra.mxu0 0.0
          %1978 = vmatpush.msra.mxu0 0.0
          %1979 = vmatpush.msra.mxu0 0.0
          %1980 = vmatpush.msra.mxu0 0.0
          %1981 = vmatpush.msra.mxu0 0.0
          %1982 = vmatpush.msra.mxu0 0.0
          %1983 = vmatpush.msra.mxu0 0.0
          %1984 = vmatpush.msra.mxu0 0.0
          %1985 = vmatpush.msra.mxu0 0.0
          %1986 = vmatpush.msra.mxu0 %v1969
          %1987 = vmatmul.f32.gmra.mxu0 %v1873
          %v1988 = vpop.f32.mrf.mxu0
          %v1989 = vadd.f32 0.0, %v1988
          %1990 = vmatmul.f32.gmra.mxu0 %v1876
          %v1991 = vpop.f32.mrf.mxu0
          %v1992 = vadd.f32 0.0, %v1991
          %1993 = vmatmul.f32.gmra.mxu0 %v1879
          %v1994 = vpop.f32.mrf.mxu0
          %v1995 = vadd.f32 0.0, %v1994
          %1996 = vmatmul.f32.gmra.mxu0 %v1882
          %v1997 = vpop.f32.mrf.mxu0
          %v1998 = vadd.f32 0.0, %v1997
          %1999 = vmatmul.f32.gmra.mxu0 %v1885
          %v2000 = vpop.f32.mrf.mxu0
          %v2001 = vadd.f32 0.0, %v2000
          %2002 = vmatmul.f32.gmra.mxu0 %v1888
          %v2003 = vpop.f32.mrf.mxu0
          %v2004 = vadd.f32 0.0, %v2003
          %2005 = vmatmul.f32.gmra.mxu0 %v1891
          %v2006 = vpop.f32.mrf.mxu0
          %v2007 = vadd.f32 0.0, %v2006
          %2008 = vmatmul.f32.gmra.mxu0 %v1894
          %v2009 = vpop.f32.mrf.mxu0
          %v2010 = vadd.f32 0.0, %v2009
          %2011 = vmatmul.f32.gmra.mxu0 %v1897
          %v2012 = vpop.f32.mrf.mxu0
          %v2013 = vadd.f32 0.0, %v2012
          %2014 = vmatmul.f32.gmra.mxu0 %v1900
          %v2015 = vpop.f32.mrf.mxu0
          %v2016 = vadd.f32 0.0, %v2015
          %2017 = vmatmul.f32.gmra.mxu0 %v1903
          %v2018 = vpop.f32.mrf.mxu0
          %v2019 = vadd.f32 0.0, %v2018
          %2020 = vmatmul.f32.gmra.mxu0 %v1906
          %v2021 = vpop.f32.mrf.mxu0
          %v2022 = vadd.f32 0.0, %v2021
          %2023 = vmatmul.f32.gmra.mxu0 %v1909
          %v2024 = vpop.f32.mrf.mxu0
          %v2025 = vadd.f32 0.0, %v2024
          %2026 = vmatmul.f32.gmra.mxu0 %v1912
          %v2027 = vpop.f32.mrf.mxu0
          %v2028 = vadd.f32 0.0, %v2027
          %2029 = vmatmul.f32.gmra.mxu0 %v1915
          %v2030 = vpop.f32.mrf.mxu0
          %v2031 = vadd.f32 0.0, %v2030
          %2032 = vmatmul.f32.gmra.mxu0 %v1918
          %v2033 = vpop.f32.mrf.mxu0
          %v2034 = vadd.f32 0.0, %v2033
          %2035 = vmatmul.f32.gmra.mxu0 %v1921
          %v2036 = vpop.f32.mrf.mxu0
          %v2037 = vadd.f32 0.0, %v2036
          %2038 = vmatmul.f32.gmra.mxu0 %v1924
          %v2039 = vpop.f32.mrf.mxu0
          %v2040 = vadd.f32 0.0, %v2039
          %2041 = vmatmul.f32.gmra.mxu0 %v1927
          %v2042 = vpop.f32.mrf.mxu0
          %v2043 = vadd.f32 0.0, %v2042
          %2044 = vmatmul.f32.gmra.mxu0 %v1930
          %v2045 = vpop.f32.mrf.mxu0
          %v2046 = vadd.f32 0.0, %v2045
          %2047 = vmatmul.f32.gmra.mxu0 %v1933
          %v2048 = vpop.f32.mrf.mxu0
          %v2049 = vadd.f32 0.0, %v2048
          %2050 = vmatmul.f32.gmra.mxu0 %v1936
          %v2051 = vpop.f32.mrf.mxu0
          %v2052 = vadd.f32 0.0, %v2051
          %2053 = vmatmul.f32.gmra.mxu0 %v1939
          %v2054 = vpop.f32.mrf.mxu0
          %v2055 = vadd.f32 0.0, %v2054
          %2056 = vmatmul.f32.gmra.mxu0 %v1942
          %v2057 = vpop.f32.mrf.mxu0
          %v2058 = vadd.f32 0.0, %v2057
          %2059 = vmatmul.f32.gmra.mxu0 %v1945
          %v2060 = vpop.f32.mrf.mxu0
          %v2061 = vadd.f32 0.0, %v2060
          %2062 = vmatmul.f32.gmra.mxu0 %v1948
          %v2063 = vpop.f32.mrf.mxu0
          %v2064 = vadd.f32 0.0, %v2063
          %2065 = vmatmul.f32.gmra.mxu0 %v1951
          %v2066 = vpop.f32.mrf.mxu0
          %v2067 = vadd.f32 0.0, %v2066
          %2068 = vmatmul.f32.gmra.mxu0 %v1954
          %v2069 = vpop.f32.mrf.mxu0
          %v2070 = vadd.f32 0.0, %v2069
          %2071 = vmatmul.f32.gmra.mxu0 %v1957
          %v2072 = vpop.f32.mrf.mxu0
          %v2073 = vadd.f32 0.0, %v2072
          %2074 = vmatmul.f32.gmra.mxu0 %v1960
          %v2075 = vpop.f32.mrf.mxu0
          %v2076 = vadd.f32 0.0, %v2075
          %2077 = vmatmul.f32.gmra.mxu0 %v1963
          %v2078 = vpop.f32.mrf.mxu0
          %v2079 = vadd.f32 0.0, %v2078
          %2080 = vmatmul.f32.gmra.mxu0 %v1966
          %v2081 = vpop.f32.mrf.mxu0
          %v2082 = vadd.f32 0.0, %v2081
          %2083 = vdwg.mxu0
          %v2084 = vadd.f32 %v1807, %v1989
          %v2085 = vadd.f32 %v1808, %v1992
          %v2086 = vadd.f32 %v1809, %v1995
          %v2087 = vadd.f32 %v1810, %v1998
          %v2088 = vadd.f32 %v1811, %v2001
          %v2089 = vadd.f32 %v1812, %v2004
          %v2090 = vadd.f32 %v1813, %v2007
          %v2091 = vadd.f32 %v1814, %v2010
          %v2092 = vadd.f32 %v1815, %v2013
          %v2093 = vadd.f32 %v1816, %v2016
          %v2094 = vadd.f32 %v1817, %v2019
          %v2095 = vadd.f32 %v1818, %v2022
          %v2096 = vadd.f32 %v1819, %v2025
          %v2097 = vadd.f32 %v1820, %v2028
          %v2098 = vadd.f32 %v1821, %v2031
          %v2099 = vadd.f32 %v1822, %v2034
          %v2100 = vadd.f32 %v1823, %v2037
          %v2101 = vadd.f32 %v1824, %v2040
          %v2102 = vadd.f32 %v1825, %v2043
          %v2103 = vadd.f32 %v1826, %v2046
          %v2104 = vadd.f32 %v1827, %v2049
          %v2105 = vadd.f32 %v1828, %v2052
          %v2106 = vadd.f32 %v1829, %v2055
          %v2107 = vadd.f32 %v1830, %v2058
          %v2108 = vadd.f32 %v1831, %v2061
          %v2109 = vadd.f32 %v1832, %v2064
          %v2110 = vadd.f32 %v1833, %v2067
          %v2111 = vadd.f32 %v1834, %v2070
          %v2112 = vadd.f32 %v1835, %v2073
          %v2113 = vadd.f32 %v1836, %v2076
          %v2114 = vadd.f32 %v1837, %v2079
          %v2115 = vadd.f32 %v1838, %v2082
          %s2116 = scalar_lea.vmem [#allocation2], 48
          %v2117 = vld [vmem:[%s2116] sm:$0xff]
          %v2118 = vld [vmem:[%s2116 + $0x8] sm:$0xff]
          %v2119 = vld [vmem:[%s2116 + $0x18] sm:$0xff]
          %v2120 = vld [vmem:[%s2116 + $0x20] sm:$0xff]
          %v2121 = vld [vmem:[%s2116 + $0x30] sm:$0xff]
          %v2122 = vld [vmem:[%s2116 + $0x38] sm:$0xff]
          %v2123 = vld [vmem:[%s2116 + $0x48] sm:$0xff]
          %v2124 = vld [vmem:[%s2116 + $0x50] sm:$0xff]
          %v2125 = vld [vmem:[%s2116 + $0x60] sm:$0xff]
          %v2126 = vld [vmem:[%s2116 + $0x68] sm:$0xff]
          %v2127 = vld [vmem:[%s2116 + $0x78] sm:$0xff]
          %v2128 = vld [vmem:[%s2116 + $0x80] sm:$0xff]
          %v2129 = vld [vmem:[%s2116 + $0x90] sm:$0xff]
          %v2130 = vld [vmem:[%s2116 + $0x98] sm:$0xff]
          %v2131 = vld [vmem:[%s2116 + $0xa8] sm:$0xff]
          %v2132 = vld [vmem:[%s2116 + $0xb0] sm:$0xff]
          %v2133 = vld [vmem:[%s2116 + $0xc0] sm:$0xff]
          %v2134 = vld [vmem:[%s2116 + $0xc8] sm:$0xff]
          %v2135 = vld [vmem:[%s2116 + $0xd8] sm:$0xff]
          %v2136 = vld [vmem:[%s2116 + $0xe0] sm:$0xff]
          %v2137 = vld [vmem:[%s2116 + $0xf0] sm:$0xff]
          %v2138 = vld [vmem:[%s2116 + $0xf8] sm:$0xff]
          %v2139 = vld [vmem:[%s2116 + $0x108] sm:$0xff]
          %v2140 = vld [vmem:[%s2116 + $0x110] sm:$0xff]
          %v2141 = vld [vmem:[%s2116 + $0x120] sm:$0xff]
          %v2142 = vld [vmem:[%s2116 + $0x128] sm:$0xff]
          %v2143 = vld [vmem:[%s2116 + $0x138] sm:$0xff]
          %v2144 = vld [vmem:[%s2116 + $0x140] sm:$0xff]
          %v2145 = vld [vmem:[%s2116 + $0x150] sm:$0xff]
          %v2146 = vld [vmem:[%s2116 + $0x158] sm:$0xff]
          %v2147 = vld [vmem:[%s2116 + $0x168] sm:$0xff]
          %v2148 = vld [vmem:[%s2116 + $0x170] sm:$0xff]
          %v2149 = vld [vmem:[%s1 + $0x18] sm:$0xf]
          %v2151 = vsel %vm364, %v2117, 0
          %v2154 = vsel %vm364, %v2118, 0
          %v2157 = vsel %vm364, %v2119, 0
          %v2160 = vsel %vm364, %v2120, 0
          %v2163 = vsel %vm364, %v2121, 0
          %v2166 = vsel %vm364, %v2122, 0
          %v2169 = vsel %vm364, %v2123, 0
          %v2172 = vsel %vm364, %v2124, 0
          %v2175 = vsel %vm364, %v2125, 0
          %v2178 = vsel %vm364, %v2126, 0
          %v2181 = vsel %vm364, %v2127, 0
          %v2184 = vsel %vm364, %v2128, 0
          %v2187 = vsel %vm364, %v2129, 0
          %v2190 = vsel %vm364, %v2130, 0
          %v2193 = vsel %vm364, %v2131, 0
          %v2196 = vsel %vm364, %v2132, 0
          %v2199 = vsel %vm364, %v2133, 0
          %v2202 = vsel %vm364, %v2134, 0
          %v2205 = vsel %vm364, %v2135, 0
          %v2208 = vsel %vm364, %v2136, 0
          %v2211 = vsel %vm364, %v2137, 0
          %v2214 = vsel %vm364, %v2138, 0
          %v2217 = vsel %vm364, %v2139, 0
          %v2220 = vsel %vm364, %v2140, 0
          %v2223 = vsel %vm364, %v2141, 0
          %v2226 = vsel %vm364, %v2142, 0
          %v2229 = vsel %vm364, %v2143, 0
          %v2232 = vsel %vm364, %v2144, 0
          %v2235 = vsel %vm364, %v2145, 0
          %v2238 = vsel %vm364, %v2146, 0
          %v2241 = vsel %vm364, %v2147, 0
          %v2244 = vsel %vm364, %v2148, 0
          %v2247 = vsel %vm679, %v2149, 0
          %2249 = vmatpush.msra.mxu0 0.0
          %2250 = vmatpush.msra.mxu0 0.0
          %2251 = vmatpush.msra.mxu0 0.0
          %2252 = vmatpush.msra.mxu0 0.0
          %2253 = vmatpush.msra.mxu0 0.0
          %2254 = vmatpush.msra.mxu0 0.0
          %2255 = vmatpush.msra.mxu0 0.0
          %2256 = vmatpush.msra.mxu0 0.0
          %2257 = vmatpush.msra.mxu0 0.0
          %2258 = vmatpush.msra.mxu0 0.0
          %2259 = vmatpush.msra.mxu0 0.0
          %2260 = vmatpush.msra.mxu0 0.0
          %2261 = vmatpush.msra.mxu0 0.0
          %2262 = vmatpush.msra.mxu0 0.0
          %2263 = vmatpush.msra.mxu0 0.0
          %2264 = vmatpush.msra.mxu0 %v2247
          %2265 = vmatmul.f32.gmra.mxu0 %v2151
          %v2266 = vpop.f32.mrf.mxu0
          %v2267 = vadd.f32 0.0, %v2266
          %2268 = vmatmul.f32.gmra.mxu0 %v2154
          %v2269 = vpop.f32.mrf.mxu0
          %v2270 = vadd.f32 0.0, %v2269
          %2271 = vmatmul.f32.gmra.mxu0 %v2157
          %v2272 = vpop.f32.mrf.mxu0
          %v2273 = vadd.f32 0.0, %v2272
          %2274 = vmatmul.f32.gmra.mxu0 %v2160
          %v2275 = vpop.f32.mrf.mxu0
          %v2276 = vadd.f32 0.0, %v2275
          %2277 = vmatmul.f32.gmra.mxu0 %v2163
          %v2278 = vpop.f32.mrf.mxu0
          %v2279 = vadd.f32 0.0, %v2278
          %2280 = vmatmul.f32.gmra.mxu0 %v2166
          %v2281 = vpop.f32.mrf.mxu0
          %v2282 = vadd.f32 0.0, %v2281
          %2283 = vmatmul.f32.gmra.mxu0 %v2169
          %v2284 = vpop.f32.mrf.mxu0
          %v2285 = vadd.f32 0.0, %v2284
          %2286 = vmatmul.f32.gmra.mxu0 %v2172
          %v2287 = vpop.f32.mrf.mxu0
          %v2288 = vadd.f32 0.0, %v2287
          %2289 = vmatmul.f32.gmra.mxu0 %v2175
          %v2290 = vpop.f32.mrf.mxu0
          %v2291 = vadd.f32 0.0, %v2290
          %2292 = vmatmul.f32.gmra.mxu0 %v2178
          %v2293 = vpop.f32.mrf.mxu0
          %v2294 = vadd.f32 0.0, %v2293
          %2295 = vmatmul.f32.gmra.mxu0 %v2181
          %v2296 = vpop.f32.mrf.mxu0
          %v2297 = vadd.f32 0.0, %v2296
          %2298 = vmatmul.f32.gmra.mxu0 %v2184
          %v2299 = vpop.f32.mrf.mxu0
          %v2300 = vadd.f32 0.0, %v2299
          %2301 = vmatmul.f32.gmra.mxu0 %v2187
          %v2302 = vpop.f32.mrf.mxu0
          %v2303 = vadd.f32 0.0, %v2302
          %2304 = vmatmul.f32.gmra.mxu0 %v2190
          %v2305 = vpop.f32.mrf.mxu0
          %v2306 = vadd.f32 0.0, %v2305
          %2307 = vmatmul.f32.gmra.mxu0 %v2193
          %v2308 = vpop.f32.mrf.mxu0
          %v2309 = vadd.f32 0.0, %v2308
          %2310 = vmatmul.f32.gmra.mxu0 %v2196
          %v2311 = vpop.f32.mrf.mxu0
          %v2312 = vadd.f32 0.0, %v2311
          %2313 = vmatmul.f32.gmra.mxu0 %v2199
          %v2314 = vpop.f32.mrf.mxu0
          %v2315 = vadd.f32 0.0, %v2314
          %2316 = vmatmul.f32.gmra.mxu0 %v2202
          %v2317 = vpop.f32.mrf.mxu0
          %v2318 = vadd.f32 0.0, %v2317
          %2319 = vmatmul.f32.gmra.mxu0 %v2205
          %v2320 = vpop.f32.mrf.mxu0
          %v2321 = vadd.f32 0.0, %v2320
          %2322 = vmatmul.f32.gmra.mxu0 %v2208
          %v2323 = vpop.f32.mrf.mxu0
          %v2324 = vadd.f32 0.0, %v2323
          %2325 = vmatmul.f32.gmra.mxu0 %v2211
          %v2326 = vpop.f32.mrf.mxu0
          %v2327 = vadd.f32 0.0, %v2326
          %2328 = vmatmul.f32.gmra.mxu0 %v2214
          %v2329 = vpop.f32.mrf.mxu0
          %v2330 = vadd.f32 0.0, %v2329
          %2331 = vmatmul.f32.gmra.mxu0 %v2217
          %v2332 = vpop.f32.mrf.mxu0
          %v2333 = vadd.f32 0.0, %v2332
          %2334 = vmatmul.f32.gmra.mxu0 %v2220
          %v2335 = vpop.f32.mrf.mxu0
          %v2336 = vadd.f32 0.0, %v2335
          %2337 = vmatmul.f32.gmra.mxu0 %v2223
          %v2338 = vpop.f32.mrf.mxu0
          %v2339 = vadd.f32 0.0, %v2338
          %2340 = vmatmul.f32.gmra.mxu0 %v2226
          %v2341 = vpop.f32.mrf.mxu0
          %v2342 = vadd.f32 0.0, %v2341
          %2343 = vmatmul.f32.gmra.mxu0 %v2229
          %v2344 = vpop.f32.mrf.mxu0
          %v2345 = vadd.f32 0.0, %v2344
          %2346 = vmatmul.f32.gmra.mxu0 %v2232
          %v2347 = vpop.f32.mrf.mxu0
          %v2348 = vadd.f32 0.0, %v2347
          %2349 = vmatmul.f32.gmra.mxu0 %v2235
          %v2350 = vpop.f32.mrf.mxu0
          %v2351 = vadd.f32 0.0, %v2350
          %2352 = vmatmul.f32.gmra.mxu0 %v2238
          %v2353 = vpop.f32.mrf.mxu0
          %v2354 = vadd.f32 0.0, %v2353
          %2355 = vmatmul.f32.gmra.mxu0 %v2241
          %v2356 = vpop.f32.mrf.mxu0
          %v2357 = vadd.f32 0.0, %v2356
          %2358 = vmatmul.f32.gmra.mxu0 %v2244
          %v2359 = vpop.f32.mrf.mxu0
          %v2360 = vadd.f32 0.0, %v2359
          %2361 = vdwg.mxu0
          %v2362 = vadd.f32 %v2084, %v2267
          %v2363 = vadd.f32 %v2085, %v2270
          %v2364 = vadd.f32 %v2086, %v2273
          %v2365 = vadd.f32 %v2087, %v2276
          %v2366 = vadd.f32 %v2088, %v2279
          %v2367 = vadd.f32 %v2089, %v2282
          %v2368 = vadd.f32 %v2090, %v2285
          %v2369 = vadd.f32 %v2091, %v2288
          %v2370 = vadd.f32 %v2092, %v2291
          %v2371 = vadd.f32 %v2093, %v2294
          %v2372 = vadd.f32 %v2094, %v2297
          %v2373 = vadd.f32 %v2095, %v2300
          %v2374 = vadd.f32 %v2096, %v2303
          %v2375 = vadd.f32 %v2097, %v2306
          %v2376 = vadd.f32 %v2098, %v2309
          %v2377 = vadd.f32 %v2099, %v2312
          %v2378 = vadd.f32 %v2100, %v2315
          %v2379 = vadd.f32 %v2101, %v2318
          %v2380 = vadd.f32 %v2102, %v2321
          %v2381 = vadd.f32 %v2103, %v2324
          %v2382 = vadd.f32 %v2104, %v2327
          %v2383 = vadd.f32 %v2105, %v2330
          %v2384 = vadd.f32 %v2106, %v2333
          %v2385 = vadd.f32 %v2107, %v2336
          %v2386 = vadd.f32 %v2108, %v2339
          %v2387 = vadd.f32 %v2109, %v2342
          %v2388 = vadd.f32 %v2110, %v2345
          %v2389 = vadd.f32 %v2111, %v2348
          %v2390 = vadd.f32 %v2112, %v2351
          %v2391 = vadd.f32 %v2113, %v2354
          %v2392 = vadd.f32 %v2114, %v2357
          %v2393 = vadd.f32 %v2115, %v2360
          %v2394 = vld [vmem:[%s2116 + $0x1] sm:$0xff]
          %v2395 = vld [vmem:[%s2116 + $0x9] sm:$0xff]
          %v2396 = vld [vmem:[%s2116 + $0x19] sm:$0xff]
          %v2397 = vld [vmem:[%s2116 + $0x21] sm:$0xff]
          %v2398 = vld [vmem:[%s2116 + $0x31] sm:$0xff]
          %v2399 = vld [vmem:[%s2116 + $0x39] sm:$0xff]
          %v2400 = vld [vmem:[%s2116 + $0x49] sm:$0xff]
          %v2401 = vld [vmem:[%s2116 + $0x51] sm:$0xff]
          %v2402 = vld [vmem:[%s2116 + $0x61] sm:$0xff]
          %v2403 = vld [vmem:[%s2116 + $0x69] sm:$0xff]
          %v2404 = vld [vmem:[%s2116 + $0x79] sm:$0xff]
          %v2405 = vld [vmem:[%s2116 + $0x81] sm:$0xff]
          %v2406 = vld [vmem:[%s2116 + $0x91] sm:$0xff]
          %v2407 = vld [vmem:[%s2116 + $0x99] sm:$0xff]
          %v2408 = vld [vmem:[%s2116 + $0xa9] sm:$0xff]
          %v2409 = vld [vmem:[%s2116 + $0xb1] sm:$0xff]
          %v2410 = vld [vmem:[%s2116 + $0xc1] sm:$0xff]
          %v2411 = vld [vmem:[%s2116 + $0xc9] sm:$0xff]
          %v2412 = vld [vmem:[%s2116 + $0xd9] sm:$0xff]
          %v2413 = vld [vmem:[%s2116 + $0xe1] sm:$0xff]
          %v2414 = vld [vmem:[%s2116 + $0xf1] sm:$0xff]
          %v2415 = vld [vmem:[%s2116 + $0xf9] sm:$0xff]
          %v2416 = vld [vmem:[%s2116 + $0x109] sm:$0xff]
          %v2417 = vld [vmem:[%s2116 + $0x111] sm:$0xff]
          %v2418 = vld [vmem:[%s2116 + $0x121] sm:$0xff]
          %v2419 = vld [vmem:[%s2116 + $0x129] sm:$0xff]
          %v2420 = vld [vmem:[%s2116 + $0x139] sm:$0xff]
          %v2421 = vld [vmem:[%s2116 + $0x141] sm:$0xff]
          %v2422 = vld [vmem:[%s2116 + $0x151] sm:$0xff]
          %v2423 = vld [vmem:[%s2116 + $0x159] sm:$0xff]
          %v2424 = vld [vmem:[%s2116 + $0x169] sm:$0xff]
          %v2425 = vld [vmem:[%s2116 + $0x171] sm:$0xff]
          %v2426 = vld [vmem:[%s1 + $0x1c] sm:$0xf]
          %v2428 = vsel %vm364, %v2394, 0
          %v2431 = vsel %vm364, %v2395, 0
          %v2434 = vsel %vm364, %v2396, 0
          %v2437 = vsel %vm364, %v2397, 0
          %v2440 = vsel %vm364, %v2398, 0
          %v2443 = vsel %vm364, %v2399, 0
          %v2446 = vsel %vm364, %v2400, 0
          %v2449 = vsel %vm364, %v2401, 0
          %v2452 = vsel %vm364, %v2402, 0
          %v2455 = vsel %vm364, %v2403, 0
          %v2458 = vsel %vm364, %v2404, 0
          %v2461 = vsel %vm364, %v2405, 0
          %v2464 = vsel %vm364, %v2406, 0
          %v2467 = vsel %vm364, %v2407, 0
          %v2470 = vsel %vm364, %v2408, 0
          %v2473 = vsel %vm364, %v2409, 0
          %v2476 = vsel %vm364, %v2410, 0
          %v2479 = vsel %vm364, %v2411, 0
          %v2482 = vsel %vm364, %v2412, 0
          %v2485 = vsel %vm364, %v2413, 0
          %v2488 = vsel %vm364, %v2414, 0
          %v2491 = vsel %vm364, %v2415, 0
          %v2494 = vsel %vm364, %v2416, 0
          %v2497 = vsel %vm364, %v2417, 0
          %v2500 = vsel %vm364, %v2418, 0
          %v2503 = vsel %vm364, %v2419, 0
          %v2506 = vsel %vm364, %v2420, 0
          %v2509 = vsel %vm364, %v2421, 0
          %v2512 = vsel %vm364, %v2422, 0
          %v2515 = vsel %vm364, %v2423, 0
          %v2518 = vsel %vm364, %v2424, 0
          %v2521 = vsel %vm364, %v2425, 0
          %v2524 = vsel %vm679, %v2426, 0
          %2526 = vmatpush.msra.mxu0 0.0
          %2527 = vmatpush.msra.mxu0 0.0
          %2528 = vmatpush.msra.mxu0 0.0
          %2529 = vmatpush.msra.mxu0 0.0
          %2530 = vmatpush.msra.mxu0 0.0
          %2531 = vmatpush.msra.mxu0 0.0
          %2532 = vmatpush.msra.mxu0 0.0
          %2533 = vmatpush.msra.mxu0 0.0
          %2534 = vmatpush.msra.mxu0 0.0
          %2535 = vmatpush.msra.mxu0 0.0
          %2536 = vmatpush.msra.mxu0 0.0
          %2537 = vmatpush.msra.mxu0 0.0
          %2538 = vmatpush.msra.mxu0 0.0
          %2539 = vmatpush.msra.mxu0 0.0
          %2540 = vmatpush.msra.mxu0 0.0
          %2541 = vmatpush.msra.mxu0 %v2524
          %2542 = vmatmul.f32.gmra.mxu0 %v2428
          %v2543 = vpop.f32.mrf.mxu0
          %v2544 = vadd.f32 0.0, %v2543
          %2545 = vmatmul.f32.gmra.mxu0 %v2431
          %v2546 = vpop.f32.mrf.mxu0
          %v2547 = vadd.f32 0.0, %v2546
          %2548 = vmatmul.f32.gmra.mxu0 %v2434
          %v2549 = vpop.f32.mrf.mxu0
          %v2550 = vadd.f32 0.0, %v2549
          %2551 = vmatmul.f32.gmra.mxu0 %v2437
          %v2552 = vpop.f32.mrf.mxu0
          %v2553 = vadd.f32 0.0, %v2552
          %2554 = vmatmul.f32.gmra.mxu0 %v2440
          %v2555 = vpop.f32.mrf.mxu0
          %v2556 = vadd.f32 0.0, %v2555
          %2557 = vmatmul.f32.gmra.mxu0 %v2443
          %v2558 = vpop.f32.mrf.mxu0
          %v2559 = vadd.f32 0.0, %v2558
          %2560 = vmatmul.f32.gmra.mxu0 %v2446
          %v2561 = vpop.f32.mrf.mxu0
          %v2562 = vadd.f32 0.0, %v2561
          %2563 = vmatmul.f32.gmra.mxu0 %v2449
          %v2564 = vpop.f32.mrf.mxu0
          %v2565 = vadd.f32 0.0, %v2564
          %2566 = vmatmul.f32.gmra.mxu0 %v2452
          %v2567 = vpop.f32.mrf.mxu0
          %v2568 = vadd.f32 0.0, %v2567
          %2569 = vmatmul.f32.gmra.mxu0 %v2455
          %v2570 = vpop.f32.mrf.mxu0
          %v2571 = vadd.f32 0.0, %v2570
          %2572 = vmatmul.f32.gmra.mxu0 %v2458
          %v2573 = vpop.f32.mrf.mxu0
          %v2574 = vadd.f32 0.0, %v2573
          %2575 = vmatmul.f32.gmra.mxu0 %v2461
          %v2576 = vpop.f32.mrf.mxu0
          %v2577 = vadd.f32 0.0, %v2576
          %2578 = vmatmul.f32.gmra.mxu0 %v2464
          %v2579 = vpop.f32.mrf.mxu0
          %v2580 = vadd.f32 0.0, %v2579
          %2581 = vmatmul.f32.gmra.mxu0 %v2467
          %v2582 = vpop.f32.mrf.mxu0
          %v2583 = vadd.f32 0.0, %v2582
          %2584 = vmatmul.f32.gmra.mxu0 %v2470
          %v2585 = vpop.f32.mrf.mxu0
          %v2586 = vadd.f32 0.0, %v2585
          %2587 = vmatmul.f32.gmra.mxu0 %v2473
          %v2588 = vpop.f32.mrf.mxu0
          %v2589 = vadd.f32 0.0, %v2588
          %2590 = vmatmul.f32.gmra.mxu0 %v2476
          %v2591 = vpop.f32.mrf.mxu0
          %v2592 = vadd.f32 0.0, %v2591
          %2593 = vmatmul.f32.gmra.mxu0 %v2479
          %v2594 = vpop.f32.mrf.mxu0
          %v2595 = vadd.f32 0.0, %v2594
          %2596 = vmatmul.f32.gmra.mxu0 %v2482
          %v2597 = vpop.f32.mrf.mxu0
          %v2598 = vadd.f32 0.0, %v2597
          %2599 = vmatmul.f32.gmra.mxu0 %v2485
          %v2600 = vpop.f32.mrf.mxu0
          %v2601 = vadd.f32 0.0, %v2600
          %2602 = vmatmul.f32.gmra.mxu0 %v2488
          %v2603 = vpop.f32.mrf.mxu0
          %v2604 = vadd.f32 0.0, %v2603
          %2605 = vmatmul.f32.gmra.mxu0 %v2491
          %v2606 = vpop.f32.mrf.mxu0
          %v2607 = vadd.f32 0.0, %v2606
          %2608 = vmatmul.f32.gmra.mxu0 %v2494
          %v2609 = vpop.f32.mrf.mxu0
          %v2610 = vadd.f32 0.0, %v2609
          %2611 = vmatmul.f32.gmra.mxu0 %v2497
          %v2612 = vpop.f32.mrf.mxu0
          %v2613 = vadd.f32 0.0, %v2612
          %2614 = vmatmul.f32.gmra.mxu0 %v2500
          %v2615 = vpop.f32.mrf.mxu0
          %v2616 = vadd.f32 0.0, %v2615
          %2617 = vmatmul.f32.gmra.mxu0 %v2503
          %v2618 = vpop.f32.mrf.mxu0
          %v2619 = vadd.f32 0.0, %v2618
          %2620 = vmatmul.f32.gmra.mxu0 %v2506
          %v2621 = vpop.f32.mrf.mxu0
          %v2622 = vadd.f32 0.0, %v2621
          %2623 = vmatmul.f32.gmra.mxu0 %v2509
          %v2624 = vpop.f32.mrf.mxu0
          %v2625 = vadd.f32 0.0, %v2624
          %2626 = vmatmul.f32.gmra.mxu0 %v2512
          %v2627 = vpop.f32.mrf.mxu0
          %v2628 = vadd.f32 0.0, %v2627
          %2629 = vmatmul.f32.gmra.mxu0 %v2515
          %v2630 = vpop.f32.mrf.mxu0
          %v2631 = vadd.f32 0.0, %v2630
          %2632 = vmatmul.f32.gmra.mxu0 %v2518
          %v2633 = vpop.f32.mrf.mxu0
          %v2634 = vadd.f32 0.0, %v2633
          %2635 = vmatmul.f32.gmra.mxu0 %v2521
          %v2636 = vpop.f32.mrf.mxu0
          %v2637 = vadd.f32 0.0, %v2636
          %2638 = vdwg.mxu0
          %v2639 = vadd.f32 %v2362, %v2544
          %v2640 = vadd.f32 %v2363, %v2547
          %v2641 = vadd.f32 %v2364, %v2550
          %v2642 = vadd.f32 %v2365, %v2553
          %v2643 = vadd.f32 %v2366, %v2556
          %v2644 = vadd.f32 %v2367, %v2559
          %v2645 = vadd.f32 %v2368, %v2562
          %v2646 = vadd.f32 %v2369, %v2565
          %v2647 = vadd.f32 %v2370, %v2568
          %v2648 = vadd.f32 %v2371, %v2571
          %v2649 = vadd.f32 %v2372, %v2574
          %v2650 = vadd.f32 %v2373, %v2577
          %v2651 = vadd.f32 %v2374, %v2580
          %v2652 = vadd.f32 %v2375, %v2583
          %v2653 = vadd.f32 %v2376, %v2586
          %v2654 = vadd.f32 %v2377, %v2589
          %v2655 = vadd.f32 %v2378, %v2592
          %v2656 = vadd.f32 %v2379, %v2595
          %v2657 = vadd.f32 %v2380, %v2598
          %v2658 = vadd.f32 %v2381, %v2601
          %v2659 = vadd.f32 %v2382, %v2604
          %v2660 = vadd.f32 %v2383, %v2607
          %v2661 = vadd.f32 %v2384, %v2610
          %v2662 = vadd.f32 %v2385, %v2613
          %v2663 = vadd.f32 %v2386, %v2616
          %v2664 = vadd.f32 %v2387, %v2619
          %v2665 = vadd.f32 %v2388, %v2622
          %v2666 = vadd.f32 %v2389, %v2625
          %v2667 = vadd.f32 %v2390, %v2628
          %v2668 = vadd.f32 %v2391, %v2631
          %v2669 = vadd.f32 %v2392, %v2634
          %v2670 = vadd.f32 %v2393, %v2637
          %v2671 = vld [vmem:[%s2116 + $0x2] sm:$0xff]
          %v2672 = vld [vmem:[%s2116 + $0xa] sm:$0xff]
          %v2673 = vld [vmem:[%s2116 + $0x1a] sm:$0xff]
          %v2674 = vld [vmem:[%s2116 + $0x22] sm:$0xff]
          %v2675 = vld [vmem:[%s2116 + $0x32] sm:$0xff]
          %v2676 = vld [vmem:[%s2116 + $0x3a] sm:$0xff]
          %v2677 = vld [vmem:[%s2116 + $0x4a] sm:$0xff]
          %v2678 = vld [vmem:[%s2116 + $0x52] sm:$0xff]
          %v2679 = vld [vmem:[%s2116 + $0x62] sm:$0xff]
          %v2680 = vld [vmem:[%s2116 + $0x6a] sm:$0xff]
          %v2681 = vld [vmem:[%s2116 + $0x7a] sm:$0xff]
          %v2682 = vld [vmem:[%s2116 + $0x82] sm:$0xff]
          %v2683 = vld [vmem:[%s2116 + $0x92] sm:$0xff]
          %v2684 = vld [vmem:[%s2116 + $0x9a] sm:$0xff]
          %v2685 = vld [vmem:[%s2116 + $0xaa] sm:$0xff]
          %v2686 = vld [vmem:[%s2116 + $0xb2] sm:$0xff]
          %v2687 = vld [vmem:[%s2116 + $0xc2] sm:$0xff]
          %v2688 = vld [vmem:[%s2116 + $0xca] sm:$0xff]
          %v2689 = vld [vmem:[%s2116 + $0xda] sm:$0xff]
          %v2690 = vld [vmem:[%s2116 + $0xe2] sm:$0xff]
          %v2691 = vld [vmem:[%s2116 + $0xf2] sm:$0xff]
          %v2692 = vld [vmem:[%s2116 + $0xfa] sm:$0xff]
          %v2693 = vld [vmem:[%s2116 + $0x10a] sm:$0xff]
          %v2694 = vld [vmem:[%s2116 + $0x112] sm:$0xff]
          %v2695 = vld [vmem:[%s2116 + $0x122] sm:$0xff]
          %v2696 = vld [vmem:[%s2116 + $0x12a] sm:$0xff]
          %v2697 = vld [vmem:[%s2116 + $0x13a] sm:$0xff]
          %v2698 = vld [vmem:[%s2116 + $0x142] sm:$0xff]
          %v2699 = vld [vmem:[%s2116 + $0x152] sm:$0xff]
          %v2700 = vld [vmem:[%s2116 + $0x15a] sm:$0xff]
          %v2701 = vld [vmem:[%s2116 + $0x16a] sm:$0xff]
          %v2702 = vld [vmem:[%s2116 + $0x172] sm:$0xff]
          %v2703 = vld [vmem:[%s1 + $0x20] sm:$0xf]
          %v2705 = vsel %vm364, %v2671, 0
          %v2708 = vsel %vm364, %v2672, 0
          %v2711 = vsel %vm364, %v2673, 0
          %v2714 = vsel %vm364, %v2674, 0
          %v2717 = vsel %vm364, %v2675, 0
          %v2720 = vsel %vm364, %v2676, 0
          %v2723 = vsel %vm364, %v2677, 0
          %v2726 = vsel %vm364, %v2678, 0
          %v2729 = vsel %vm364, %v2679, 0
          %v2732 = vsel %vm364, %v2680, 0
          %v2735 = vsel %vm364, %v2681, 0
          %v2738 = vsel %vm364, %v2682, 0
          %v2741 = vsel %vm364, %v2683, 0
          %v2744 = vsel %vm364, %v2684, 0
          %v2747 = vsel %vm364, %v2685, 0
          %v2750 = vsel %vm364, %v2686, 0
          %v2753 = vsel %vm364, %v2687, 0
          %v2756 = vsel %vm364, %v2688, 0
          %v2759 = vsel %vm364, %v2689, 0
          %v2762 = vsel %vm364, %v2690, 0
          %v2765 = vsel %vm364, %v2691, 0
          %v2768 = vsel %vm364, %v2692, 0
          %v2771 = vsel %vm364, %v2693, 0
          %v2774 = vsel %vm364, %v2694, 0
          %v2777 = vsel %vm364, %v2695, 0
          %v2780 = vsel %vm364, %v2696, 0
          %v2783 = vsel %vm364, %v2697, 0
          %v2786 = vsel %vm364, %v2698, 0
          %v2789 = vsel %vm364, %v2699, 0
          %v2792 = vsel %vm364, %v2700, 0
          %v2795 = vsel %vm364, %v2701, 0
          %v2798 = vsel %vm364, %v2702, 0
          %v2801 = vsel %vm679, %v2703, 0
          %2803 = vmatpush.msra.mxu0 0.0
          %2804 = vmatpush.msra.mxu0 0.0
          %2805 = vmatpush.msra.mxu0 0.0
          %2806 = vmatpush.msra.mxu0 0.0
          %2807 = vmatpush.msra.mxu0 0.0
          %2808 = vmatpush.msra.mxu0 0.0
          %2809 = vmatpush.msra.mxu0 0.0
          %2810 = vmatpush.msra.mxu0 0.0
          %2811 = vmatpush.msra.mxu0 0.0
          %2812 = vmatpush.msra.mxu0 0.0
          %2813 = vmatpush.msra.mxu0 0.0
          %2814 = vmatpush.msra.mxu0 0.0
          %2815 = vmatpush.msra.mxu0 0.0
          %2816 = vmatpush.msra.mxu0 0.0
          %2817 = vmatpush.msra.mxu0 0.0
          %2818 = vmatpush.msra.mxu0 %v2801
          %2819 = vmatmul.f32.gmra.mxu0 %v2705
          %v2820 = vpop.f32.mrf.mxu0
          %v2821 = vadd.f32 0.0, %v2820
          %2822 = vmatmul.f32.gmra.mxu0 %v2708
          %v2823 = vpop.f32.mrf.mxu0
          %v2824 = vadd.f32 0.0, %v2823
          %2825 = vmatmul.f32.gmra.mxu0 %v2711
          %v2826 = vpop.f32.mrf.mxu0
          %v2827 = vadd.f32 0.0, %v2826
          %2828 = vmatmul.f32.gmra.mxu0 %v2714
          %v2829 = vpop.f32.mrf.mxu0
          %v2830 = vadd.f32 0.0, %v2829
          %2831 = vmatmul.f32.gmra.mxu0 %v2717
          %v2832 = vpop.f32.mrf.mxu0
          %v2833 = vadd.f32 0.0, %v2832
          %2834 = vmatmul.f32.gmra.mxu0 %v2720
          %v2835 = vpop.f32.mrf.mxu0
          %v2836 = vadd.f32 0.0, %v2835
          %2837 = vmatmul.f32.gmra.mxu0 %v2723
          %v2838 = vpop.f32.mrf.mxu0
          %v2839 = vadd.f32 0.0, %v2838
          %2840 = vmatmul.f32.gmra.mxu0 %v2726
          %v2841 = vpop.f32.mrf.mxu0
          %v2842 = vadd.f32 0.0, %v2841
          %2843 = vmatmul.f32.gmra.mxu0 %v2729
          %v2844 = vpop.f32.mrf.mxu0
          %v2845 = vadd.f32 0.0, %v2844
          %2846 = vmatmul.f32.gmra.mxu0 %v2732
          %v2847 = vpop.f32.mrf.mxu0
          %v2848 = vadd.f32 0.0, %v2847
          %2849 = vmatmul.f32.gmra.mxu0 %v2735
          %v2850 = vpop.f32.mrf.mxu0
          %v2851 = vadd.f32 0.0, %v2850
          %2852 = vmatmul.f32.gmra.mxu0 %v2738
          %v2853 = vpop.f32.mrf.mxu0
          %v2854 = vadd.f32 0.0, %v2853
          %2855 = vmatmul.f32.gmra.mxu0 %v2741
          %v2856 = vpop.f32.mrf.mxu0
          %v2857 = vadd.f32 0.0, %v2856
          %2858 = vmatmul.f32.gmra.mxu0 %v2744
          %v2859 = vpop.f32.mrf.mxu0
          %v2860 = vadd.f32 0.0, %v2859
          %2861 = vmatmul.f32.gmra.mxu0 %v2747
          %v2862 = vpop.f32.mrf.mxu0
          %v2863 = vadd.f32 0.0, %v2862
          %2864 = vmatmul.f32.gmra.mxu0 %v2750
          %v2865 = vpop.f32.mrf.mxu0
          %v2866 = vadd.f32 0.0, %v2865
          %2867 = vmatmul.f32.gmra.mxu0 %v2753
          %v2868 = vpop.f32.mrf.mxu0
          %v2869 = vadd.f32 0.0, %v2868
          %2870 = vmatmul.f32.gmra.mxu0 %v2756
          %v2871 = vpop.f32.mrf.mxu0
          %v2872 = vadd.f32 0.0, %v2871
          %2873 = vmatmul.f32.gmra.mxu0 %v2759
          %v2874 = vpop.f32.mrf.mxu0
          %v2875 = vadd.f32 0.0, %v2874
          %2876 = vmatmul.f32.gmra.mxu0 %v2762
          %v2877 = vpop.f32.mrf.mxu0
          %v2878 = vadd.f32 0.0, %v2877
          %2879 = vmatmul.f32.gmra.mxu0 %v2765
          %v2880 = vpop.f32.mrf.mxu0
          %v2881 = vadd.f32 0.0, %v2880
          %2882 = vmatmul.f32.gmra.mxu0 %v2768
          %v2883 = vpop.f32.mrf.mxu0
          %v2884 = vadd.f32 0.0, %v2883
          %2885 = vmatmul.f32.gmra.mxu0 %v2771
          %v2886 = vpop.f32.mrf.mxu0
          %v2887 = vadd.f32 0.0, %v2886
          %2888 = vmatmul.f32.gmra.mxu0 %v2774
          %v2889 = vpop.f32.mrf.mxu0
          %v2890 = vadd.f32 0.0, %v2889
          %2891 = vmatmul.f32.gmra.mxu0 %v2777
          %v2892 = vpop.f32.mrf.mxu0
          %v2893 = vadd.f32 0.0, %v2892
          %2894 = vmatmul.f32.gmra.mxu0 %v2780
          %v2895 = vpop.f32.mrf.mxu0
          %v2896 = vadd.f32 0.0, %v2895
          %2897 = vmatmul.f32.gmra.mxu0 %v2783
          %v2898 = vpop.f32.mrf.mxu0
          %v2899 = vadd.f32 0.0, %v2898
          %2900 = vmatmul.f32.gmra.mxu0 %v2786
          %v2901 = vpop.f32.mrf.mxu0
          %v2902 = vadd.f32 0.0, %v2901
          %2903 = vmatmul.f32.gmra.mxu0 %v2789
          %v2904 = vpop.f32.mrf.mxu0
          %v2905 = vadd.f32 0.0, %v2904
          %2906 = vmatmul.f32.gmra.mxu0 %v2792
          %v2907 = vpop.f32.mrf.mxu0
          %v2908 = vadd.f32 0.0, %v2907
          %2909 = vmatmul.f32.gmra.mxu0 %v2795
          %v2910 = vpop.f32.mrf.mxu0
          %v2911 = vadd.f32 0.0, %v2910
          %2912 = vmatmul.f32.gmra.mxu0 %v2798
          %v2913 = vpop.f32.mrf.mxu0
          %v2914 = vadd.f32 0.0, %v2913
          %2915 = vdwg.mxu0
          %v2916 = vadd.f32 %v2639, %v2821
          %v2917 = vadd.f32 %v2640, %v2824
          %v2918 = vadd.f32 %v2641, %v2827
          %v2919 = vadd.f32 %v2642, %v2830
          %v2920 = vadd.f32 %v2643, %v2833
          %v2921 = vadd.f32 %v2644, %v2836
          %v2922 = vadd.f32 %v2645, %v2839
          %v2923 = vadd.f32 %v2646, %v2842
          %v2924 = vadd.f32 %v2647, %v2845
          %v2925 = vadd.f32 %v2648, %v2848
          %v2926 = vadd.f32 %v2649, %v2851
          %v2927 = vadd.f32 %v2650, %v2854
          %v2928 = vadd.f32 %v2651, %v2857
          %v2929 = vadd.f32 %v2652, %v2860
          %v2930 = vadd.f32 %v2653, %v2863
          %v2931 = vadd.f32 %v2654, %v2866
          %v2932 = vadd.f32 %v2655, %v2869
          %v2933 = vadd.f32 %v2656, %v2872
          %v2934 = vadd.f32 %v2657, %v2875
          %v2935 = vadd.f32 %v2658, %v2878
          %v2936 = vadd.f32 %v2659, %v2881
          %v2937 = vadd.f32 %v2660, %v2884
          %v2938 = vadd.f32 %v2661, %v2887
          %v2939 = vadd.f32 %v2662, %v2890
          %v2940 = vadd.f32 %v2663, %v2893
          %v2941 = vadd.f32 %v2664, %v2896
          %v2942 = vadd.f32 %v2665, %v2899
          %v2943 = vadd.f32 %v2666, %v2902
          %v2944 = vadd.f32 %v2667, %v2905
          %v2945 = vadd.f32 %v2668, %v2908
          %v2946 = vadd.f32 %v2669, %v2911
          %v2947 = vadd.f32 %v2670, %v2914
          %v2948 = vld [vmem:[%s2] sm:$0x1]
          %v2950 = vperm.slane %v2948, 0
          %v2952 = vadd.f32 %v2916, %v2950
          %v2953 = vadd.f32 %v2917, %v2950
          %v2954 = vadd.f32 %v2918, %v2950
          %v2955 = vadd.f32 %v2919, %v2950
          %v2956 = vadd.f32 %v2920, %v2950
          %v2957 = vadd.f32 %v2921, %v2950
          %v2958 = vadd.f32 %v2922, %v2950
          %v2959 = vadd.f32 %v2923, %v2950
          %v2960 = vadd.f32 %v2924, %v2950
          %v2961 = vadd.f32 %v2925, %v2950
          %v2962 = vadd.f32 %v2926, %v2950
          %v2963 = vadd.f32 %v2927, %v2950
          %v2964 = vadd.f32 %v2928, %v2950
          %v2965 = vadd.f32 %v2929, %v2950
          %v2966 = vadd.f32 %v2930, %v2950
          %v2967 = vadd.f32 %v2931, %v2950
          %v2968 = vadd.f32 %v2932, %v2950
          %v2969 = vadd.f32 %v2933, %v2950
          %v2970 = vadd.f32 %v2934, %v2950
          %v2971 = vadd.f32 %v2935, %v2950
          %v2972 = vadd.f32 %v2936, %v2950
          %v2973 = vadd.f32 %v2937, %v2950
          %v2974 = vadd.f32 %v2938, %v2950
          %v2975 = vadd.f32 %v2939, %v2950
          %v2976 = vadd.f32 %v2940, %v2950
          %v2977 = vadd.f32 %v2941, %v2950
          %v2978 = vadd.f32 %v2942, %v2950
          %v2979 = vadd.f32 %v2943, %v2950
          %v2980 = vadd.f32 %v2944, %v2950
          %v2981 = vadd.f32 %v2945, %v2950
          %v2982 = vadd.f32 %v2946, %v2950
          %v2983 = vadd.f32 %v2947, %v2950
          %2984 = vst [vmem:[#allocation3] sm:$0xff] 0.0
          %2985 = vst [vmem:[#allocation3 + $0x8] sm:$0xff] 0.0
          %2986 = vst [vmem:[#allocation3 + $0x10] sm:$0x3] 0.0
          %2987 = vst [vmem:[#allocation3 + $0x18] sm:$0xff] 0.0
          %2988 = vst [vmem:[#allocation3 + $0x20] sm:$0xff] 0.0
          %2989 = vst [vmem:[#allocation3 + $0x28] sm:$0x3] 0.0
          %2990 = vst [vmem:[#allocation3 + $0x30] sm:$0xff] 0.0
          %2991 = vst [vmem:[#allocation3 + $0x38] sm:$0xff] 0.0
          %2992 = vst [vmem:[#allocation3 + $0x40] sm:$0x3] 0.0
          %2993 = vst [vmem:[#allocation3 + $0x48] sm:$0xff] 0.0
          %2994 = vst [vmem:[#allocation3 + $0x50] sm:$0xff] 0.0
          %2995 = vst [vmem:[#allocation3 + $0x58] sm:$0x3] 0.0
          %2996 = vst [vmem:[#allocation3 + $0x60] sm:$0xff] 0.0
          %2997 = vst [vmem:[#allocation3 + $0x68] sm:$0xff] 0.0
          %2998 = vst [vmem:[#allocation3 + $0x70] sm:$0x3] 0.0
          %2999 = vst [vmem:[#allocation3 + $0x78] sm:$0xff] 0.0
          %3000 = vst [vmem:[#allocation3 + $0x80] sm:$0xff] 0.0
          %3001 = vst [vmem:[#allocation3 + $0x88] sm:$0x3] 0.0
          %3002 = vst [vmem:[#allocation3 + $0x90] sm:$0xff] 0.0
          %3003 = vst [vmem:[#allocation3 + $0x98] sm:$0xff] 0.0
          %3004 = vst [vmem:[#allocation3 + $0xa0] sm:$0x3] 0.0
          %3005 = vst [vmem:[#allocation3 + $0xa8] sm:$0xff] 0.0
          %3006 = vst [vmem:[#allocation3 + $0xb0] sm:$0xff] 0.0
          %3007 = vst [vmem:[#allocation3 + $0xb8] sm:$0x3] 0.0
          %3008 = vst [vmem:[#allocation3 + $0xc0] sm:$0xff] 0.0
          %3009 = vst [vmem:[#allocation3 + $0xc8] sm:$0xff] 0.0
          %3010 = vst [vmem:[#allocation3 + $0xd0] sm:$0x3] 0.0
          %3011 = vst [vmem:[#allocation3 + $0xd8] sm:$0xff] 0.0
          %3012 = vst [vmem:[#allocation3 + $0xe0] sm:$0xff] 0.0
          %3013 = vst [vmem:[#allocation3 + $0xe8] sm:$0x3] 0.0
          %3014 = vst [vmem:[#allocation3 + $0xf0] sm:$0xff] 0.0
          %3015 = vst [vmem:[#allocation3 + $0xf8] sm:$0xff] 0.0
          %3016 = vst [vmem:[#allocation3 + $0x100] sm:$0x3] 0.0
          %3017 = vst [vmem:[#allocation3 + $0x108] sm:$0xff] 0.0
          %3018 = vst [vmem:[#allocation3 + $0x110] sm:$0xff] 0.0
          %3019 = vst [vmem:[#allocation3 + $0x118] sm:$0x3] 0.0
          %3020 = vst [vmem:[#allocation3 + $0x120] sm:$0xff] 0.0
          %3021 = vst [vmem:[#allocation3 + $0x128] sm:$0xff] 0.0
          %3022 = vst [vmem:[#allocation3 + $0x130] sm:$0x3] 0.0
          %3023 = vst [vmem:[#allocation3 + $0x138] sm:$0xff] 0.0
          %3024 = vst [vmem:[#allocation3 + $0x140] sm:$0xff] 0.0
          %3025 = vst [vmem:[#allocation3 + $0x148] sm:$0x3] 0.0
          %3026 = vst [vmem:[#allocation3 + $0x150] sm:$0xff] 0.0
          %3027 = vst [vmem:[#allocation3 + $0x158] sm:$0xff] 0.0
          %3028 = vst [vmem:[#allocation3 + $0x160] sm:$0x3] 0.0
          %3029 = vst [vmem:[#allocation3 + $0x168] sm:$0xff] 0.0
          %3030 = vst [vmem:[#allocation3 + $0x170] sm:$0xff] 0.0
          %3031 = vst [vmem:[#allocation3 + $0x178] sm:$0x3] 0.0
          %3032 = vst [vmem:[#allocation3 + $0x180] sm:$0xff] 0.0
          %3033 = vst [vmem:[#allocation3 + $0x188] sm:$0xff] 0.0
          %3034 = vst [vmem:[#allocation3 + $0x190] sm:$0x3] 0.0
          %3035 = vst [vmem:[#allocation3 + $0x198] sm:$0xff] 0.0
          %3036 = vst [vmem:[#allocation3 + $0x1a0] sm:$0xff] 0.0
          %3037 = vst [vmem:[#allocation3 + $0x1a8] sm:$0x3] 0.0
          %v3038 = vmax.f32 %v2952, 0.0
          %v3039 = vmax.f32 %v2953, 0.0
          %v3040 = vmax.f32 %v2954, 0.0
          %v3041 = vmax.f32 %v2955, 0.0
          %v3042 = vmax.f32 %v2956, 0.0
          %v3043 = vmax.f32 %v2957, 0.0
          %v3044 = vmax.f32 %v2958, 0.0
          %v3045 = vmax.f32 %v2959, 0.0
          %v3046 = vmax.f32 %v2960, 0.0
          %v3047 = vmax.f32 %v2961, 0.0
          %v3048 = vmax.f32 %v2962, 0.0
          %v3049 = vmax.f32 %v2963, 0.0
          %v3050 = vmax.f32 %v2964, 0.0
          %v3051 = vmax.f32 %v2965, 0.0
          %v3052 = vmax.f32 %v2966, 0.0
          %v3053 = vmax.f32 %v2967, 0.0
          %v3054 = vmax.f32 %v2968, 0.0
          %v3055 = vmax.f32 %v2969, 0.0
          %v3056 = vmax.f32 %v2970, 0.0
          %v3057 = vmax.f32 %v2971, 0.0
          %v3058 = vmax.f32 %v2972, 0.0
          %v3059 = vmax.f32 %v2973, 0.0
          %v3060 = vmax.f32 %v2974, 0.0
          %v3061 = vmax.f32 %v2975, 0.0
          %v3062 = vmax.f32 %v2976, 0.0
          %v3063 = vmax.f32 %v2977, 0.0
          %v3064 = vmax.f32 %v2978, 0.0
          %v3065 = vmax.f32 %v2979, 0.0
          %v3066 = vmax.f32 %v2980, 0.0
          %v3067 = vmax.f32 %v2981, 0.0
          %v3068 = vmax.f32 %v2982, 0.0
          %v3069 = vmax.f32 %v2983, 0.0
          %s3070 = scalar_lea.vmem [#allocation3], 24
          %3071 = vst [vmem:[%s3070 + $0x1] sm:$0xff] %v3038
          %3072 = vst [vmem:[%s3070 + $0x9] sm:$0xff] %v3039
          %3073 = vst [vmem:[%s3070 + $0x19] sm:$0xff] %v3040
          %3074 = vst [vmem:[%s3070 + $0x21] sm:$0xff] %v3041
          %3075 = vst [vmem:[%s3070 + $0x31] sm:$0xff] %v3042
          %3076 = vst [vmem:[%s3070 + $0x39] sm:$0xff] %v3043
          %3077 = vst [vmem:[%s3070 + $0x49] sm:$0xff] %v3044
          %3078 = vst [vmem:[%s3070 + $0x51] sm:$0xff] %v3045
          %3079 = vst [vmem:[%s3070 + $0x61] sm:$0xff] %v3046
          %3080 = vst [vmem:[%s3070 + $0x69] sm:$0xff] %v3047
          %3081 = vst [vmem:[%s3070 + $0x79] sm:$0xff] %v3048
          %3082 = vst [vmem:[%s3070 + $0x81] sm:$0xff] %v3049
          %3083 = vst [vmem:[%s3070 + $0x91] sm:$0xff] %v3050
          %3084 = vst [vmem:[%s3070 + $0x99] sm:$0xff] %v3051
          %3085 = vst [vmem:[%s3070 + $0xa9] sm:$0xff] %v3052
          %3086 = vst [vmem:[%s3070 + $0xb1] sm:$0xff] %v3053
          %3087 = vst [vmem:[%s3070 + $0xc1] sm:$0xff] %v3054
          %3088 = vst [vmem:[%s3070 + $0xc9] sm:$0xff] %v3055
          %3089 = vst [vmem:[%s3070 + $0xd9] sm:$0xff] %v3056
          %3090 = vst [vmem:[%s3070 + $0xe1] sm:$0xff] %v3057
          %3091 = vst [vmem:[%s3070 + $0xf1] sm:$0xff] %v3058
          %3092 = vst [vmem:[%s3070 + $0xf9] sm:$0xff] %v3059
          %3093 = vst [vmem:[%s3070 + $0x109] sm:$0xff] %v3060
          %3094 = vst [vmem:[%s3070 + $0x111] sm:$0xff] %v3061
          %3095 = vst [vmem:[%s3070 + $0x121] sm:$0xff] %v3062
          %3096 = vst [vmem:[%s3070 + $0x129] sm:$0xff] %v3063
          %3097 = vst [vmem:[%s3070 + $0x139] sm:$0xff] %v3064
          %3098 = vst [vmem:[%s3070 + $0x141] sm:$0xff] %v3065
          %3099 = vst [vmem:[%s3070 + $0x151] sm:$0xff] %v3066
          %3100 = vst [vmem:[%s3070 + $0x159] sm:$0xff] %v3067
          %3101 = vst [vmem:[%s3070 + $0x169] sm:$0xff] %v3068
          %3102 = vst [vmem:[%s3070 + $0x171] sm:$0xff] %v3069
          %v3103 = vld [vmem:[#allocation3] sm:$0xff]
          %v3104 = vld [vmem:[#allocation3 + $0x8] sm:$0xff]
          %v3105 = vld [vmem:[#allocation3 + $0x18] sm:$0xff]
          %v3106 = vld [vmem:[#allocation3 + $0x20] sm:$0xff]
          %v3107 = vld [vmem:[#allocation3 + $0x30] sm:$0xff]
          %v3108 = vld [vmem:[#allocation3 + $0x38] sm:$0xff]
          %v3109 = vld [vmem:[#allocation3 + $0x48] sm:$0xff]
          %v3110 = vld [vmem:[#allocation3 + $0x50] sm:$0xff]
          %v3111 = vld [vmem:[#allocation3 + $0x60] sm:$0xff]
          %v3112 = vld [vmem:[#allocation3 + $0x68] sm:$0xff]
          %v3113 = vld [vmem:[#allocation3 + $0x78] sm:$0xff]
          %v3114 = vld [vmem:[#allocation3 + $0x80] sm:$0xff]
          %v3115 = vld [vmem:[#allocation3 + $0x90] sm:$0xff]
          %v3116 = vld [vmem:[#allocation3 + $0x98] sm:$0xff]
          %v3117 = vld [vmem:[#allocation3 + $0xa8] sm:$0xff]
          %v3118 = vld [vmem:[#allocation3 + $0xb0] sm:$0xff]
          %v3119 = vld [vmem:[#allocation3 + $0xc0] sm:$0xff]
          %v3120 = vld [vmem:[#allocation3 + $0xc8] sm:$0xff]
          %v3121 = vld [vmem:[#allocation3 + $0xd8] sm:$0xff]
          %v3122 = vld [vmem:[#allocation3 + $0xe0] sm:$0xff]
          %v3123 = vld [vmem:[#allocation3 + $0xf0] sm:$0xff]
          %v3124 = vld [vmem:[#allocation3 + $0xf8] sm:$0xff]
          %v3125 = vld [vmem:[#allocation3 + $0x108] sm:$0xff]
          %v3126 = vld [vmem:[#allocation3 + $0x110] sm:$0xff]
          %v3127 = vld [vmem:[#allocation3 + $0x120] sm:$0xff]
          %v3128 = vld [vmem:[#allocation3 + $0x128] sm:$0xff]
          %v3129 = vld [vmem:[#allocation3 + $0x138] sm:$0xff]
          %v3130 = vld [vmem:[#allocation3 + $0x140] sm:$0xff]
          %v3131 = vld [vmem:[#allocation3 + $0x150] sm:$0xff]
          %v3132 = vld [vmem:[#allocation3 + $0x158] sm:$0xff]
          %v3133 = vld [vmem:[#allocation3 + $0x168] sm:$0xff]
          %v3134 = vld [vmem:[#allocation3 + $0x170] sm:$0xff]
          %3135 = vst [vmem:[#allocation4] sm:$0xff] %v3103
          %3136 = vst [vmem:[#allocation4 + $0x48] sm:$0xff] %v3104
          %3137 = vst [vmem:[#allocation4 + $0x90] sm:$0xff] %v3105
          %3138 = vst [vmem:[#allocation4 + $0xd8] sm:$0xff] %v3106
          %3139 = vst [vmem:[#allocation4 + $0x120] sm:$0xff] %v3107
          %3140 = vst [vmem:[#allocation4 + $0x168] sm:$0xff] %v3108
          %3141 = vst [vmem:[#allocation4 + $0x1b0] sm:$0xff] %v3109
          %3142 = vst [vmem:[#allocation4 + $0x1f8] sm:$0xff] %v3110
          %3143 = vst [vmem:[#allocation4 + $0x240] sm:$0xff] %v3111
          %3144 = vst [vmem:[#allocation4 + $0x288] sm:$0xff] %v3112
          %3145 = vst [vmem:[#allocation4 + $0x2d0] sm:$0xff] %v3113
          %3146 = vst [vmem:[#allocation4 + $0x318] sm:$0xff] %v3114
          %3147 = vst [vmem:[#allocation4 + $0x360] sm:$0xff] %v3115
          %3148 = vst [vmem:[#allocation4 + $0x3a8] sm:$0xff] %v3116
          %3149 = vst [vmem:[#allocation4 + $0x3f0] sm:$0xff] %v3117
          %3150 = vst [vmem:[#allocation4 + $0x438] sm:$0xff] %v3118
          %3151 = vst [vmem:[#allocation4 + $0x480] sm:$0xff] %v3119
          %3152 = vst [vmem:[#allocation4 + $0x4c8] sm:$0xff] %v3120
          %3153 = vst [vmem:[#allocation4 + $0x510] sm:$0xff] %v3121
          %3154 = vst [vmem:[#allocation4 + $0x558] sm:$0xff] %v3122
          %3155 = vst [vmem:[#allocation4 + $0x5a0] sm:$0xff] %v3123
          %3156 = vst [vmem:[#allocation4 + $0x5e8] sm:$0xff] %v3124
          %3157 = vst [vmem:[#allocation4 + $0x630] sm:$0xff] %v3125
          %3158 = vst [vmem:[#allocation4 + $0x678] sm:$0xff] %v3126
          %3159 = vst [vmem:[#allocation4 + $0x6c0] sm:$0xff] %v3127
          %3160 = vst [vmem:[#allocation4 + $0x708] sm:$0xff] %v3128
          %3161 = vst [vmem:[#allocation4 + $0x750] sm:$0xff] %v3129
          %3162 = vst [vmem:[#allocation4 + $0x798] sm:$0xff] %v3130
          %3163 = vst [vmem:[#allocation4 + $0x7e0] sm:$0xff] %v3131
          %3164 = vst [vmem:[#allocation4 + $0x828] sm:$0xff] %v3132
          %3165 = vst [vmem:[#allocation4 + $0x870] sm:$0xff] %v3133
          %3166 = vst [vmem:[#allocation4 + $0x8b8] sm:$0xff] %v3134
          %v3167 = vld [vmem:[#allocation3 + $0x1] sm:$0xff]
          %v3168 = vld [vmem:[#allocation3 + $0x9] sm:$0xff]
          %v3169 = vld [vmem:[#allocation3 + $0x19] sm:$0xff]
          %v3170 = vld [vmem:[#allocation3 + $0x21] sm:$0xff]
          %v3171 = vld [vmem:[#allocation3 + $0x31] sm:$0xff]
          %v3172 = vld [vmem:[#allocation3 + $0x39] sm:$0xff]
          %v3173 = vld [vmem:[#allocation3 + $0x49] sm:$0xff]
          %v3174 = vld [vmem:[#allocation3 + $0x51] sm:$0xff]
          %v3175 = vld [vmem:[#allocation3 + $0x61] sm:$0xff]
          %v3176 = vld [vmem:[#allocation3 + $0x69] sm:$0xff]
          %v3177 = vld [vmem:[#allocation3 + $0x79] sm:$0xff]
          %v3178 = vld [vmem:[#allocation3 + $0x81] sm:$0xff]
          %v3179 = vld [vmem:[#allocation3 + $0x91] sm:$0xff]
          %v3180 = vld [vmem:[#allocation3 + $0x99] sm:$0xff]
          %v3181 = vld [vmem:[#allocation3 + $0xa9] sm:$0xff]
          %v3182 = vld [vmem:[#allocation3 + $0xb1] sm:$0xff]
          %v3183 = vld [vmem:[#allocation3 + $0xc1] sm:$0xff]
          %v3184 = vld [vmem:[#allocation3 + $0xc9] sm:$0xff]
          %v3185 = vld [vmem:[#allocation3 + $0xd9] sm:$0xff]
          %v3186 = vld [vmem:[#allocation3 + $0xe1] sm:$0xff]
          %v3187 = vld [vmem:[#allocation3 + $0xf1] sm:$0xff]
          %v3188 = vld [vmem:[#allocation3 + $0xf9] sm:$0xff]
          %v3189 = vld [vmem:[#allocation3 + $0x109] sm:$0xff]
          %v3190 = vld [vmem:[#allocation3 + $0x111] sm:$0xff]
          %v3191 = vld [vmem:[#allocation3 + $0x121] sm:$0xff]
          %v3192 = vld [vmem:[#allocation3 + $0x129] sm:$0xff]
          %v3193 = vld [vmem:[#allocation3 + $0x139] sm:$0xff]
          %v3194 = vld [vmem:[#allocation3 + $0x141] sm:$0xff]
          %v3195 = vld [vmem:[#allocation3 + $0x151] sm:$0xff]
          %v3196 = vld [vmem:[#allocation3 + $0x159] sm:$0xff]
          %v3197 = vld [vmem:[#allocation3 + $0x169] sm:$0xff]
          %v3198 = vld [vmem:[#allocation3 + $0x171] sm:$0xff]
          %3199 = vst [vmem:[#allocation4 + $0x8] sm:$0xff] %v3167
          %3200 = vst [vmem:[#allocation4 + $0x50] sm:$0xff] %v3168
          %3201 = vst [vmem:[#allocation4 + $0x98] sm:$0xff] %v3169
          %3202 = vst [vmem:[#allocation4 + $0xe0] sm:$0xff] %v3170
          %3203 = vst [vmem:[#allocation4 + $0x128] sm:$0xff] %v3171
          %3204 = vst [vmem:[#allocation4 + $0x170] sm:$0xff] %v3172
          %3205 = vst [vmem:[#allocation4 + $0x1b8] sm:$0xff] %v3173
          %3206 = vst [vmem:[#allocation4 + $0x200] sm:$0xff] %v3174
          %3207 = vst [vmem:[#allocation4 + $0x248] sm:$0xff] %v3175
          %3208 = vst [vmem:[#allocation4 + $0x290] sm:$0xff] %v3176
          %3209 = vst [vmem:[#allocation4 + $0x2d8] sm:$0xff] %v3177
          %3210 = vst [vmem:[#allocation4 + $0x320] sm:$0xff] %v3178
          %3211 = vst [vmem:[#allocation4 + $0x368] sm:$0xff] %v3179
          %3212 = vst [vmem:[#allocation4 + $0x3b0] sm:$0xff] %v3180
          %3213 = vst [vmem:[#allocation4 + $0x3f8] sm:$0xff] %v3181
          %3214 = vst [vmem:[#allocation4 + $0x440] sm:$0xff] %v3182
          %3215 = vst [vmem:[#allocation4 + $0x488] sm:$0xff] %v3183
          %3216 = vst [vmem:[#allocation4 + $0x4d0] sm:$0xff] %v3184
          %3217 = vst [vmem:[#allocation4 + $0x518] sm:$0xff] %v3185
          %3218 = vst [vmem:[#allocation4 + $0x560] sm:$0xff] %v3186
          %3219 = vst [vmem:[#allocation4 + $0x5a8] sm:$0xff] %v3187
          %3220 = vst [vmem:[#allocation4 + $0x5f0] sm:$0xff] %v3188
          %3221 = vst [vmem:[#allocation4 + $0x638] sm:$0xff] %v3189
          %3222 = vst [vmem:[#allocation4 + $0x680] sm:$0xff] %v3190
          %3223 = vst [vmem:[#allocation4 + $0x6c8] sm:$0xff] %v3191
          %3224 = vst [vmem:[#allocation4 + $0x710] sm:$0xff] %v3192
          %3225 = vst [vmem:[#allocation4 + $0x758] sm:$0xff] %v3193
          %3226 = vst [vmem:[#allocation4 + $0x7a0] sm:$0xff] %v3194
          %3227 = vst [vmem:[#allocation4 + $0x7e8] sm:$0xff] %v3195
          %3228 = vst [vmem:[#allocation4 + $0x830] sm:$0xff] %v3196
          %3229 = vst [vmem:[#allocation4 + $0x878] sm:$0xff] %v3197
          %3230 = vst [vmem:[#allocation4 + $0x8c0] sm:$0xff] %v3198
          %v3231 = vld [vmem:[#allocation3 + $0x2] sm:$0xff]
          %v3232 = vld [vmem:[#allocation3 + $0xa] sm:$0xff]
          %v3233 = vld [vmem:[#allocation3 + $0x1a] sm:$0xff]
          %v3234 = vld [vmem:[#allocation3 + $0x22] sm:$0xff]
          %v3235 = vld [vmem:[#allocation3 + $0x32] sm:$0xff]
          %v3236 = vld [vmem:[#allocation3 + $0x3a] sm:$0xff]
          %v3237 = vld [vmem:[#allocation3 + $0x4a] sm:$0xff]
          %v3238 = vld [vmem:[#allocation3 + $0x52] sm:$0xff]
          %v3239 = vld [vmem:[#allocation3 + $0x62] sm:$0xff]
          %v3240 = vld [vmem:[#allocation3 + $0x6a] sm:$0xff]
          %v3241 = vld [vmem:[#allocation3 + $0x7a] sm:$0xff]
          %v3242 = vld [vmem:[#allocation3 + $0x82] sm:$0xff]
          %v3243 = vld [vmem:[#allocation3 + $0x92] sm:$0xff]
          %v3244 = vld [vmem:[#allocation3 + $0x9a] sm:$0xff]
          %v3245 = vld [vmem:[#allocation3 + $0xaa] sm:$0xff]
          %v3246 = vld [vmem:[#allocation3 + $0xb2] sm:$0xff]
          %v3247 = vld [vmem:[#allocation3 + $0xc2] sm:$0xff]
          %v3248 = vld [vmem:[#allocation3 + $0xca] sm:$0xff]
          %v3249 = vld [vmem:[#allocation3 + $0xda] sm:$0xff]
          %v3250 = vld [vmem:[#allocation3 + $0xe2] sm:$0xff]
          %v3251 = vld [vmem:[#allocation3 + $0xf2] sm:$0xff]
          %v3252 = vld [vmem:[#allocation3 + $0xfa] sm:$0xff]
          %v3253 = vld [vmem:[#allocation3 + $0x10a] sm:$0xff]
          %v3254 = vld [vmem:[#allocation3 + $0x112] sm:$0xff]
          %v3255 = vld [vmem:[#allocation3 + $0x122] sm:$0xff]
          %v3256 = vld [vmem:[#allocation3 + $0x12a] sm:$0xff]
          %v3257 = vld [vmem:[#allocation3 + $0x13a] sm:$0xff]
          %v3258 = vld [vmem:[#allocation3 + $0x142] sm:$0xff]
          %v3259 = vld [vmem:[#allocation3 + $0x152] sm:$0xff]
          %v3260 = vld [vmem:[#allocation3 + $0x15a] sm:$0xff]
          %v3261 = vld [vmem:[#allocation3 + $0x16a] sm:$0xff]
          %v3262 = vld [vmem:[#allocation3 + $0x172] sm:$0xff]
          %3263 = vst [vmem:[#allocation4 + $0x10] sm:$0xff] %v3231
          %3264 = vst [vmem:[#allocation4 + $0x58] sm:$0xff] %v3232
          %3265 = vst [vmem:[#allocation4 + $0xa0] sm:$0xff] %v3233
          %3266 = vst [vmem:[#allocation4 + $0xe8] sm:$0xff] %v3234
          %3267 = vst [vmem:[#allocation4 + $0x130] sm:$0xff] %v3235
          %3268 = vst [vmem:[#allocation4 + $0x178] sm:$0xff] %v3236
          %3269 = vst [vmem:[#allocation4 + $0x1c0] sm:$0xff] %v3237
          %3270 = vst [vmem:[#allocation4 + $0x208] sm:$0xff] %v3238
          %3271 = vst [vmem:[#allocation4 + $0x250] sm:$0xff] %v3239
          %3272 = vst [vmem:[#allocation4 + $0x298] sm:$0xff] %v3240
          %3273 = vst [vmem:[#allocation4 + $0x2e0] sm:$0xff] %v3241
          %3274 = vst [vmem:[#allocation4 + $0x328] sm:$0xff] %v3242
          %3275 = vst [vmem:[#allocation4 + $0x370] sm:$0xff] %v3243
          %3276 = vst [vmem:[#allocation4 + $0x3b8] sm:$0xff] %v3244
          %3277 = vst [vmem:[#allocation4 + $0x400] sm:$0xff] %v3245
          %3278 = vst [vmem:[#allocation4 + $0x448] sm:$0xff] %v3246
          %3279 = vst [vmem:[#allocation4 + $0x490] sm:$0xff] %v3247
          %3280 = vst [vmem:[#allocation4 + $0x4d8] sm:$0xff] %v3248
          %3281 = vst [vmem:[#allocation4 + $0x520] sm:$0xff] %v3249
          %3282 = vst [vmem:[#allocation4 + $0x568] sm:$0xff] %v3250
          %3283 = vst [vmem:[#allocation4 + $0x5b0] sm:$0xff] %v3251
          %3284 = vst [vmem:[#allocation4 + $0x5f8] sm:$0xff] %v3252
          %3285 = vst [vmem:[#allocation4 + $0x640] sm:$0xff] %v3253
          %3286 = vst [vmem:[#allocation4 + $0x688] sm:$0xff] %v3254
          %3287 = vst [vmem:[#allocation4 + $0x6d0] sm:$0xff] %v3255
          %3288 = vst [vmem:[#allocation4 + $0x718] sm:$0xff] %v3256
          %3289 = vst [vmem:[#allocation4 + $0x760] sm:$0xff] %v3257
          %3290 = vst [vmem:[#allocation4 + $0x7a8] sm:$0xff] %v3258
          %3291 = vst [vmem:[#allocation4 + $0x7f0] sm:$0xff] %v3259
          %3292 = vst [vmem:[#allocation4 + $0x838] sm:$0xff] %v3260
          %3293 = vst [vmem:[#allocation4 + $0x880] sm:$0xff] %v3261
          %3294 = vst [vmem:[#allocation4 + $0x8c8] sm:$0xff] %v3262
          %v3295 = vld [vmem:[%s3070] sm:$0xff]
          %v3296 = vld [vmem:[%s3070 + $0x8] sm:$0xff]
          %v3297 = vld [vmem:[%s3070 + $0x18] sm:$0xff]
          %v3298 = vld [vmem:[%s3070 + $0x20] sm:$0xff]
          %v3299 = vld [vmem:[%s3070 + $0x30] sm:$0xff]
          %v3300 = vld [vmem:[%s3070 + $0x38] sm:$0xff]
          %v3301 = vld [vmem:[%s3070 + $0x48] sm:$0xff]
          %v3302 = vld [vmem:[%s3070 + $0x50] sm:$0xff]
          %v3303 = vld [vmem:[%s3070 + $0x60] sm:$0xff]
          %v3304 = vld [vmem:[%s3070 + $0x68] sm:$0xff]
          %v3305 = vld [vmem:[%s3070 + $0x78] sm:$0xff]
          %v3306 = vld [vmem:[%s3070 + $0x80] sm:$0xff]
          %v3307 = vld [vmem:[%s3070 + $0x90] sm:$0xff]
          %v3308 = vld [vmem:[%s3070 + $0x98] sm:$0xff]
          %v3309 = vld [vmem:[%s3070 + $0xa8] sm:$0xff]
          %v3310 = vld [vmem:[%s3070 + $0xb0] sm:$0xff]
          %v3311 = vld [vmem:[%s3070 + $0xc0] sm:$0xff]
          %v3312 = vld [vmem:[%s3070 + $0xc8] sm:$0xff]
          %v3313 = vld [vmem:[%s3070 + $0xd8] sm:$0xff]
          %v3314 = vld [vmem:[%s3070 + $0xe0] sm:$0xff]
          %v3315 = vld [vmem:[%s3070 + $0xf0] sm:$0xff]
          %v3316 = vld [vmem:[%s3070 + $0xf8] sm:$0xff]
          %v3317 = vld [vmem:[%s3070 + $0x108] sm:$0xff]
          %v3318 = vld [vmem:[%s3070 + $0x110] sm:$0xff]
          %v3319 = vld [vmem:[%s3070 + $0x120] sm:$0xff]
          %v3320 = vld [vmem:[%s3070 + $0x128] sm:$0xff]
          %v3321 = vld [vmem:[%s3070 + $0x138] sm:$0xff]
          %v3322 = vld [vmem:[%s3070 + $0x140] sm:$0xff]
          %v3323 = vld [vmem:[%s3070 + $0x150] sm:$0xff]
          %v3324 = vld [vmem:[%s3070 + $0x158] sm:$0xff]
          %v3325 = vld [vmem:[%s3070 + $0x168] sm:$0xff]
          %v3326 = vld [vmem:[%s3070 + $0x170] sm:$0xff]
          %3327 = vst [vmem:[#allocation4 + $0x18] sm:$0xff] %v3295
          %3328 = vst [vmem:[#allocation4 + $0x60] sm:$0xff] %v3296
          %3329 = vst [vmem:[#allocation4 + $0xa8] sm:$0xff] %v3297
          %3330 = vst [vmem:[#allocation4 + $0xf0] sm:$0xff] %v3298
          %3331 = vst [vmem:[#allocation4 + $0x138] sm:$0xff] %v3299
          %3332 = vst [vmem:[#allocation4 + $0x180] sm:$0xff] %v3300
          %3333 = vst [vmem:[#allocation4 + $0x1c8] sm:$0xff] %v3301
          %3334 = vst [vmem:[#allocation4 + $0x210] sm:$0xff] %v3302
          %3335 = vst [vmem:[#allocation4 + $0x258] sm:$0xff] %v3303
          %3336 = vst [vmem:[#allocation4 + $0x2a0] sm:$0xff] %v3304
          %3337 = vst [vmem:[#allocation4 + $0x2e8] sm:$0xff] %v3305
          %3338 = vst [vmem:[#allocation4 + $0x330] sm:$0xff] %v3306
          %3339 = vst [vmem:[#allocation4 + $0x378] sm:$0xff] %v3307
          %3340 = vst [vmem:[#allocation4 + $0x3c0] sm:$0xff] %v3308
          %3341 = vst [vmem:[#allocation4 + $0x408] sm:$0xff] %v3309
          %3342 = vst [vmem:[#allocation4 + $0x450] sm:$0xff] %v3310
          %3343 = vst [vmem:[#allocation4 + $0x498] sm:$0xff] %v3311
          %3344 = vst [vmem:[#allocation4 + $0x4e0] sm:$0xff] %v3312
          %3345 = vst [vmem:[#allocation4 + $0x528] sm:$0xff] %v3313
          %3346 = vst [vmem:[#allocation4 + $0x570] sm:$0xff] %v3314
          %3347 = vst [vmem:[#allocation4 + $0x5b8] sm:$0xff] %v3315
          %3348 = vst [vmem:[#allocation4 + $0x600] sm:$0xff] %v3316
          %3349 = vst [vmem:[#allocation4 + $0x648] sm:$0xff] %v3317
          %3350 = vst [vmem:[#allocation4 + $0x690] sm:$0xff] %v3318
          %3351 = vst [vmem:[#allocation4 + $0x6d8] sm:$0xff] %v3319
          %3352 = vst [vmem:[#allocation4 + $0x720] sm:$0xff] %v3320
          %3353 = vst [vmem:[#allocation4 + $0x768] sm:$0xff] %v3321
          %3354 = vst [vmem:[#allocation4 + $0x7b0] sm:$0xff] %v3322
          %3355 = vst [vmem:[#allocation4 + $0x7f8] sm:$0xff] %v3323
          %3356 = vst [vmem:[#allocation4 + $0x840] sm:$0xff] %v3324
          %3357 = vst [vmem:[#allocation4 + $0x888] sm:$0xff] %v3325
          %3358 = vst [vmem:[#allocation4 + $0x8d0] sm:$0xff] %v3326
          %v3359 = vld [vmem:[%s3070 + $0x1] sm:$0xff]
          %v3360 = vld [vmem:[%s3070 + $0x9] sm:$0xff]
          %v3361 = vld [vmem:[%s3070 + $0x19] sm:$0xff]
          %v3362 = vld [vmem:[%s3070 + $0x21] sm:$0xff]
          %v3363 = vld [vmem:[%s3070 + $0x31] sm:$0xff]
          %v3364 = vld [vmem:[%s3070 + $0x39] sm:$0xff]
          %v3365 = vld [vmem:[%s3070 + $0x49] sm:$0xff]
          %v3366 = vld [vmem:[%s3070 + $0x51] sm:$0xff]
          %v3367 = vld [vmem:[%s3070 + $0x61] sm:$0xff]
          %v3368 = vld [vmem:[%s3070 + $0x69] sm:$0xff]
          %v3369 = vld [vmem:[%s3070 + $0x79] sm:$0xff]
          %v3370 = vld [vmem:[%s3070 + $0x81] sm:$0xff]
          %v3371 = vld [vmem:[%s3070 + $0x91] sm:$0xff]
          %v3372 = vld [vmem:[%s3070 + $0x99] sm:$0xff]
          %v3373 = vld [vmem:[%s3070 + $0xa9] sm:$0xff]
          %v3374 = vld [vmem:[%s3070 + $0xb1] sm:$0xff]
          %v3375 = vld [vmem:[%s3070 + $0xc1] sm:$0xff]
          %v3376 = vld [vmem:[%s3070 + $0xc9] sm:$0xff]
          %v3377 = vld [vmem:[%s3070 + $0xd9] sm:$0xff]
          %v3378 = vld [vmem:[%s3070 + $0xe1] sm:$0xff]
          %v3379 = vld [vmem:[%s3070 + $0xf1] sm:$0xff]
          %v3380 = vld [vmem:[%s3070 + $0xf9] sm:$0xff]
          %v3381 = vld [vmem:[%s3070 + $0x109] sm:$0xff]
          %v3382 = vld [vmem:[%s3070 + $0x111] sm:$0xff]
          %v3383 = vld [vmem:[%s3070 + $0x121] sm:$0xff]
          %v3384 = vld [vmem:[%s3070 + $0x129] sm:$0xff]
          %v3385 = vld [vmem:[%s3070 + $0x139] sm:$0xff]
          %v3386 = vld [vmem:[%s3070 + $0x141] sm:$0xff]
          %v3387 = vld [vmem:[%s3070 + $0x151] sm:$0xff]
          %v3388 = vld [vmem:[%s3070 + $0x159] sm:$0xff]
          %v3389 = vld [vmem:[%s3070 + $0x169] sm:$0xff]
          %v3390 = vld [vmem:[%s3070 + $0x171] sm:$0xff]
          %3391 = vst [vmem:[#allocation4 + $0x20] sm:$0xff] %v3359
          %3392 = vst [vmem:[#allocation4 + $0x68] sm:$0xff] %v3360
          %3393 = vst [vmem:[#allocation4 + $0xb0] sm:$0xff] %v3361
          %3394 = vst [vmem:[#allocation4 + $0xf8] sm:$0xff] %v3362
          %3395 = vst [vmem:[#allocation4 + $0x140] sm:$0xff] %v3363
          %3396 = vst [vmem:[#allocation4 + $0x188] sm:$0xff] %v3364
          %3397 = vst [vmem:[#allocation4 + $0x1d0] sm:$0xff] %v3365
          %3398 = vst [vmem:[#allocation4 + $0x218] sm:$0xff] %v3366
          %3399 = vst [vmem:[#allocation4 + $0x260] sm:$0xff] %v3367
          %3400 = vst [vmem:[#allocation4 + $0x2a8] sm:$0xff] %v3368
          %3401 = vst [vmem:[#allocation4 + $0x2f0] sm:$0xff] %v3369
          %3402 = vst [vmem:[#allocation4 + $0x338] sm:$0xff] %v3370
          %3403 = vst [vmem:[#allocation4 + $0x380] sm:$0xff] %v3371
          %3404 = vst [vmem:[#allocation4 + $0x3c8] sm:$0xff] %v3372
          %3405 = vst [vmem:[#allocation4 + $0x410] sm:$0xff] %v3373
          %3406 = vst [vmem:[#allocation4 + $0x458] sm:$0xff] %v3374
          %3407 = vst [vmem:[#allocation4 + $0x4a0] sm:$0xff] %v3375
          %3408 = vst [vmem:[#allocation4 + $0x4e8] sm:$0xff] %v3376
          %3409 = vst [vmem:[#allocation4 + $0x530] sm:$0xff] %v3377
          %3410 = vst [vmem:[#allocation4 + $0x578] sm:$0xff] %v3378
          %3411 = vst [vmem:[#allocation4 + $0x5c0] sm:$0xff] %v3379
          %3412 = vst [vmem:[#allocation4 + $0x608] sm:$0xff] %v3380
          %3413 = vst [vmem:[#allocation4 + $0x650] sm:$0xff] %v3381
          %3414 = vst [vmem:[#allocation4 + $0x698] sm:$0xff] %v3382
          %3415 = vst [vmem:[#allocation4 + $0x6e0] sm:$0xff] %v3383
          %3416 = vst [vmem:[#allocation4 + $0x728] sm:$0xff] %v3384
          %3417 = vst [vmem:[#allocation4 + $0x770] sm:$0xff] %v3385
          %3418 = vst [vmem:[#allocation4 + $0x7b8] sm:$0xff] %v3386
          %3419 = vst [vmem:[#allocation4 + $0x800] sm:$0xff] %v3387
          %3420 = vst [vmem:[#allocation4 + $0x848] sm:$0xff] %v3388
          %3421 = vst [vmem:[#allocation4 + $0x890] sm:$0xff] %v3389
          %3422 = vst [vmem:[#allocation4 + $0x8d8] sm:$0xff] %v3390
          %v3423 = vld [vmem:[%s3070 + $0x2] sm:$0xff]
          %v3424 = vld [vmem:[%s3070 + $0xa] sm:$0xff]
          %v3425 = vld [vmem:[%s3070 + $0x1a] sm:$0xff]
          %v3426 = vld [vmem:[%s3070 + $0x22] sm:$0xff]
          %v3427 = vld [vmem:[%s3070 + $0x32] sm:$0xff]
          %v3428 = vld [vmem:[%s3070 + $0x3a] sm:$0xff]
          %v3429 = vld [vmem:[%s3070 + $0x4a] sm:$0xff]
          %v3430 = vld [vmem:[%s3070 + $0x52] sm:$0xff]
          %v3431 = vld [vmem:[%s3070 + $0x62] sm:$0xff]
          %v3432 = vld [vmem:[%s3070 + $0x6a] sm:$0xff]
          %v3433 = vld [vmem:[%s3070 + $0x7a] sm:$0xff]
          %v3434 = vld [vmem:[%s3070 + $0x82] sm:$0xff]
          %v3435 = vld [vmem:[%s3070 + $0x92] sm:$0xff]
          %v3436 = vld [vmem:[%s3070 + $0x9a] sm:$0xff]
          %v3437 = vld [vmem:[%s3070 + $0xaa] sm:$0xff]
          %v3438 = vld [vmem:[%s3070 + $0xb2] sm:$0xff]
          %v3439 = vld [vmem:[%s3070 + $0xc2] sm:$0xff]
          %v3440 = vld [vmem:[%s3070 + $0xca] sm:$0xff]
          %v3441 = vld [vmem:[%s3070 + $0xda] sm:$0xff]
          %v3442 = vld [vmem:[%s3070 + $0xe2] sm:$0xff]
          %v3443 = vld [vmem:[%s3070 + $0xf2] sm:$0xff]
          %v3444 = vld [vmem:[%s3070 + $0xfa] sm:$0xff]
          %v3445 = vld [vmem:[%s3070 + $0x10a] sm:$0xff]
          %v3446 = vld [vmem:[%s3070 + $0x112] sm:$0xff]
          %v3447 = vld [vmem:[%s3070 + $0x122] sm:$0xff]
          %v3448 = vld [vmem:[%s3070 + $0x12a] sm:$0xff]
          %v3449 = vld [vmem:[%s3070 + $0x13a] sm:$0xff]
          %v3450 = vld [vmem:[%s3070 + $0x142] sm:$0xff]
          %v3451 = vld [vmem:[%s3070 + $0x152] sm:$0xff]
          %v3452 = vld [vmem:[%s3070 + $0x15a] sm:$0xff]
          %v3453 = vld [vmem:[%s3070 + $0x16a] sm:$0xff]
          %v3454 = vld [vmem:[%s3070 + $0x172] sm:$0xff]
          %3455 = vst [vmem:[#allocation4 + $0x28] sm:$0xff] %v3423
          %3456 = vst [vmem:[#allocation4 + $0x70] sm:$0xff] %v3424
          %3457 = vst [vmem:[#allocation4 + $0xb8] sm:$0xff] %v3425
          %3458 = vst [vmem:[#allocation4 + $0x100] sm:$0xff] %v3426
          %3459 = vst [vmem:[#allocation4 + $0x148] sm:$0xff] %v3427
          %3460 = vst [vmem:[#allocation4 + $0x190] sm:$0xff] %v3428
          %3461 = vst [vmem:[#allocation4 + $0x1d8] sm:$0xff] %v3429
          %3462 = vst [vmem:[#allocation4 + $0x220] sm:$0xff] %v3430
          %3463 = vst [vmem:[#allocation4 + $0x268] sm:$0xff] %v3431
          %3464 = vst [vmem:[#allocation4 + $0x2b0] sm:$0xff] %v3432
          %3465 = vst [vmem:[#allocation4 + $0x2f8] sm:$0xff] %v3433
          %3466 = vst [vmem:[#allocation4 + $0x340] sm:$0xff] %v3434
          %3467 = vst [vmem:[#allocation4 + $0x388] sm:$0xff] %v3435
          %3468 = vst [vmem:[#allocation4 + $0x3d0] sm:$0xff] %v3436
          %3469 = vst [vmem:[#allocation4 + $0x418] sm:$0xff] %v3437
          %3470 = vst [vmem:[#allocation4 + $0x460] sm:$0xff] %v3438
          %3471 = vst [vmem:[#allocation4 + $0x4a8] sm:$0xff] %v3439
          %3472 = vst [vmem:[#allocation4 + $0x4f0] sm:$0xff] %v3440
          %3473 = vst [vmem:[#allocation4 + $0x538] sm:$0xff] %v3441
          %3474 = vst [vmem:[#allocation4 + $0x580] sm:$0xff] %v3442
          %3475 = vst [vmem:[#allocation4 + $0x5c8] sm:$0xff] %v3443
          %3476 = vst [vmem:[#allocation4 + $0x610] sm:$0xff] %v3444
          %3477 = vst [vmem:[#allocation4 + $0x658] sm:$0xff] %v3445
          %3478 = vst [vmem:[#allocation4 + $0x6a0] sm:$0xff] %v3446
          %3479 = vst [vmem:[#allocation4 + $0x6e8] sm:$0xff] %v3447
          %3480 = vst [vmem:[#allocation4 + $0x730] sm:$0xff] %v3448
          %3481 = vst [vmem:[#allocation4 + $0x778] sm:$0xff] %v3449
          %3482 = vst [vmem:[#allocation4 + $0x7c0] sm:$0xff] %v3450
          %3483 = vst [vmem:[#allocation4 + $0x808] sm:$0xff] %v3451
          %3484 = vst [vmem:[#allocation4 + $0x850] sm:$0xff] %v3452
          %3485 = vst [vmem:[#allocation4 + $0x898] sm:$0xff] %v3453
          %3486 = vst [vmem:[#allocation4 + $0x8e0] sm:$0xff] %v3454
          %s3487 = scalar_lea.vmem [#allocation3], 48
          %v3488 = vld [vmem:[%s3487] sm:$0xff]
          %v3489 = vld [vmem:[%s3487 + $0x8] sm:$0xff]
          %v3490 = vld [vmem:[%s3487 + $0x18] sm:$0xff]
          %v3491 = vld [vmem:[%s3487 + $0x20] sm:$0xff]
          %v3492 = vld [vmem:[%s3487 + $0x30] sm:$0xff]
          %v3493 = vld [vmem:[%s3487 + $0x38] sm:$0xff]
          %v3494 = vld [vmem:[%s3487 + $0x48] sm:$0xff]
          %v3495 = vld [vmem:[%s3487 + $0x50] sm:$0xff]
          %v3496 = vld [vmem:[%s3487 + $0x60] sm:$0xff]
          %v3497 = vld [vmem:[%s3487 + $0x68] sm:$0xff]
          %v3498 = vld [vmem:[%s3487 + $0x78] sm:$0xff]
          %v3499 = vld [vmem:[%s3487 + $0x80] sm:$0xff]
          %v3500 = vld [vmem:[%s3487 + $0x90] sm:$0xff]
          %v3501 = vld [vmem:[%s3487 + $0x98] sm:$0xff]
          %v3502 = vld [vmem:[%s3487 + $0xa8] sm:$0xff]
          %v3503 = vld [vmem:[%s3487 + $0xb0] sm:$0xff]
          %v3504 = vld [vmem:[%s3487 + $0xc0] sm:$0xff]
          %v3505 = vld [vmem:[%s3487 + $0xc8] sm:$0xff]
          %v3506 = vld [vmem:[%s3487 + $0xd8] sm:$0xff]
          %v3507 = vld [vmem:[%s3487 + $0xe0] sm:$0xff]
          %v3508 = vld [vmem:[%s3487 + $0xf0] sm:$0xff]
          %v3509 = vld [vmem:[%s3487 + $0xf8] sm:$0xff]
          %v3510 = vld [vmem:[%s3487 + $0x108] sm:$0xff]
          %v3511 = vld [vmem:[%s3487 + $0x110] sm:$0xff]
          %v3512 = vld [vmem:[%s3487 + $0x120] sm:$0xff]
          %v3513 = vld [vmem:[%s3487 + $0x128] sm:$0xff]
          %v3514 = vld [vmem:[%s3487 + $0x138] sm:$0xff]
          %v3515 = vld [vmem:[%s3487 + $0x140] sm:$0xff]
          %v3516 = vld [vmem:[%s3487 + $0x150] sm:$0xff]
          %v3517 = vld [vmem:[%s3487 + $0x158] sm:$0xff]
          %v3518 = vld [vmem:[%s3487 + $0x168] sm:$0xff]
          %v3519 = vld [vmem:[%s3487 + $0x170] sm:$0xff]
          %3520 = vst [vmem:[#allocation4 + $0x30] sm:$0xff] %v3488
          %3521 = vst [vmem:[#allocation4 + $0x78] sm:$0xff] %v3489
          %3522 = vst [vmem:[#allocation4 + $0xc0] sm:$0xff] %v3490
          %3523 = vst [vmem:[#allocation4 + $0x108] sm:$0xff] %v3491
          %3524 = vst [vmem:[#allocation4 + $0x150] sm:$0xff] %v3492
          %3525 = vst [vmem:[#allocation4 + $0x198] sm:$0xff] %v3493
          %3526 = vst [vmem:[#allocation4 + $0x1e0] sm:$0xff] %v3494
          %3527 = vst [vmem:[#allocation4 + $0x228] sm:$0xff] %v3495
          %3528 = vst [vmem:[#allocation4 + $0x270] sm:$0xff] %v3496
          %3529 = vst [vmem:[#allocation4 + $0x2b8] sm:$0xff] %v3497
          %3530 = vst [vmem:[#allocation4 + $0x300] sm:$0xff] %v3498
          %3531 = vst [vmem:[#allocation4 + $0x348] sm:$0xff] %v3499
          %3532 = vst [vmem:[#allocation4 + $0x390] sm:$0xff] %v3500
          %3533 = vst [vmem:[#allocation4 + $0x3d8] sm:$0xff] %v3501
          %3534 = vst [vmem:[#allocation4 + $0x420] sm:$0xff] %v3502
          %3535 = vst [vmem:[#allocation4 + $0x468] sm:$0xff] %v3503
          %3536 = vst [vmem:[#allocation4 + $0x4b0] sm:$0xff] %v3504
          %3537 = vst [vmem:[#allocation4 + $0x4f8] sm:$0xff] %v3505
          %3538 = vst [vmem:[#allocation4 + $0x540] sm:$0xff] %v3506
          %3539 = vst [vmem:[#allocation4 + $0x588] sm:$0xff] %v3507
          %3540 = vst [vmem:[#allocation4 + $0x5d0] sm:$0xff] %v3508
          %3541 = vst [vmem:[#allocation4 + $0x618] sm:$0xff] %v3509
          %3542 = vst [vmem:[#allocation4 + $0x660] sm:$0xff] %v3510
          %3543 = vst [vmem:[#allocation4 + $0x6a8] sm:$0xff] %v3511
          %3544 = vst [vmem:[#allocation4 + $0x6f0] sm:$0xff] %v3512
          %3545 = vst [vmem:[#allocation4 + $0x738] sm:$0xff] %v3513
          %3546 = vst [vmem:[#allocation4 + $0x780] sm:$0xff] %v3514
          %3547 = vst [vmem:[#allocation4 + $0x7c8] sm:$0xff] %v3515
          %3548 = vst [vmem:[#allocation4 + $0x810] sm:$0xff] %v3516
          %3549 = vst [vmem:[#allocation4 + $0x858] sm:$0xff] %v3517
          %3550 = vst [vmem:[#allocation4 + $0x8a0] sm:$0xff] %v3518
          %3551 = vst [vmem:[#allocation4 + $0x8e8] sm:$0xff] %v3519
          %v3552 = vld [vmem:[%s3487 + $0x1] sm:$0xff]
          %v3553 = vld [vmem:[%s3487 + $0x9] sm:$0xff]
          %v3554 = vld [vmem:[%s3487 + $0x19] sm:$0xff]
          %v3555 = vld [vmem:[%s3487 + $0x21] sm:$0xff]
          %v3556 = vld [vmem:[%s3487 + $0x31] sm:$0xff]
          %v3557 = vld [vmem:[%s3487 + $0x39] sm:$0xff]
          %v3558 = vld [vmem:[%s3487 + $0x49] sm:$0xff]
          %v3559 = vld [vmem:[%s3487 + $0x51] sm:$0xff]
          %v3560 = vld [vmem:[%s3487 + $0x61] sm:$0xff]
          %v3561 = vld [vmem:[%s3487 + $0x69] sm:$0xff]
          %v3562 = vld [vmem:[%s3487 + $0x79] sm:$0xff]
          %v3563 = vld [vmem:[%s3487 + $0x81] sm:$0xff]
          %v3564 = vld [vmem:[%s3487 + $0x91] sm:$0xff]
          %v3565 = vld [vmem:[%s3487 + $0x99] sm:$0xff]
          %v3566 = vld [vmem:[%s3487 + $0xa9] sm:$0xff]
          %v3567 = vld [vmem:[%s3487 + $0xb1] sm:$0xff]
          %v3568 = vld [vmem:[%s3487 + $0xc1] sm:$0xff]
          %v3569 = vld [vmem:[%s3487 + $0xc9] sm:$0xff]
          %v3570 = vld [vmem:[%s3487 + $0xd9] sm:$0xff]
          %v3571 = vld [vmem:[%s3487 + $0xe1] sm:$0xff]
          %v3572 = vld [vmem:[%s3487 + $0xf1] sm:$0xff]
          %v3573 = vld [vmem:[%s3487 + $0xf9] sm:$0xff]
          %v3574 = vld [vmem:[%s3487 + $0x109] sm:$0xff]
          %v3575 = vld [vmem:[%s3487 + $0x111] sm:$0xff]
          %v3576 = vld [vmem:[%s3487 + $0x121] sm:$0xff]
          %v3577 = vld [vmem:[%s3487 + $0x129] sm:$0xff]
          %v3578 = vld [vmem:[%s3487 + $0x139] sm:$0xff]
          %v3579 = vld [vmem:[%s3487 + $0x141] sm:$0xff]
          %v3580 = vld [vmem:[%s3487 + $0x151] sm:$0xff]
          %v3581 = vld [vmem:[%s3487 + $0x159] sm:$0xff]
          %v3582 = vld [vmem:[%s3487 + $0x169] sm:$0xff]
          %v3583 = vld [vmem:[%s3487 + $0x171] sm:$0xff]
          %3584 = vst [vmem:[#allocation4 + $0x38] sm:$0xff] %v3552
          %3585 = vst [vmem:[#allocation4 + $0x80] sm:$0xff] %v3553
          %3586 = vst [vmem:[#allocation4 + $0xc8] sm:$0xff] %v3554
          %3587 = vst [vmem:[#allocation4 + $0x110] sm:$0xff] %v3555
          %3588 = vst [vmem:[#allocation4 + $0x158] sm:$0xff] %v3556
          %3589 = vst [vmem:[#allocation4 + $0x1a0] sm:$0xff] %v3557
          %3590 = vst [vmem:[#allocation4 + $0x1e8] sm:$0xff] %v3558
          %3591 = vst [vmem:[#allocation4 + $0x230] sm:$0xff] %v3559
          %3592 = vst [vmem:[#allocation4 + $0x278] sm:$0xff] %v3560
          %3593 = vst [vmem:[#allocation4 + $0x2c0] sm:$0xff] %v3561
          %3594 = vst [vmem:[#allocation4 + $0x308] sm:$0xff] %v3562
          %3595 = vst [vmem:[#allocation4 + $0x350] sm:$0xff] %v3563
          %3596 = vst [vmem:[#allocation4 + $0x398] sm:$0xff] %v3564
          %3597 = vst [vmem:[#allocation4 + $0x3e0] sm:$0xff] %v3565
          %3598 = vst [vmem:[#allocation4 + $0x428] sm:$0xff] %v3566
          %3599 = vst [vmem:[#allocation4 + $0x470] sm:$0xff] %v3567
          %3600 = vst [vmem:[#allocation4 + $0x4b8] sm:$0xff] %v3568
          %3601 = vst [vmem:[#allocation4 + $0x500] sm:$0xff] %v3569
          %3602 = vst [vmem:[#allocation4 + $0x548] sm:$0xff] %v3570
          %3603 = vst [vmem:[#allocation4 + $0x590] sm:$0xff] %v3571
          %3604 = vst [vmem:[#allocation4 + $0x5d8] sm:$0xff] %v3572
          %3605 = vst [vmem:[#allocation4 + $0x620] sm:$0xff] %v3573
          %3606 = vst [vmem:[#allocation4 + $0x668] sm:$0xff] %v3574
          %3607 = vst [vmem:[#allocation4 + $0x6b0] sm:$0xff] %v3575
          %3608 = vst [vmem:[#allocation4 + $0x6f8] sm:$0xff] %v3576
          %3609 = vst [vmem:[#allocation4 + $0x740] sm:$0xff] %v3577
          %3610 = vst [vmem:[#allocation4 + $0x788] sm:$0xff] %v3578
          %3611 = vst [vmem:[#allocation4 + $0x7d0] sm:$0xff] %v3579
          %3612 = vst [vmem:[#allocation4 + $0x818] sm:$0xff] %v3580
          %3613 = vst [vmem:[#allocation4 + $0x860] sm:$0xff] %v3581
          %3614 = vst [vmem:[#allocation4 + $0x8a8] sm:$0xff] %v3582
          %3615 = vst [vmem:[#allocation4 + $0x8f0] sm:$0xff] %v3583
          %v3616 = vld [vmem:[%s3487 + $0x2] sm:$0xff]
          %v3617 = vld [vmem:[%s3487 + $0xa] sm:$0xff]
          %v3618 = vld [vmem:[%s3487 + $0x1a] sm:$0xff]
          %v3619 = vld [vmem:[%s3487 + $0x22] sm:$0xff]
          %v3620 = vld [vmem:[%s3487 + $0x32] sm:$0xff]
          %v3621 = vld [vmem:[%s3487 + $0x3a] sm:$0xff]
          %v3622 = vld [vmem:[%s3487 + $0x4a] sm:$0xff]
          %v3623 = vld [vmem:[%s3487 + $0x52] sm:$0xff]
          %v3624 = vld [vmem:[%s3487 + $0x62] sm:$0xff]
          %v3625 = vld [vmem:[%s3487 + $0x6a] sm:$0xff]
          %v3626 = vld [vmem:[%s3487 + $0x7a] sm:$0xff]
          %v3627 = vld [vmem:[%s3487 + $0x82] sm:$0xff]
          %v3628 = vld [vmem:[%s3487 + $0x92] sm:$0xff]
          %v3629 = vld [vmem:[%s3487 + $0x9a] sm:$0xff]
          %v3630 = vld [vmem:[%s3487 + $0xaa] sm:$0xff]
          %v3631 = vld [vmem:[%s3487 + $0xb2] sm:$0xff]
          %v3632 = vld [vmem:[%s3487 + $0xc2] sm:$0xff]
          %v3633 = vld [vmem:[%s3487 + $0xca] sm:$0xff]
          %v3634 = vld [vmem:[%s3487 + $0xda] sm:$0xff]
          %v3635 = vld [vmem:[%s3487 + $0xe2] sm:$0xff]
          %v3636 = vld [vmem:[%s3487 + $0xf2] sm:$0xff]
          %v3637 = vld [vmem:[%s3487 + $0xfa] sm:$0xff]
          %v3638 = vld [vmem:[%s3487 + $0x10a] sm:$0xff]
          %v3639 = vld [vmem:[%s3487 + $0x112] sm:$0xff]
          %v3640 = vld [vmem:[%s3487 + $0x122] sm:$0xff]
          %v3641 = vld [vmem:[%s3487 + $0x12a] sm:$0xff]
          %v3642 = vld [vmem:[%s3487 + $0x13a] sm:$0xff]
          %v3643 = vld [vmem:[%s3487 + $0x142] sm:$0xff]
          %v3644 = vld [vmem:[%s3487 + $0x152] sm:$0xff]
          %v3645 = vld [vmem:[%s3487 + $0x15a] sm:$0xff]
          %v3646 = vld [vmem:[%s3487 + $0x16a] sm:$0xff]
          %v3647 = vld [vmem:[%s3487 + $0x172] sm:$0xff]
          %3648 = vst [vmem:[#allocation4 + $0x40] sm:$0xff] %v3616
          %3649 = vst [vmem:[#allocation4 + $0x88] sm:$0xff] %v3617
          %3650 = vst [vmem:[#allocation4 + $0xd0] sm:$0xff] %v3618
          %3651 = vst [vmem:[#allocation4 + $0x118] sm:$0xff] %v3619
          %3652 = vst [vmem:[#allocation4 + $0x160] sm:$0xff] %v3620
          %3653 = vst [vmem:[#allocation4 + $0x1a8] sm:$0xff] %v3621
          %3654 = vst [vmem:[#allocation4 + $0x1f0] sm:$0xff] %v3622
          %3655 = vst [vmem:[#allocation4 + $0x238] sm:$0xff] %v3623
          %3656 = vst [vmem:[#allocation4 + $0x280] sm:$0xff] %v3624
          %3657 = vst [vmem:[#allocation4 + $0x2c8] sm:$0xff] %v3625
          %3658 = vst [vmem:[#allocation4 + $0x310] sm:$0xff] %v3626
          %3659 = vst [vmem:[#allocation4 + $0x358] sm:$0xff] %v3627
          %3660 = vst [vmem:[#allocation4 + $0x3a0] sm:$0xff] %v3628
          %3661 = vst [vmem:[#allocation4 + $0x3e8] sm:$0xff] %v3629
          %3662 = vst [vmem:[#allocation4 + $0x430] sm:$0xff] %v3630
          %3663 = vst [vmem:[#allocation4 + $0x478] sm:$0xff] %v3631
          %3664 = vst [vmem:[#allocation4 + $0x4c0] sm:$0xff] %v3632
          %3665 = vst [vmem:[#allocation4 + $0x508] sm:$0xff] %v3633
          %3666 = vst [vmem:[#allocation4 + $0x550] sm:$0xff] %v3634
          %3667 = vst [vmem:[#allocation4 + $0x598] sm:$0xff] %v3635
          %3668 = vst [vmem:[#allocation4 + $0x5e0] sm:$0xff] %v3636
          %3669 = vst [vmem:[#allocation4 + $0x628] sm:$0xff] %v3637
          %3670 = vst [vmem:[#allocation4 + $0x670] sm:$0xff] %v3638
          %3671 = vst [vmem:[#allocation4 + $0x6b8] sm:$0xff] %v3639
          %3672 = vst [vmem:[#allocation4 + $0x700] sm:$0xff] %v3640
          %3673 = vst [vmem:[#allocation4 + $0x748] sm:$0xff] %v3641
          %3674 = vst [vmem:[#allocation4 + $0x790] sm:$0xff] %v3642
          %3675 = vst [vmem:[#allocation4 + $0x7d8] sm:$0xff] %v3643
          %3676 = vst [vmem:[#allocation4 + $0x820] sm:$0xff] %v3644
          %3677 = vst [vmem:[#allocation4 + $0x868] sm:$0xff] %v3645
          %3678 = vst [vmem:[#allocation4 + $0x8b0] sm:$0xff] %v3646
          %3679 = vst [vmem:[#allocation4 + $0x8f8] sm:$0xff] %v3647
        $region56: #{tpu_custom_call.1} parent=47 // pred_fallthru
          _
        %v3680 = vld [vmem:[#allocation4] sm:$0xff]
        %v3681 = vld [vmem:[#allocation4 + $0x8] sm:$0xff]
        %v3682 = vld [vmem:[#allocation4 + $0x10] sm:$0xff]
        %v3683 = vld [vmem:[#allocation4 + $0x18] sm:$0xff]
        %v3684 = vld [vmem:[#allocation4 + $0x20] sm:$0xff]
        %v3685 = vld [vmem:[#allocation4 + $0x28] sm:$0xff]
        %v3686 = vld [vmem:[#allocation4 + $0x30] sm:$0xff]
        %v3687 = vld [vmem:[#allocation4 + $0x38] sm:$0xff]
        %v3688 = vld [vmem:[#allocation4 + $0x40] sm:$0xff]
        %v3689 = vld [vmem:[#allocation4 + $0x48] sm:$0xff]
        %v3690 = vld [vmem:[#allocation4 + $0x50] sm:$0xff]
        %v3691 = vld [vmem:[#allocation4 + $0x58] sm:$0xff]
        %v3692 = vld [vmem:[#allocation4 + $0x60] sm:$0xff]
        %v3693 = vld [vmem:[#allocation4 + $0x68] sm:$0xff]
        %v3694 = vld [vmem:[#allocation4 + $0x70] sm:$0xff]
        %v3695 = vld [vmem:[#allocation4 + $0x78] sm:$0xff]
        %v3696 = vld [vmem:[#allocation4 + $0x80] sm:$0xff]
        %v3697 = vld [vmem:[#allocation4 + $0x88] sm:$0xff]
        %v3698 = vld [vmem:[#allocation4 + $0x90] sm:$0xff]
        %v3699 = vld [vmem:[#allocation4 + $0x98] sm:$0xff]
        %v3700 = vld [vmem:[#allocation4 + $0xa0] sm:$0xff]
        %v3701 = vld [vmem:[#allocation4 + $0xa8] sm:$0xff]
        %v3702 = vld [vmem:[#allocation4 + $0xb0] sm:$0xff]
        %v3703 = vld [vmem:[#allocation4 + $0xb8] sm:$0xff]
        %v3704 = vld [vmem:[#allocation4 + $0xc0] sm:$0xff]
        %v3705 = vld [vmem:[#allocation4 + $0xc8] sm:$0xff]
        %v3706 = vld [vmem:[#allocation4 + $0xd0] sm:$0xff]
        %v3707 = vld [vmem:[#allocation4 + $0xd8] sm:$0xff]
        %v3708 = vld [vmem:[#allocation4 + $0xe0] sm:$0xff]
        %v3709 = vld [vmem:[#allocation4 + $0xe8] sm:$0xff]
        %v3710 = vld [vmem:[#allocation4 + $0xf0] sm:$0xff]
        %v3711 = vld [vmem:[#allocation4 + $0xf8] sm:$0xff]
        %v3712 = vld [vmem:[#allocation4 + $0x100] sm:$0xff]
        %v3713 = vld [vmem:[#allocation4 + $0x108] sm:$0xff]
        %v3714 = vld [vmem:[#allocation4 + $0x110] sm:$0xff]
        %v3715 = vld [vmem:[#allocation4 + $0x118] sm:$0xff]
        %v3716 = vld [vmem:[#allocation4 + $0x120] sm:$0xff]
        %v3717 = vld [vmem:[#allocation4 + $0x128] sm:$0xff]
        %v3718 = vld [vmem:[#allocation4 + $0x130] sm:$0xff]
        %v3719 = vld [vmem:[#allocation4 + $0x138] sm:$0xff]
        %v3720 = vld [vmem:[#allocation4 + $0x140] sm:$0xff]
        %v3721 = vld [vmem:[#allocation4 + $0x148] sm:$0xff]
        %v3722 = vld [vmem:[#allocation4 + $0x150] sm:$0xff]
        %v3723 = vld [vmem:[#allocation4 + $0x158] sm:$0xff]
        %v3724 = vld [vmem:[#allocation4 + $0x160] sm:$0xff]
        %v3725 = vld [vmem:[#allocation4 + $0x168] sm:$0xff]
        %v3726 = vld [vmem:[#allocation4 + $0x170] sm:$0xff]
        %v3727 = vld [vmem:[#allocation4 + $0x178] sm:$0xff]
        %v3728 = vld [vmem:[#allocation4 + $0x180] sm:$0xff]
        %v3729 = vld [vmem:[#allocation4 + $0x188] sm:$0xff]
        %v3730 = vld [vmem:[#allocation4 + $0x190] sm:$0xff]
        %v3731 = vld [vmem:[#allocation4 + $0x198] sm:$0xff]
        %v3732 = vld [vmem:[#allocation4 + $0x1a0] sm:$0xff]
        %v3733 = vld [vmem:[#allocation4 + $0x1a8] sm:$0xff]
        %v3734 = vld [vmem:[#allocation4 + $0x1b0] sm:$0xff]
        %v3735 = vld [vmem:[#allocation4 + $0x1b8] sm:$0xff]
        %v3736 = vld [vmem:[#allocation4 + $0x1c0] sm:$0xff]
        %v3737 = vld [vmem:[#allocation4 + $0x1c8] sm:$0xff]
        %v3738 = vld [vmem:[#allocation4 + $0x1d0] sm:$0xff]
        %v3739 = vld [vmem:[#allocation4 + $0x1d8] sm:$0xff]
        %v3740 = vld [vmem:[#allocation4 + $0x1e0] sm:$0xff]
        %v3741 = vld [vmem:[#allocation4 + $0x1e8] sm:$0xff]
        %v3742 = vld [vmem:[#allocation4 + $0x1f0] sm:$0xff]
        %v3743 = vld [vmem:[#allocation4 + $0x1f8] sm:$0xff]
        %v3744 = vld [vmem:[#allocation4 + $0x200] sm:$0xff]
        %v3745 = vld [vmem:[#allocation4 + $0x208] sm:$0xff]
        %v3746 = vld [vmem:[#allocation4 + $0x210] sm:$0xff]
        %v3747 = vld [vmem:[#allocation4 + $0x218] sm:$0xff]
        %v3748 = vld [vmem:[#allocation4 + $0x220] sm:$0xff]
        %v3749 = vld [vmem:[#allocation4 + $0x228] sm:$0xff]
        %v3750 = vld [vmem:[#allocation4 + $0x230] sm:$0xff]
        %v3751 = vld [vmem:[#allocation4 + $0x238] sm:$0xff]
        %v3752 = vld [vmem:[#allocation4 + $0x240] sm:$0xff]
        %v3753 = vld [vmem:[#allocation4 + $0x248] sm:$0xff]
        %v3754 = vld [vmem:[#allocation4 + $0x250] sm:$0xff]
        %v3755 = vld [vmem:[#allocation4 + $0x258] sm:$0xff]
        %v3756 = vld [vmem:[#allocation4 + $0x260] sm:$0xff]
        %v3757 = vld [vmem:[#allocation4 + $0x268] sm:$0xff]
        %v3758 = vld [vmem:[#allocation4 + $0x270] sm:$0xff]
        %v3759 = vld [vmem:[#allocation4 + $0x278] sm:$0xff]
        %v3760 = vld [vmem:[#allocation4 + $0x280] sm:$0xff]
        %v3761 = vld [vmem:[#allocation4 + $0x288] sm:$0xff]
        %v3762 = vld [vmem:[#allocation4 + $0x290] sm:$0xff]
        %v3763 = vld [vmem:[#allocation4 + $0x298] sm:$0xff]
        %v3764 = vld [vmem:[#allocation4 + $0x2a0] sm:$0xff]
        %v3765 = vld [vmem:[#allocation4 + $0x2a8] sm:$0xff]
        %v3766 = vld [vmem:[#allocation4 + $0x2b0] sm:$0xff]
        %v3767 = vld [vmem:[#allocation4 + $0x2b8] sm:$0xff]
        %v3768 = vld [vmem:[#allocation4 + $0x2c0] sm:$0xff]
        %v3769 = vld [vmem:[#allocation4 + $0x2c8] sm:$0xff]
        %v3770 = vld [vmem:[#allocation4 + $0x2d0] sm:$0xff]
        %v3771 = vld [vmem:[#allocation4 + $0x2d8] sm:$0xff]
        %v3772 = vld [vmem:[#allocation4 + $0x2e0] sm:$0xff]
        %v3773 = vld [vmem:[#allocation4 + $0x2e8] sm:$0xff]
        %v3774 = vld [vmem:[#allocation4 + $0x2f0] sm:$0xff]
        %v3775 = vld [vmem:[#allocation4 + $0x2f8] sm:$0xff]
        %v3776 = vld [vmem:[#allocation4 + $0x300] sm:$0xff]
        %v3777 = vld [vmem:[#allocation4 + $0x308] sm:$0xff]
        %v3778 = vld [vmem:[#allocation4 + $0x310] sm:$0xff]
        %v3779 = vld [vmem:[#allocation4 + $0x318] sm:$0xff]
        %v3780 = vld [vmem:[#allocation4 + $0x320] sm:$0xff]
        %v3781 = vld [vmem:[#allocation4 + $0x328] sm:$0xff]
        %v3782 = vld [vmem:[#allocation4 + $0x330] sm:$0xff]
        %v3783 = vld [vmem:[#allocation4 + $0x338] sm:$0xff]
        %v3784 = vld [vmem:[#allocation4 + $0x340] sm:$0xff]
        %v3785 = vld [vmem:[#allocation4 + $0x348] sm:$0xff]
        %v3786 = vld [vmem:[#allocation4 + $0x350] sm:$0xff]
        %v3787 = vld [vmem:[#allocation4 + $0x358] sm:$0xff]
        %v3788 = vld [vmem:[#allocation4 + $0x360] sm:$0xff]
        %v3789 = vld [vmem:[#allocation4 + $0x368] sm:$0xff]
        %v3790 = vld [vmem:[#allocation4 + $0x370] sm:$0xff]
        %v3791 = vld [vmem:[#allocation4 + $0x378] sm:$0xff]
        %v3792 = vld [vmem:[#allocation4 + $0x380] sm:$0xff]
        %v3793 = vld [vmem:[#allocation4 + $0x388] sm:$0xff]
        %v3794 = vld [vmem:[#allocation4 + $0x390] sm:$0xff]
        %v3795 = vld [vmem:[#allocation4 + $0x398] sm:$0xff]
        %v3796 = vld [vmem:[#allocation4 + $0x3a0] sm:$0xff]
        %v3797 = vld [vmem:[#allocation4 + $0x3a8] sm:$0xff]
        %v3798 = vld [vmem:[#allocation4 + $0x3b0] sm:$0xff]
        %v3799 = vld [vmem:[#allocation4 + $0x3b8] sm:$0xff]
        %v3800 = vld [vmem:[#allocation4 + $0x3c0] sm:$0xff]
        %v3801 = vld [vmem:[#allocation4 + $0x3c8] sm:$0xff]
        %v3802 = vld [vmem:[#allocation4 + $0x3d0] sm:$0xff]
        %v3803 = vld [vmem:[#allocation4 + $0x3d8] sm:$0xff]
        %v3804 = vld [vmem:[#allocation4 + $0x3e0] sm:$0xff]
        %v3805 = vld [vmem:[#allocation4 + $0x3e8] sm:$0xff]
        %v3806 = vld [vmem:[#allocation4 + $0x3f0] sm:$0xff]
        %v3807 = vld [vmem:[#allocation4 + $0x3f8] sm:$0xff]
        %v3808 = vld [vmem:[#allocation4 + $0x400] sm:$0xff]
        %v3809 = vld [vmem:[#allocation4 + $0x408] sm:$0xff]
        %v3810 = vld [vmem:[#allocation4 + $0x410] sm:$0xff]
        %v3811 = vld [vmem:[#allocation4 + $0x418] sm:$0xff]
        %v3812 = vld [vmem:[#allocation4 + $0x420] sm:$0xff]
        %v3813 = vld [vmem:[#allocation4 + $0x428] sm:$0xff]
        %v3814 = vld [vmem:[#allocation4 + $0x430] sm:$0xff]
        %v3815 = vld [vmem:[#allocation4 + $0x438] sm:$0xff]
        %v3816 = vld [vmem:[#allocation4 + $0x440] sm:$0xff]
        %v3817 = vld [vmem:[#allocation4 + $0x448] sm:$0xff]
        %v3818 = vld [vmem:[#allocation4 + $0x450] sm:$0xff]
        %v3819 = vld [vmem:[#allocation4 + $0x458] sm:$0xff]
        %v3820 = vld [vmem:[#allocation4 + $0x460] sm:$0xff]
        %v3821 = vld [vmem:[#allocation4 + $0x468] sm:$0xff]
        %v3822 = vld [vmem:[#allocation4 + $0x470] sm:$0xff]
        %v3823 = vld [vmem:[#allocation4 + $0x478] sm:$0xff]
        %v3824 = vld [vmem:[#allocation4 + $0x480] sm:$0xff]
        %v3825 = vld [vmem:[#allocation4 + $0x488] sm:$0xff]
        %v3826 = vld [vmem:[#allocation4 + $0x490] sm:$0xff]
        %v3827 = vld [vmem:[#allocation4 + $0x498] sm:$0xff]
        %v3828 = vld [vmem:[#allocation4 + $0x4a0] sm:$0xff]
        %v3829 = vld [vmem:[#allocation4 + $0x4a8] sm:$0xff]
        %v3830 = vld [vmem:[#allocation4 + $0x4b0] sm:$0xff]
        %v3831 = vld [vmem:[#allocation4 + $0x4b8] sm:$0xff]
        %v3832 = vld [vmem:[#allocation4 + $0x4c0] sm:$0xff]
        %v3833 = vld [vmem:[#allocation4 + $0x4c8] sm:$0xff]
        %v3834 = vld [vmem:[#allocation4 + $0x4d0] sm:$0xff]
        %v3835 = vld [vmem:[#allocation4 + $0x4d8] sm:$0xff]
        %v3836 = vld [vmem:[#allocation4 + $0x4e0] sm:$0xff]
        %v3837 = vld [vmem:[#allocation4 + $0x4e8] sm:$0xff]
        %v3838 = vld [vmem:[#allocation4 + $0x4f0] sm:$0xff]
        %v3839 = vld [vmem:[#allocation4 + $0x4f8] sm:$0xff]
        %v3840 = vld [vmem:[#allocation4 + $0x500] sm:$0xff]
        %v3841 = vld [vmem:[#allocation4 + $0x508] sm:$0xff]
        %v3842 = vld [vmem:[#allocation4 + $0x510] sm:$0xff]
        %v3843 = vld [vmem:[#allocation4 + $0x518] sm:$0xff]
        %v3844 = vld [vmem:[#allocation4 + $0x520] sm:$0xff]
        %v3845 = vld [vmem:[#allocation4 + $0x528] sm:$0xff]
        %v3846 = vld [vmem:[#allocation4 + $0x530] sm:$0xff]
        %v3847 = vld [vmem:[#allocation4 + $0x538] sm:$0xff]
        %v3848 = vld [vmem:[#allocation4 + $0x540] sm:$0xff]
        %v3849 = vld [vmem:[#allocation4 + $0x548] sm:$0xff]
        %v3850 = vld [vmem:[#allocation4 + $0x550] sm:$0xff]
        %v3851 = vld [vmem:[#allocation4 + $0x558] sm:$0xff]
        %v3852 = vld [vmem:[#allocation4 + $0x560] sm:$0xff]
        %v3853 = vld [vmem:[#allocation4 + $0x568] sm:$0xff]
        %v3854 = vld [vmem:[#allocation4 + $0x570] sm:$0xff]
        %v3855 = vld [vmem:[#allocation4 + $0x578] sm:$0xff]
        %v3856 = vld [vmem:[#allocation4 + $0x580] sm:$0xff]
        %v3857 = vld [vmem:[#allocation4 + $0x588] sm:$0xff]
        %v3858 = vld [vmem:[#allocation4 + $0x590] sm:$0xff]
        %v3859 = vld [vmem:[#allocation4 + $0x598] sm:$0xff]
        %v3860 = vld [vmem:[#allocation4 + $0x5a0] sm:$0xff]
        %v3861 = vld [vmem:[#allocation4 + $0x5a8] sm:$0xff]
        %v3862 = vld [vmem:[#allocation4 + $0x5b0] sm:$0xff]
        %v3863 = vld [vmem:[#allocation4 + $0x5b8] sm:$0xff]
        %v3864 = vld [vmem:[#allocation4 + $0x5c0] sm:$0xff]
        %v3865 = vld [vmem:[#allocation4 + $0x5c8] sm:$0xff]
        %v3866 = vld [vmem:[#allocation4 + $0x5d0] sm:$0xff]
        %v3867 = vld [vmem:[#allocation4 + $0x5d8] sm:$0xff]
        %v3868 = vld [vmem:[#allocation4 + $0x5e0] sm:$0xff]
        %v3869 = vld [vmem:[#allocation4 + $0x5e8] sm:$0xff]
        %v3870 = vld [vmem:[#allocation4 + $0x5f0] sm:$0xff]
        %v3871 = vld [vmem:[#allocation4 + $0x5f8] sm:$0xff]
        %v3872 = vld [vmem:[#allocation4 + $0x600] sm:$0xff]
        %v3873 = vld [vmem:[#allocation4 + $0x608] sm:$0xff]
        %v3874 = vld [vmem:[#allocation4 + $0x610] sm:$0xff]
        %v3875 = vld [vmem:[#allocation4 + $0x618] sm:$0xff]
        %v3876 = vld [vmem:[#allocation4 + $0x620] sm:$0xff]
        %v3877 = vld [vmem:[#allocation4 + $0x628] sm:$0xff]
        %v3878 = vld [vmem:[#allocation4 + $0x630] sm:$0xff]
        %v3879 = vld [vmem:[#allocation4 + $0x638] sm:$0xff]
        %v3880 = vld [vmem:[#allocation4 + $0x640] sm:$0xff]
        %v3881 = vld [vmem:[#allocation4 + $0x648] sm:$0xff]
        %v3882 = vld [vmem:[#allocation4 + $0x650] sm:$0xff]
        %v3883 = vld [vmem:[#allocation4 + $0x658] sm:$0xff]
        %v3884 = vld [vmem:[#allocation4 + $0x660] sm:$0xff]
        %v3885 = vld [vmem:[#allocation4 + $0x668] sm:$0xff]
        %v3886 = vld [vmem:[#allocation4 + $0x670] sm:$0xff]
        %v3887 = vld [vmem:[#allocation4 + $0x678] sm:$0xff]
        %v3888 = vld [vmem:[#allocation4 + $0x680] sm:$0xff]
        %v3889 = vld [vmem:[#allocation4 + $0x688] sm:$0xff]
        %v3890 = vld [vmem:[#allocation4 + $0x690] sm:$0xff]
        %v3891 = vld [vmem:[#allocation4 + $0x698] sm:$0xff]
        %v3892 = vld [vmem:[#allocation4 + $0x6a0] sm:$0xff]
        %v3893 = vld [vmem:[#allocation4 + $0x6a8] sm:$0xff]
        %v3894 = vld [vmem:[#allocation4 + $0x6b0] sm:$0xff]
        %v3895 = vld [vmem:[#allocation4 + $0x6b8] sm:$0xff]
        %v3896 = vld [vmem:[#allocation4 + $0x6c0] sm:$0xff]
        %v3897 = vld [vmem:[#allocation4 + $0x6c8] sm:$0xff]
        %v3898 = vld [vmem:[#allocation4 + $0x6d0] sm:$0xff]
        %v3899 = vld [vmem:[#allocation4 + $0x6d8] sm:$0xff]
        %v3900 = vld [vmem:[#allocation4 + $0x6e0] sm:$0xff]
        %v3901 = vld [vmem:[#allocation4 + $0x6e8] sm:$0xff]
        %v3902 = vld [vmem:[#allocation4 + $0x6f0] sm:$0xff]
        %v3903 = vld [vmem:[#allocation4 + $0x6f8] sm:$0xff]
        %v3904 = vld [vmem:[#allocation4 + $0x700] sm:$0xff]
        %v3905 = vld [vmem:[#allocation4 + $0x708] sm:$0xff]
        %v3906 = vld [vmem:[#allocation4 + $0x710] sm:$0xff]
        %v3907 = vld [vmem:[#allocation4 + $0x718] sm:$0xff]
        %v3908 = vld [vmem:[#allocation4 + $0x720] sm:$0xff]
        %v3909 = vld [vmem:[#allocation4 + $0x728] sm:$0xff]
        %v3910 = vld [vmem:[#allocation4 + $0x730] sm:$0xff]
        %v3911 = vld [vmem:[#allocation4 + $0x738] sm:$0xff]
        %v3912 = vld [vmem:[#allocation4 + $0x740] sm:$0xff]
        %v3913 = vld [vmem:[#allocation4 + $0x748] sm:$0xff]
        %v3914 = vld [vmem:[#allocation4 + $0x750] sm:$0xff]
        %v3915 = vld [vmem:[#allocation4 + $0x758] sm:$0xff]
        %v3916 = vld [vmem:[#allocation4 + $0x760] sm:$0xff]
        %v3917 = vld [vmem:[#allocation4 + $0x768] sm:$0xff]
        %v3918 = vld [vmem:[#allocation4 + $0x770] sm:$0xff]
        %v3919 = vld [vmem:[#allocation4 + $0x778] sm:$0xff]
        %v3920 = vld [vmem:[#allocation4 + $0x780] sm:$0xff]
        %v3921 = vld [vmem:[#allocation4 + $0x788] sm:$0xff]
        %v3922 = vld [vmem:[#allocation4 + $0x790] sm:$0xff]
        %v3923 = vld [vmem:[#allocation4 + $0x798] sm:$0xff]
        %v3924 = vld [vmem:[#allocation4 + $0x7a0] sm:$0xff]
        %v3925 = vld [vmem:[#allocation4 + $0x7a8] sm:$0xff]
        %v3926 = vld [vmem:[#allocation4 + $0x7b0] sm:$0xff]
        %v3927 = vld [vmem:[#allocation4 + $0x7b8] sm:$0xff]
        %v3928 = vld [vmem:[#allocation4 + $0x7c0] sm:$0xff]
        %v3929 = vld [vmem:[#allocation4 + $0x7c8] sm:$0xff]
        %v3930 = vld [vmem:[#allocation4 + $0x7d0] sm:$0xff]
        %v3931 = vld [vmem:[#allocation4 + $0x7d8] sm:$0xff]
        %v3932 = vld [vmem:[#allocation4 + $0x7e0] sm:$0xff]
        %v3933 = vld [vmem:[#allocation4 + $0x7e8] sm:$0xff]
        %v3934 = vld [vmem:[#allocation4 + $0x7f0] sm:$0xff]
        %v3935 = vld [vmem:[#allocation4 + $0x7f8] sm:$0xff]
        %v3936 = vld [vmem:[#allocation4 + $0x800] sm:$0xff]
        %v3937 = vld [vmem:[#allocation4 + $0x808] sm:$0xff]
        %v3938 = vld [vmem:[#allocation4 + $0x810] sm:$0xff]
        %v3939 = vld [vmem:[#allocation4 + $0x818] sm:$0xff]
        %v3940 = vld [vmem:[#allocation4 + $0x820] sm:$0xff]
        %v3941 = vld [vmem:[#allocation4 + $0x828] sm:$0xff]
        %v3942 = vld [vmem:[#allocation4 + $0x830] sm:$0xff]
        %v3943 = vld [vmem:[#allocation4 + $0x838] sm:$0xff]
        %v3944 = vld [vmem:[#allocation4 + $0x840] sm:$0xff]
        %v3945 = vld [vmem:[#allocation4 + $0x848] sm:$0xff]
        %v3946 = vld [vmem:[#allocation4 + $0x850] sm:$0xff]
        %v3947 = vld [vmem:[#allocation4 + $0x858] sm:$0xff]
        %v3948 = vld [vmem:[#allocation4 + $0x860] sm:$0xff]
        %v3949 = vld [vmem:[#allocation4 + $0x868] sm:$0xff]
        %v3950 = vld [vmem:[#allocation4 + $0x870] sm:$0xff]
        %v3951 = vld [vmem:[#allocation4 + $0x878] sm:$0xff]
        %v3952 = vld [vmem:[#allocation4 + $0x880] sm:$0xff]
        %v3953 = vld [vmem:[#allocation4 + $0x888] sm:$0xff]
        %v3954 = vld [vmem:[#allocation4 + $0x890] sm:$0xff]
        %v3955 = vld [vmem:[#allocation4 + $0x898] sm:$0xff]
        %v3956 = vld [vmem:[#allocation4 + $0x8a0] sm:$0xff]
        %v3957 = vld [vmem:[#allocation4 + $0x8a8] sm:$0xff]
        %v3958 = vld [vmem:[#allocation4 + $0x8b0] sm:$0xff]
        %v3959 = vld [vmem:[#allocation4 + $0x8b8] sm:$0xff]
        %v3960 = vld [vmem:[#allocation4 + $0x8c0] sm:$0xff]
        %v3961 = vld [vmem:[#allocation4 + $0x8c8] sm:$0xff]
        %v3962 = vld [vmem:[#allocation4 + $0x8d0] sm:$0xff]
        %v3963 = vld [vmem:[#allocation4 + $0x8d8] sm:$0xff]
        %v3964 = vld [vmem:[#allocation4 + $0x8e0] sm:$0xff]
        %v3965 = vld [vmem:[#allocation4 + $0x8e8] sm:$0xff]
        %v3966 = vld [vmem:[#allocation4 + $0x8f0] sm:$0xff]
        %v3967 = vld [vmem:[#allocation4 + $0x8f8] sm:$0xff]
        %v3968 = vld [vmem:[#allocation6] sm:$0xff]
        %v3969 = vld [vmem:[#allocation6 + $0x8] sm:$0xff]
        %v3970 = vld [vmem:[#allocation6 + $0x10] sm:$0xff]
        %v3971 = vld [vmem:[#allocation6 + $0x18] sm:$0xff]
        %v3972 = vld [vmem:[#allocation6 + $0x20] sm:$0xff]
        %v3973 = vld [vmem:[#allocation6 + $0x28] sm:$0xff]
        %v3974 = vld [vmem:[#allocation6 + $0x30] sm:$0xff]
        %v3975 = vld [vmem:[#allocation6 + $0x38] sm:$0xff]
        %v3976 = vld [vmem:[#allocation6 + $0x40] sm:$0xff]
        %v3977 = vld [vmem:[#allocation6 + $0x48] sm:$0xff]
        %v3978 = vld [vmem:[#allocation6 + $0x50] sm:$0xff]
        %v3979 = vld [vmem:[#allocation6 + $0x58] sm:$0xff]
        %v3980 = vld [vmem:[#allocation6 + $0x60] sm:$0xff]
        %v3981 = vld [vmem:[#allocation6 + $0x68] sm:$0xff]
        %v3982 = vld [vmem:[#allocation6 + $0x70] sm:$0xff]
        %v3983 = vld [vmem:[#allocation6 + $0x78] sm:$0xff]
        %v3984 = vld [vmem:[#allocation6 + $0x80] sm:$0xff]
        %v3985 = vld [vmem:[#allocation6 + $0x88] sm:$0xff]
        %v3986 = vld [vmem:[#allocation6 + $0x90] sm:$0xff]
        %v3987 = vld [vmem:[#allocation6 + $0x98] sm:$0xff]
        %v3988 = vld [vmem:[#allocation6 + $0xa0] sm:$0xff]
        %v3989 = vld [vmem:[#allocation6 + $0xa8] sm:$0xff]
        %v3990 = vld [vmem:[#allocation6 + $0xb0] sm:$0xff]
        %v3991 = vld [vmem:[#allocation6 + $0xb8] sm:$0xff]
        %v3992 = vld [vmem:[#allocation6 + $0xc0] sm:$0xff]
        %v3993 = vld [vmem:[#allocation6 + $0xc8] sm:$0xff]
        %v3994 = vld [vmem:[#allocation6 + $0xd0] sm:$0xff]
        %v3995 = vld [vmem:[#allocation6 + $0xd8] sm:$0xff]
        %v3996 = vld [vmem:[#allocation6 + $0xe0] sm:$0xff]
        %v3997 = vld [vmem:[#allocation6 + $0xe8] sm:$0xff]
        %v3998 = vld [vmem:[#allocation6 + $0xf0] sm:$0xff]
        %v3999 = vld [vmem:[#allocation6 + $0xf8] sm:$0xff]
        %v4000 = vld [vmem:[#allocation6 + $0x100] sm:$0xff]
        %v4001 = vld [vmem:[#allocation6 + $0x108] sm:$0xff]
        %v4002 = vld [vmem:[#allocation6 + $0x110] sm:$0xff]
        %v4003 = vld [vmem:[#allocation6 + $0x118] sm:$0xff]
        %v4004 = vld [vmem:[#allocation6 + $0x120] sm:$0xff]
        %v4005 = vld [vmem:[#allocation6 + $0x128] sm:$0xff]
        %v4006 = vld [vmem:[#allocation6 + $0x130] sm:$0xff]
        %v4007 = vld [vmem:[#allocation6 + $0x138] sm:$0xff]
        %v4008 = vld [vmem:[#allocation6 + $0x140] sm:$0xff]
        %v4009 = vld [vmem:[#allocation6 + $0x148] sm:$0xff]
        %v4010 = vld [vmem:[#allocation6 + $0x150] sm:$0xff]
        %v4011 = vld [vmem:[#allocation6 + $0x158] sm:$0xff]
        %v4012 = vld [vmem:[#allocation6 + $0x160] sm:$0xff]
        %v4013 = vld [vmem:[#allocation6 + $0x168] sm:$0xff]
        %v4014 = vld [vmem:[#allocation6 + $0x170] sm:$0xff]
        %v4015 = vld [vmem:[#allocation6 + $0x178] sm:$0xff]
        %v4016 = vld [vmem:[#allocation6 + $0x180] sm:$0xff]
        %v4017 = vld [vmem:[#allocation6 + $0x188] sm:$0xff]
        %v4018 = vld [vmem:[#allocation6 + $0x190] sm:$0xff]
        %v4019 = vld [vmem:[#allocation6 + $0x198] sm:$0xff]
        %v4020 = vld [vmem:[#allocation6 + $0x1a0] sm:$0xff]
        %v4021 = vld [vmem:[#allocation6 + $0x1a8] sm:$0xff]
        %v4022 = vld [vmem:[#allocation6 + $0x1b0] sm:$0xff]
        %v4023 = vld [vmem:[#allocation6 + $0x1b8] sm:$0xff]
        %v4024 = vld [vmem:[#allocation6 + $0x1c0] sm:$0xff]
        %v4025 = vld [vmem:[#allocation6 + $0x1c8] sm:$0xff]
        %v4026 = vld [vmem:[#allocation6 + $0x1d0] sm:$0xff]
        %v4027 = vld [vmem:[#allocation6 + $0x1d8] sm:$0xff]
        %v4028 = vld [vmem:[#allocation6 + $0x1e0] sm:$0xff]
        %v4029 = vld [vmem:[#allocation6 + $0x1e8] sm:$0xff]
        %v4030 = vld [vmem:[#allocation6 + $0x1f0] sm:$0xff]
        %v4031 = vld [vmem:[#allocation6 + $0x1f8] sm:$0xff]
        %v4032 = vld [vmem:[#allocation6 + $0x200] sm:$0xff]
        %v4033 = vld [vmem:[#allocation6 + $0x208] sm:$0xff]
        %v4034 = vld [vmem:[#allocation6 + $0x210] sm:$0xff]
        %v4035 = vld [vmem:[#allocation6 + $0x218] sm:$0xff]
        %v4036 = vld [vmem:[#allocation6 + $0x220] sm:$0xff]
        %v4037 = vld [vmem:[#allocation6 + $0x228] sm:$0xff]
        %v4038 = vld [vmem:[#allocation6 + $0x230] sm:$0xff]
        %v4039 = vld [vmem:[#allocation6 + $0x238] sm:$0xff]
        %v4040 = vld [vmem:[#allocation6 + $0x240] sm:$0xff]
        %v4041 = vld [vmem:[#allocation6 + $0x248] sm:$0xff]
        %v4042 = vld [vmem:[#allocation6 + $0x250] sm:$0xff]
        %v4043 = vld [vmem:[#allocation6 + $0x258] sm:$0xff]
        %v4044 = vld [vmem:[#allocation6 + $0x260] sm:$0xff]
        %v4045 = vld [vmem:[#allocation6 + $0x268] sm:$0xff]
        %v4046 = vld [vmem:[#allocation6 + $0x270] sm:$0xff]
        %v4047 = vld [vmem:[#allocation6 + $0x278] sm:$0xff]
        %v4048 = vld [vmem:[#allocation6 + $0x280] sm:$0xff]
        %v4049 = vld [vmem:[#allocation6 + $0x288] sm:$0xff]
        %v4050 = vld [vmem:[#allocation6 + $0x290] sm:$0xff]
        %v4051 = vld [vmem:[#allocation6 + $0x298] sm:$0xff]
        %v4052 = vld [vmem:[#allocation6 + $0x2a0] sm:$0xff]
        %v4053 = vld [vmem:[#allocation6 + $0x2a8] sm:$0xff]
        %v4054 = vld [vmem:[#allocation6 + $0x2b0] sm:$0xff]
        %v4055 = vld [vmem:[#allocation6 + $0x2b8] sm:$0xff]
        %v4056 = vld [vmem:[#allocation6 + $0x2c0] sm:$0xff]
        %v4057 = vld [vmem:[#allocation6 + $0x2c8] sm:$0xff]
        %v4058 = vld [vmem:[#allocation6 + $0x2d0] sm:$0xff]
        %v4059 = vld [vmem:[#allocation6 + $0x2d8] sm:$0xff]
        %v4060 = vld [vmem:[#allocation6 + $0x2e0] sm:$0xff]
        %v4061 = vld [vmem:[#allocation6 + $0x2e8] sm:$0xff]
        %v4062 = vld [vmem:[#allocation6 + $0x2f0] sm:$0xff]
        %v4063 = vld [vmem:[#allocation6 + $0x2f8] sm:$0xff]
        %v4064 = vld [vmem:[#allocation6 + $0x300] sm:$0xff]
        %v4065 = vld [vmem:[#allocation6 + $0x308] sm:$0xff]
        %v4066 = vld [vmem:[#allocation6 + $0x310] sm:$0xff]
        %v4067 = vld [vmem:[#allocation6 + $0x318] sm:$0xff]
        %v4068 = vld [vmem:[#allocation6 + $0x320] sm:$0xff]
        %v4069 = vld [vmem:[#allocation6 + $0x328] sm:$0xff]
        %v4070 = vld [vmem:[#allocation6 + $0x330] sm:$0xff]
        %v4071 = vld [vmem:[#allocation6 + $0x338] sm:$0xff]
        %v4072 = vld [vmem:[#allocation6 + $0x340] sm:$0xff]
        %v4073 = vld [vmem:[#allocation6 + $0x348] sm:$0xff]
        %v4074 = vld [vmem:[#allocation6 + $0x350] sm:$0xff]
        %v4075 = vld [vmem:[#allocation6 + $0x358] sm:$0xff]
        %v4076 = vld [vmem:[#allocation6 + $0x360] sm:$0xff]
        %v4077 = vld [vmem:[#allocation6 + $0x368] sm:$0xff]
        %v4078 = vld [vmem:[#allocation6 + $0x370] sm:$0xff]
        %v4079 = vld [vmem:[#allocation6 + $0x378] sm:$0xff]
        %v4080 = vld [vmem:[#allocation6 + $0x380] sm:$0xff]
        %v4081 = vld [vmem:[#allocation6 + $0x388] sm:$0xff]
        %v4082 = vld [vmem:[#allocation6 + $0x390] sm:$0xff]
        %v4083 = vld [vmem:[#allocation6 + $0x398] sm:$0xff]
        %v4084 = vld [vmem:[#allocation6 + $0x3a0] sm:$0xff]
        %v4085 = vld [vmem:[#allocation6 + $0x3a8] sm:$0xff]
        %v4086 = vld [vmem:[#allocation6 + $0x3b0] sm:$0xff]
        %v4087 = vld [vmem:[#allocation6 + $0x3b8] sm:$0xff]
        %v4088 = vld [vmem:[#allocation6 + $0x3c0] sm:$0xff]
        %v4089 = vld [vmem:[#allocation6 + $0x3c8] sm:$0xff]
        %v4090 = vld [vmem:[#allocation6 + $0x3d0] sm:$0xff]
        %v4091 = vld [vmem:[#allocation6 + $0x3d8] sm:$0xff]
        %v4092 = vld [vmem:[#allocation6 + $0x3e0] sm:$0xff]
        %v4093 = vld [vmem:[#allocation6 + $0x3e8] sm:$0xff]
        %v4094 = vld [vmem:[#allocation6 + $0x3f0] sm:$0xff]
        %v4095 = vld [vmem:[#allocation6 + $0x3f8] sm:$0xff]
        %v4096 = vld [vmem:[#allocation6 + $0x400] sm:$0xff]
        %v4097 = vld [vmem:[#allocation6 + $0x408] sm:$0xff]
        %v4098 = vld [vmem:[#allocation6 + $0x410] sm:$0xff]
        %v4099 = vld [vmem:[#allocation6 + $0x418] sm:$0xff]
        %v4100 = vld [vmem:[#allocation6 + $0x420] sm:$0xff]
        %v4101 = vld [vmem:[#allocation6 + $0x428] sm:$0xff]
        %v4102 = vld [vmem:[#allocation6 + $0x430] sm:$0xff]
        %v4103 = vld [vmem:[#allocation6 + $0x438] sm:$0xff]
        %v4104 = vld [vmem:[#allocation6 + $0x440] sm:$0xff]
        %v4105 = vld [vmem:[#allocation6 + $0x448] sm:$0xff]
        %v4106 = vld [vmem:[#allocation6 + $0x450] sm:$0xff]
        %v4107 = vld [vmem:[#allocation6 + $0x458] sm:$0xff]
        %v4108 = vld [vmem:[#allocation6 + $0x460] sm:$0xff]
        %v4109 = vld [vmem:[#allocation6 + $0x468] sm:$0xff]
        %v4110 = vld [vmem:[#allocation6 + $0x470] sm:$0xff]
        %v4111 = vld [vmem:[#allocation6 + $0x478] sm:$0xff]
        %v4112 = vld [vmem:[%s349] sm:$0xff]
        %v4113 = vld [vmem:[%s349 + $0x8] sm:$0xff]
        %v4114 = vld [vmem:[%s349 + $0x10] sm:$0xff]
        %v4115 = vld [vmem:[%s349 + $0x18] sm:$0xff]
        %v4116 = vld [vmem:[%s349 + $0x20] sm:$0xff]
        %v4117 = vld [vmem:[%s349 + $0x28] sm:$0xff]
        %v4118 = vld [vmem:[%s349 + $0x30] sm:$0xff]
        %v4119 = vld [vmem:[%s349 + $0x38] sm:$0xff]
        %v4120 = vld [vmem:[%s349 + $0x40] sm:$0xff]
        %v4121 = vld [vmem:[%s349 + $0x48] sm:$0xff]
        %v4122 = vld [vmem:[%s349 + $0x50] sm:$0xff]
        %v4123 = vld [vmem:[%s349 + $0x58] sm:$0xff]
        %v4124 = vld [vmem:[%s349 + $0x60] sm:$0xff]
        %v4125 = vld [vmem:[%s349 + $0x68] sm:$0xff]
        %v4126 = vld [vmem:[%s349 + $0x70] sm:$0xff]
        %v4127 = vld [vmem:[%s349 + $0x78] sm:$0xff]
        %v4128 = vld [vmem:[%s349 + $0x80] sm:$0xff]
        %v4129 = vld [vmem:[%s349 + $0x88] sm:$0xff]
        %v4130 = vld [vmem:[%s349 + $0x90] sm:$0xff]
        %v4131 = vld [vmem:[%s349 + $0x98] sm:$0xff]
        %v4132 = vld [vmem:[%s349 + $0xa0] sm:$0xff]
        %v4133 = vld [vmem:[%s349 + $0xa8] sm:$0xff]
        %v4134 = vld [vmem:[%s349 + $0xb0] sm:$0xff]
        %v4135 = vld [vmem:[%s349 + $0xb8] sm:$0xff]
        %v4136 = vld [vmem:[%s349 + $0xc0] sm:$0xff]
        %v4137 = vld [vmem:[%s349 + $0xc8] sm:$0xff]
        %v4138 = vld [vmem:[%s349 + $0xd0] sm:$0xff]
        %v4139 = vld [vmem:[%s349 + $0xd8] sm:$0xff]
        %v4140 = vld [vmem:[%s349 + $0xe0] sm:$0xff]
        %v4141 = vld [vmem:[%s349 + $0xe8] sm:$0xff]
        %v4142 = vld [vmem:[%s349 + $0xf0] sm:$0xff]
        %v4143 = vld [vmem:[%s349 + $0xf8] sm:$0xff]
        %v4144 = vld [vmem:[%s356] sm:$0xf]
        %vm4145 = vcmask 31744
        %v4147 = vsel %vm4145, %v4112, 0
        %v4150 = vsel %vm4145, %v4113, 0
        %v4153 = vsel %vm4145, %v4114, 0
        %v4156 = vsel %vm4145, %v4115, 0
        %v4159 = vsel %vm4145, %v4116, 0
        %v4162 = vsel %vm4145, %v4117, 0
        %v4165 = vsel %vm4145, %v4118, 0
        %v4168 = vsel %vm4145, %v4119, 0
        %v4171 = vsel %vm4145, %v4120, 0
        %v4174 = vsel %vm4145, %v4121, 0
        %v4177 = vsel %vm4145, %v4122, 0
        %v4180 = vsel %vm4145, %v4123, 0
        %v4183 = vsel %vm4145, %v4124, 0
        %v4186 = vsel %vm4145, %v4125, 0
        %v4189 = vsel %vm4145, %v4126, 0
        %v4192 = vsel %vm4145, %v4127, 0
        %v4195 = vsel %vm4145, %v4128, 0
        %v4198 = vsel %vm4145, %v4129, 0
        %v4201 = vsel %vm4145, %v4130, 0
        %v4204 = vsel %vm4145, %v4131, 0
        %v4207 = vsel %vm4145, %v4132, 0
        %v4210 = vsel %vm4145, %v4133, 0
        %v4213 = vsel %vm4145, %v4134, 0
        %v4216 = vsel %vm4145, %v4135, 0
        %v4219 = vsel %vm4145, %v4136, 0
        %v4222 = vsel %vm4145, %v4137, 0
        %v4225 = vsel %vm4145, %v4138, 0
        %v4228 = vsel %vm4145, %v4139, 0
        %v4231 = vsel %vm4145, %v4140, 0
        %v4234 = vsel %vm4145, %v4141, 0
        %v4237 = vsel %vm4145, %v4142, 0
        %v4240 = vsel %vm4145, %v4143, 0
        %vm4242 = vcmask 1043456
        %v4244 = vsel %vm4242, %v4144, 0
        %4246 = vmatpush.msra.mxu0 0.0
        %4247 = vmatpush.msra.mxu0 0.0
        %4248 = vmatpush.msra.mxu0 0.0
        %4249 = vmatpush.msra.mxu0 0.0
        %4250 = vmatpush.msra.mxu0 0.0
        %4251 = vmatpush.msra.mxu0 0.0
        %4252 = vmatpush.msra.mxu0 0.0
        %4253 = vmatpush.msra.mxu0 0.0
        %4254 = vmatpush.msra.mxu0 0.0
        %4255 = vmatpush.msra.mxu0 0.0
        %4256 = vmatpush.msra.mxu0 0.0
        %4257 = vmatpush.msra.mxu0 0.0
        %4258 = vmatpush.msra.mxu0 0.0
        %4259 = vmatpush.msra.mxu0 0.0
        %4260 = vmatpush.msra.mxu0 0.0
        %4261 = vmatpush.msra.mxu0 %v4244
        %4262 = vmatmul.f32.gmra.mxu0 %v4147
        %v4263 = vpop.f32.mrf.mxu0
        %v4264 = vadd.f32 0.0, %v4263
        %4265 = vmatmul.f32.gmra.mxu0 %v4150
        %v4266 = vpop.f32.mrf.mxu0
        %v4267 = vadd.f32 0.0, %v4266
        %4268 = vmatmul.f32.gmra.mxu0 %v4153
        %v4269 = vpop.f32.mrf.mxu0
        %v4270 = vadd.f32 0.0, %v4269
        %4271 = vmatmul.f32.gmra.mxu0 %v4156
        %v4272 = vpop.f32.mrf.mxu0
        %v4273 = vadd.f32 0.0, %v4272
        %4274 = vmatmul.f32.gmra.mxu0 %v4159
        %v4275 = vpop.f32.mrf.mxu0
        %v4276 = vadd.f32 0.0, %v4275
        %4277 = vmatmul.f32.gmra.mxu0 %v4162
        %v4278 = vpop.f32.mrf.mxu0
        %v4279 = vadd.f32 0.0, %v4278
        %4280 = vmatmul.f32.gmra.mxu0 %v4165
        %v4281 = vpop.f32.mrf.mxu0
        %v4282 = vadd.f32 0.0, %v4281
        %4283 = vmatmul.f32.gmra.mxu0 %v4168
        %v4284 = vpop.f32.mrf.mxu0
        %v4285 = vadd.f32 0.0, %v4284
        %4286 = vmatmul.f32.gmra.mxu0 %v4171
        %v4287 = vpop.f32.mrf.mxu0
        %v4288 = vadd.f32 0.0, %v4287
        %4289 = vmatmul.f32.gmra.mxu0 %v4174
        %v4290 = vpop.f32.mrf.mxu0
        %v4291 = vadd.f32 0.0, %v4290
        %4292 = vmatmul.f32.gmra.mxu0 %v4177
        %v4293 = vpop.f32.mrf.mxu0
        %v4294 = vadd.f32 0.0, %v4293
        %4295 = vmatmul.f32.gmra.mxu0 %v4180
        %v4296 = vpop.f32.mrf.mxu0
        %v4297 = vadd.f32 0.0, %v4296
        %4298 = vmatmul.f32.gmra.mxu0 %v4183
        %v4299 = vpop.f32.mrf.mxu0
        %v4300 = vadd.f32 0.0, %v4299
        %4301 = vmatmul.f32.gmra.mxu0 %v4186
        %v4302 = vpop.f32.mrf.mxu0
        %v4303 = vadd.f32 0.0, %v4302
        %4304 = vmatmul.f32.gmra.mxu0 %v4189
        %v4305 = vpop.f32.mrf.mxu0
        %v4306 = vadd.f32 0.0, %v4305
        %4307 = vmatmul.f32.gmra.mxu0 %v4192
        %v4308 = vpop.f32.mrf.mxu0
        %v4309 = vadd.f32 0.0, %v4308
        %4310 = vmatmul.f32.gmra.mxu0 %v4195
        %v4311 = vpop.f32.mrf.mxu0
        %v4312 = vadd.f32 0.0, %v4311
        %4313 = vmatmul.f32.gmra.mxu0 %v4198
        %v4314 = vpop.f32.mrf.mxu0
        %v4315 = vadd.f32 0.0, %v4314
        %4316 = vmatmul.f32.gmra.mxu0 %v4201
        %v4317 = vpop.f32.mrf.mxu0
        %v4318 = vadd.f32 0.0, %v4317
        %4319 = vmatmul.f32.gmra.mxu0 %v4204
        %v4320 = vpop.f32.mrf.mxu0
        %v4321 = vadd.f32 0.0, %v4320
        %4322 = vmatmul.f32.gmra.mxu0 %v4207
        %v4323 = vpop.f32.mrf.mxu0
        %v4324 = vadd.f32 0.0, %v4323
        %4325 = vmatmul.f32.gmra.mxu0 %v4210
        %v4326 = vpop.f32.mrf.mxu0
        %v4327 = vadd.f32 0.0, %v4326
        %4328 = vmatmul.f32.gmra.mxu0 %v4213
        %v4329 = vpop.f32.mrf.mxu0
        %v4330 = vadd.f32 0.0, %v4329
        %4331 = vmatmul.f32.gmra.mxu0 %v4216
        %v4332 = vpop.f32.mrf.mxu0
        %v4333 = vadd.f32 0.0, %v4332
        %4334 = vmatmul.f32.gmra.mxu0 %v4219
        %v4335 = vpop.f32.mrf.mxu0
        %v4336 = vadd.f32 0.0, %v4335
        %4337 = vmatmul.f32.gmra.mxu0 %v4222
        %v4338 = vpop.f32.mrf.mxu0
        %v4339 = vadd.f32 0.0, %v4338
        %4340 = vmatmul.f32.gmra.mxu0 %v4225
        %v4341 = vpop.f32.mrf.mxu0
        %v4342 = vadd.f32 0.0, %v4341
        %4343 = vmatmul.f32.gmra.mxu0 %v4228
        %v4344 = vpop.f32.mrf.mxu0
        %v4345 = vadd.f32 0.0, %v4344
        %4346 = vmatmul.f32.gmra.mxu0 %v4231
        %v4347 = vpop.f32.mrf.mxu0
        %v4348 = vadd.f32 0.0, %v4347
        %4349 = vmatmul.f32.gmra.mxu0 %v4234
        %v4350 = vpop.f32.mrf.mxu0
        %v4351 = vadd.f32 0.0, %v4350
        %4352 = vmatmul.f32.gmra.mxu0 %v4237
        %v4353 = vpop.f32.mrf.mxu0
        %v4354 = vadd.f32 0.0, %v4353
        %4355 = vmatmul.f32.gmra.mxu0 %v4240
        %v4356 = vpop.f32.mrf.mxu0
        %v4357 = vadd.f32 0.0, %v4356
        %4358 = vdwg.mxu0
        %4359 = vmatpush.msra.mxu0 %v3983
        %4360 = vmatpush.msra.mxu0 %v3982
        %4361 = vmatpush.msra.mxu0 %v3981
        %4362 = vmatpush.msra.mxu0 %v3980
        %4363 = vmatpush.msra.mxu0 %v3979
        %4364 = vmatpush.msra.mxu0 %v3978
        %4365 = vmatpush.msra.mxu0 %v3977
        %4366 = vmatpush.msra.mxu0 %v3976
        %4367 = vmatpush.msra.mxu0 %v3975
        %4368 = vmatpush.msra.mxu0 %v3974
        %4369 = vmatpush.msra.mxu0 %v3973
        %4370 = vmatpush.msra.mxu0 %v3972
        %4371 = vmatpush.msra.mxu0 %v3971
        %4372 = vmatpush.msra.mxu0 %v3970
        %4373 = vmatpush.msra.mxu0 %v3969
        %4374 = vmatpush.msra.mxu0 %v3968
        %4375 = vmatmul.f32.gmra.mxu0 %v3680
        %v4376 = vpop.f32.mrf.mxu0
        %v4377 = vadd.f32 %v4264, %v4376
        %4378 = vmatmul.f32.gmra.mxu0 %v3689
        %v4379 = vpop.f32.mrf.mxu0
        %v4380 = vadd.f32 %v4267, %v4379
        %4381 = vmatmul.f32.gmra.mxu0 %v3698
        %v4382 = vpop.f32.mrf.mxu0
        %v4383 = vadd.f32 %v4270, %v4382
        %4384 = vmatmul.f32.gmra.mxu0 %v3707
        %v4385 = vpop.f32.mrf.mxu0
        %v4386 = vadd.f32 %v4273, %v4385
        %4387 = vmatmul.f32.gmra.mxu0 %v3716
        %v4388 = vpop.f32.mrf.mxu0
        %v4389 = vadd.f32 %v4276, %v4388
        %4390 = vmatmul.f32.gmra.mxu0 %v3725
        %v4391 = vpop.f32.mrf.mxu0
        %v4392 = vadd.f32 %v4279, %v4391
        %4393 = vmatmul.f32.gmra.mxu0 %v3734
        %v4394 = vpop.f32.mrf.mxu0
        %v4395 = vadd.f32 %v4282, %v4394
        %4396 = vmatmul.f32.gmra.mxu0 %v3743
        %v4397 = vpop.f32.mrf.mxu0
        %v4398 = vadd.f32 %v4285, %v4397
        %4399 = vmatmul.f32.gmra.mxu0 %v3752
        %v4400 = vpop.f32.mrf.mxu0
        %v4401 = vadd.f32 %v4288, %v4400
        %4402 = vmatmul.f32.gmra.mxu0 %v3761
        %v4403 = vpop.f32.mrf.mxu0
        %v4404 = vadd.f32 %v4291, %v4403
        %4405 = vmatmul.f32.gmra.mxu0 %v3770
        %v4406 = vpop.f32.mrf.mxu0
        %v4407 = vadd.f32 %v4294, %v4406
        %4408 = vmatmul.f32.gmra.mxu0 %v3779
        %v4409 = vpop.f32.mrf.mxu0
        %v4410 = vadd.f32 %v4297, %v4409
        %4411 = vmatmul.f32.gmra.mxu0 %v3788
        %v4412 = vpop.f32.mrf.mxu0
        %v4413 = vadd.f32 %v4300, %v4412
        %4414 = vmatmul.f32.gmra.mxu0 %v3797
        %v4415 = vpop.f32.mrf.mxu0
        %v4416 = vadd.f32 %v4303, %v4415
        %4417 = vmatmul.f32.gmra.mxu0 %v3806
        %v4418 = vpop.f32.mrf.mxu0
        %v4419 = vadd.f32 %v4306, %v4418
        %4420 = vmatmul.f32.gmra.mxu0 %v3815
        %v4421 = vpop.f32.mrf.mxu0
        %v4422 = vadd.f32 %v4309, %v4421
        %4423 = vmatmul.f32.gmra.mxu0 %v3824
        %v4424 = vpop.f32.mrf.mxu0
        %v4425 = vadd.f32 %v4312, %v4424
        %4426 = vmatmul.f32.gmra.mxu0 %v3833
        %v4427 = vpop.f32.mrf.mxu0
        %v4428 = vadd.f32 %v4315, %v4427
        %4429 = vmatmul.f32.gmra.mxu0 %v3842
        %v4430 = vpop.f32.mrf.mxu0
        %v4431 = vadd.f32 %v4318, %v4430
        %4432 = vmatmul.f32.gmra.mxu0 %v3851
        %v4433 = vpop.f32.mrf.mxu0
        %v4434 = vadd.f32 %v4321, %v4433
        %4435 = vmatmul.f32.gmra.mxu0 %v3860
        %v4436 = vpop.f32.mrf.mxu0
        %v4437 = vadd.f32 %v4324, %v4436
        %4438 = vmatmul.f32.gmra.mxu0 %v3869
        %v4439 = vpop.f32.mrf.mxu0
        %v4440 = vadd.f32 %v4327, %v4439
        %4441 = vmatmul.f32.gmra.mxu0 %v3878
        %v4442 = vpop.f32.mrf.mxu0
        %v4443 = vadd.f32 %v4330, %v4442
        %4444 = vmatmul.f32.gmra.mxu0 %v3887
        %v4445 = vpop.f32.mrf.mxu0
        %v4446 = vadd.f32 %v4333, %v4445
        %4447 = vmatmul.f32.gmra.mxu0 %v3896
        %v4448 = vpop.f32.mrf.mxu0
        %v4449 = vadd.f32 %v4336, %v4448
        %4450 = vmatmul.f32.gmra.mxu0 %v3905
        %v4451 = vpop.f32.mrf.mxu0
        %v4452 = vadd.f32 %v4339, %v4451
        %4453 = vmatmul.f32.gmra.mxu0 %v3914
        %v4454 = vpop.f32.mrf.mxu0
        %v4455 = vadd.f32 %v4342, %v4454
        %4456 = vmatmul.f32.gmra.mxu0 %v3923
        %v4457 = vpop.f32.mrf.mxu0
        %v4458 = vadd.f32 %v4345, %v4457
        %4459 = vmatmul.f32.gmra.mxu0 %v3932
        %v4460 = vpop.f32.mrf.mxu0
        %v4461 = vadd.f32 %v4348, %v4460
        %4462 = vmatmul.f32.gmra.mxu0 %v3941
        %v4463 = vpop.f32.mrf.mxu0
        %v4464 = vadd.f32 %v4351, %v4463
        %4465 = vmatmul.f32.gmra.mxu0 %v3950
        %v4466 = vpop.f32.mrf.mxu0
        %v4467 = vadd.f32 %v4354, %v4466
        %4468 = vmatmul.f32.gmra.mxu0 %v3959
        %v4469 = vpop.f32.mrf.mxu0
        %v4470 = vadd.f32 %v4357, %v4469
        %4471 = vdwg.mxu0
        %4472 = vmatpush.msra.mxu0 %v3999
        %4473 = vmatpush.msra.mxu0 %v3998
        %4474 = vmatpush.msra.mxu0 %v3997
        %4475 = vmatpush.msra.mxu0 %v3996
        %4476 = vmatpush.msra.mxu0 %v3995
        %4477 = vmatpush.msra.mxu0 %v3994
        %4478 = vmatpush.msra.mxu0 %v3993
        %4479 = vmatpush.msra.mxu0 %v3992
        %4480 = vmatpush.msra.mxu0 %v3991
        %4481 = vmatpush.msra.mxu0 %v3990
        %4482 = vmatpush.msra.mxu0 %v3989
        %4483 = vmatpush.msra.mxu0 %v3988
        %4484 = vmatpush.msra.mxu0 %v3987
        %4485 = vmatpush.msra.mxu0 %v3986
        %4486 = vmatpush.msra.mxu0 %v3985
        %4487 = vmatpush.msra.mxu0 %v3984
        %4488 = vmatmul.f32.gmra.mxu0 %v3681
        %v4489 = vpop.f32.mrf.mxu0
        %v4490 = vadd.f32 %v4377, %v4489
        %4491 = vmatmul.f32.gmra.mxu0 %v3690
        %v4492 = vpop.f32.mrf.mxu0
        %v4493 = vadd.f32 %v4380, %v4492
        %4494 = vmatmul.f32.gmra.mxu0 %v3699
        %v4495 = vpop.f32.mrf.mxu0
        %v4496 = vadd.f32 %v4383, %v4495
        %4497 = vmatmul.f32.gmra.mxu0 %v3708
        %v4498 = vpop.f32.mrf.mxu0
        %v4499 = vadd.f32 %v4386, %v4498
        %4500 = vmatmul.f32.gmra.mxu0 %v3717
        %v4501 = vpop.f32.mrf.mxu0
        %v4502 = vadd.f32 %v4389, %v4501
        %4503 = vmatmul.f32.gmra.mxu0 %v3726
        %v4504 = vpop.f32.mrf.mxu0
        %v4505 = vadd.f32 %v4392, %v4504
        %4506 = vmatmul.f32.gmra.mxu0 %v3735
        %v4507 = vpop.f32.mrf.mxu0
        %v4508 = vadd.f32 %v4395, %v4507
        %4509 = vmatmul.f32.gmra.mxu0 %v3744
        %v4510 = vpop.f32.mrf.mxu0
        %v4511 = vadd.f32 %v4398, %v4510
        %4512 = vmatmul.f32.gmra.mxu0 %v3753
        %v4513 = vpop.f32.mrf.mxu0
        %v4514 = vadd.f32 %v4401, %v4513
        %4515 = vmatmul.f32.gmra.mxu0 %v3762
        %v4516 = vpop.f32.mrf.mxu0
        %v4517 = vadd.f32 %v4404, %v4516
        %4518 = vmatmul.f32.gmra.mxu0 %v3771
        %v4519 = vpop.f32.mrf.mxu0
        %v4520 = vadd.f32 %v4407, %v4519
        %4521 = vmatmul.f32.gmra.mxu0 %v3780
        %v4522 = vpop.f32.mrf.mxu0
        %v4523 = vadd.f32 %v4410, %v4522
        %4524 = vmatmul.f32.gmra.mxu0 %v3789
        %v4525 = vpop.f32.mrf.mxu0
        %v4526 = vadd.f32 %v4413, %v4525
        %4527 = vmatmul.f32.gmra.mxu0 %v3798
        %v4528 = vpop.f32.mrf.mxu0
        %v4529 = vadd.f32 %v4416, %v4528
        %4530 = vmatmul.f32.gmra.mxu0 %v3807
        %v4531 = vpop.f32.mrf.mxu0
        %v4532 = vadd.f32 %v4419, %v4531
        %4533 = vmatmul.f32.gmra.mxu0 %v3816
        %v4534 = vpop.f32.mrf.mxu0
        %v4535 = vadd.f32 %v4422, %v4534
        %4536 = vmatmul.f32.gmra.mxu0 %v3825
        %v4537 = vpop.f32.mrf.mxu0
        %v4538 = vadd.f32 %v4425, %v4537
        %4539 = vmatmul.f32.gmra.mxu0 %v3834
        %v4540 = vpop.f32.mrf.mxu0
        %v4541 = vadd.f32 %v4428, %v4540
        %4542 = vmatmul.f32.gmra.mxu0 %v3843
        %v4543 = vpop.f32.mrf.mxu0
        %v4544 = vadd.f32 %v4431, %v4543
        %4545 = vmatmul.f32.gmra.mxu0 %v3852
        %v4546 = vpop.f32.mrf.mxu0
        %v4547 = vadd.f32 %v4434, %v4546
        %4548 = vmatmul.f32.gmra.mxu0 %v3861
        %v4549 = vpop.f32.mrf.mxu0
        %v4550 = vadd.f32 %v4437, %v4549
        %4551 = vmatmul.f32.gmra.mxu0 %v3870
        %v4552 = vpop.f32.mrf.mxu0
        %v4553 = vadd.f32 %v4440, %v4552
        %4554 = vmatmul.f32.gmra.mxu0 %v3879
        %v4555 = vpop.f32.mrf.mxu0
        %v4556 = vadd.f32 %v4443, %v4555
        %4557 = vmatmul.f32.gmra.mxu0 %v3888
        %v4558 = vpop.f32.mrf.mxu0
        %v4559 = vadd.f32 %v4446, %v4558
        %4560 = vmatmul.f32.gmra.mxu0 %v3897
        %v4561 = vpop.f32.mrf.mxu0
        %v4562 = vadd.f32 %v4449, %v4561
        %4563 = vmatmul.f32.gmra.mxu0 %v3906
        %v4564 = vpop.f32.mrf.mxu0
        %v4565 = vadd.f32 %v4452, %v4564
        %4566 = vmatmul.f32.gmra.mxu0 %v3915
        %v4567 = vpop.f32.mrf.mxu0
        %v4568 = vadd.f32 %v4455, %v4567
        %4569 = vmatmul.f32.gmra.mxu0 %v3924
        %v4570 = vpop.f32.mrf.mxu0
        %v4571 = vadd.f32 %v4458, %v4570
        %4572 = vmatmul.f32.gmra.mxu0 %v3933
        %v4573 = vpop.f32.mrf.mxu0
        %v4574 = vadd.f32 %v4461, %v4573
        %4575 = vmatmul.f32.gmra.mxu0 %v3942
        %v4576 = vpop.f32.mrf.mxu0
        %v4577 = vadd.f32 %v4464, %v4576
        %4578 = vmatmul.f32.gmra.mxu0 %v3951
        %v4579 = vpop.f32.mrf.mxu0
        %v4580 = vadd.f32 %v4467, %v4579
        %4581 = vmatmul.f32.gmra.mxu0 %v3960
        %v4582 = vpop.f32.mrf.mxu0
        %v4583 = vadd.f32 %v4470, %v4582
        %4584 = vdwg.mxu0
        %4585 = vmatpush.msra.mxu0 %v4015
        %4586 = vmatpush.msra.mxu0 %v4014
        %4587 = vmatpush.msra.mxu0 %v4013
        %4588 = vmatpush.msra.mxu0 %v4012
        %4589 = vmatpush.msra.mxu0 %v4011
        %4590 = vmatpush.msra.mxu0 %v4010
        %4591 = vmatpush.msra.mxu0 %v4009
        %4592 = vmatpush.msra.mxu0 %v4008
        %4593 = vmatpush.msra.mxu0 %v4007
        %4594 = vmatpush.msra.mxu0 %v4006
        %4595 = vmatpush.msra.mxu0 %v4005
        %4596 = vmatpush.msra.mxu0 %v4004
        %4597 = vmatpush.msra.mxu0 %v4003
        %4598 = vmatpush.msra.mxu0 %v4002
        %4599 = vmatpush.msra.mxu0 %v4001
        %4600 = vmatpush.msra.mxu0 %v4000
        %4601 = vmatmul.f32.gmra.mxu0 %v3682
        %v4602 = vpop.f32.mrf.mxu0
        %v4603 = vadd.f32 %v4490, %v4602
        %4604 = vmatmul.f32.gmra.mxu0 %v3691
        %v4605 = vpop.f32.mrf.mxu0
        %v4606 = vadd.f32 %v4493, %v4605
        %4607 = vmatmul.f32.gmra.mxu0 %v3700
        %v4608 = vpop.f32.mrf.mxu0
        %v4609 = vadd.f32 %v4496, %v4608
        %4610 = vmatmul.f32.gmra.mxu0 %v3709
        %v4611 = vpop.f32.mrf.mxu0
        %v4612 = vadd.f32 %v4499, %v4611
        %4613 = vmatmul.f32.gmra.mxu0 %v3718
        %v4614 = vpop.f32.mrf.mxu0
        %v4615 = vadd.f32 %v4502, %v4614
        %4616 = vmatmul.f32.gmra.mxu0 %v3727
        %v4617 = vpop.f32.mrf.mxu0
        %v4618 = vadd.f32 %v4505, %v4617
        %4619 = vmatmul.f32.gmra.mxu0 %v3736
        %v4620 = vpop.f32.mrf.mxu0
        %v4621 = vadd.f32 %v4508, %v4620
        %4622 = vmatmul.f32.gmra.mxu0 %v3745
        %v4623 = vpop.f32.mrf.mxu0
        %v4624 = vadd.f32 %v4511, %v4623
        %4625 = vmatmul.f32.gmra.mxu0 %v3754
        %v4626 = vpop.f32.mrf.mxu0
        %v4627 = vadd.f32 %v4514, %v4626
        %4628 = vmatmul.f32.gmra.mxu0 %v3763
        %v4629 = vpop.f32.mrf.mxu0
        %v4630 = vadd.f32 %v4517, %v4629
        %4631 = vmatmul.f32.gmra.mxu0 %v3772
        %v4632 = vpop.f32.mrf.mxu0
        %v4633 = vadd.f32 %v4520, %v4632
        %4634 = vmatmul.f32.gmra.mxu0 %v3781
        %v4635 = vpop.f32.mrf.mxu0
        %v4636 = vadd.f32 %v4523, %v4635
        %4637 = vmatmul.f32.gmra.mxu0 %v3790
        %v4638 = vpop.f32.mrf.mxu0
        %v4639 = vadd.f32 %v4526, %v4638
        %4640 = vmatmul.f32.gmra.mxu0 %v3799
        %v4641 = vpop.f32.mrf.mxu0
        %v4642 = vadd.f32 %v4529, %v4641
        %4643 = vmatmul.f32.gmra.mxu0 %v3808
        %v4644 = vpop.f32.mrf.mxu0
        %v4645 = vadd.f32 %v4532, %v4644
        %4646 = vmatmul.f32.gmra.mxu0 %v3817
        %v4647 = vpop.f32.mrf.mxu0
        %v4648 = vadd.f32 %v4535, %v4647
        %4649 = vmatmul.f32.gmra.mxu0 %v3826
        %v4650 = vpop.f32.mrf.mxu0
        %v4651 = vadd.f32 %v4538, %v4650
        %4652 = vmatmul.f32.gmra.mxu0 %v3835
        %v4653 = vpop.f32.mrf.mxu0
        %v4654 = vadd.f32 %v4541, %v4653
        %4655 = vmatmul.f32.gmra.mxu0 %v3844
        %v4656 = vpop.f32.mrf.mxu0
        %v4657 = vadd.f32 %v4544, %v4656
        %4658 = vmatmul.f32.gmra.mxu0 %v3853
        %v4659 = vpop.f32.mrf.mxu0
        %v4660 = vadd.f32 %v4547, %v4659
        %4661 = vmatmul.f32.gmra.mxu0 %v3862
        %v4662 = vpop.f32.mrf.mxu0
        %v4663 = vadd.f32 %v4550, %v4662
        %4664 = vmatmul.f32.gmra.mxu0 %v3871
        %v4665 = vpop.f32.mrf.mxu0
        %v4666 = vadd.f32 %v4553, %v4665
        %4667 = vmatmul.f32.gmra.mxu0 %v3880
        %v4668 = vpop.f32.mrf.mxu0
        %v4669 = vadd.f32 %v4556, %v4668
        %4670 = vmatmul.f32.gmra.mxu0 %v3889
        %v4671 = vpop.f32.mrf.mxu0
        %v4672 = vadd.f32 %v4559, %v4671
        %4673 = vmatmul.f32.gmra.mxu0 %v3898
        %v4674 = vpop.f32.mrf.mxu0
        %v4675 = vadd.f32 %v4562, %v4674
        %4676 = vmatmul.f32.gmra.mxu0 %v3907
        %v4677 = vpop.f32.mrf.mxu0
        %v4678 = vadd.f32 %v4565, %v4677
        %4679 = vmatmul.f32.gmra.mxu0 %v3916
        %v4680 = vpop.f32.mrf.mxu0
        %v4681 = vadd.f32 %v4568, %v4680
        %4682 = vmatmul.f32.gmra.mxu0 %v3925
        %v4683 = vpop.f32.mrf.mxu0
        %v4684 = vadd.f32 %v4571, %v4683
        %4685 = vmatmul.f32.gmra.mxu0 %v3934
        %v4686 = vpop.f32.mrf.mxu0
        %v4687 = vadd.f32 %v4574, %v4686
        %4688 = vmatmul.f32.gmra.mxu0 %v3943
        %v4689 = vpop.f32.mrf.mxu0
        %v4690 = vadd.f32 %v4577, %v4689
        %4691 = vmatmul.f32.gmra.mxu0 %v3952
        %v4692 = vpop.f32.mrf.mxu0
        %v4693 = vadd.f32 %v4580, %v4692
        %4694 = vmatmul.f32.gmra.mxu0 %v3961
        %v4695 = vpop.f32.mrf.mxu0
        %v4696 = vadd.f32 %v4583, %v4695
        %4697 = vdwg.mxu0
        %4698 = vmatpush.msra.mxu0 %v4031
        %4699 = vmatpush.msra.mxu0 %v4030
        %4700 = vmatpush.msra.mxu0 %v4029
        %4701 = vmatpush.msra.mxu0 %v4028
        %4702 = vmatpush.msra.mxu0 %v4027
        %4703 = vmatpush.msra.mxu0 %v4026
        %4704 = vmatpush.msra.mxu0 %v4025
        %4705 = vmatpush.msra.mxu0 %v4024
        %4706 = vmatpush.msra.mxu0 %v4023
        %4707 = vmatpush.msra.mxu0 %v4022
        %4708 = vmatpush.msra.mxu0 %v4021
        %4709 = vmatpush.msra.mxu0 %v4020
        %4710 = vmatpush.msra.mxu0 %v4019
        %4711 = vmatpush.msra.mxu0 %v4018
        %4712 = vmatpush.msra.mxu0 %v4017
        %4713 = vmatpush.msra.mxu0 %v4016
        %4714 = vmatmul.f32.gmra.mxu0 %v3683
        %v4715 = vpop.f32.mrf.mxu0
        %v4716 = vadd.f32 %v4603, %v4715
        %4717 = vmatmul.f32.gmra.mxu0 %v3692
        %v4718 = vpop.f32.mrf.mxu0
        %v4719 = vadd.f32 %v4606, %v4718
        %4720 = vmatmul.f32.gmra.mxu0 %v3701
        %v4721 = vpop.f32.mrf.mxu0
        %v4722 = vadd.f32 %v4609, %v4721
        %4723 = vmatmul.f32.gmra.mxu0 %v3710
        %v4724 = vpop.f32.mrf.mxu0
        %v4725 = vadd.f32 %v4612, %v4724
        %4726 = vmatmul.f32.gmra.mxu0 %v3719
        %v4727 = vpop.f32.mrf.mxu0
        %v4728 = vadd.f32 %v4615, %v4727
        %4729 = vmatmul.f32.gmra.mxu0 %v3728
        %v4730 = vpop.f32.mrf.mxu0
        %v4731 = vadd.f32 %v4618, %v4730
        %4732 = vmatmul.f32.gmra.mxu0 %v3737
        %v4733 = vpop.f32.mrf.mxu0
        %v4734 = vadd.f32 %v4621, %v4733
        %4735 = vmatmul.f32.gmra.mxu0 %v3746
        %v4736 = vpop.f32.mrf.mxu0
        %v4737 = vadd.f32 %v4624, %v4736
        %4738 = vmatmul.f32.gmra.mxu0 %v3755
        %v4739 = vpop.f32.mrf.mxu0
        %v4740 = vadd.f32 %v4627, %v4739
        %4741 = vmatmul.f32.gmra.mxu0 %v3764
        %v4742 = vpop.f32.mrf.mxu0
        %v4743 = vadd.f32 %v4630, %v4742
        %4744 = vmatmul.f32.gmra.mxu0 %v3773
        %v4745 = vpop.f32.mrf.mxu0
        %v4746 = vadd.f32 %v4633, %v4745
        %4747 = vmatmul.f32.gmra.mxu0 %v3782
        %v4748 = vpop.f32.mrf.mxu0
        %v4749 = vadd.f32 %v4636, %v4748
        %4750 = vmatmul.f32.gmra.mxu0 %v3791
        %v4751 = vpop.f32.mrf.mxu0
        %v4752 = vadd.f32 %v4639, %v4751
        %4753 = vmatmul.f32.gmra.mxu0 %v3800
        %v4754 = vpop.f32.mrf.mxu0
        %v4755 = vadd.f32 %v4642, %v4754
        %4756 = vmatmul.f32.gmra.mxu0 %v3809
        %v4757 = vpop.f32.mrf.mxu0
        %v4758 = vadd.f32 %v4645, %v4757
        %4759 = vmatmul.f32.gmra.mxu0 %v3818
        %v4760 = vpop.f32.mrf.mxu0
        %v4761 = vadd.f32 %v4648, %v4760
        %4762 = vmatmul.f32.gmra.mxu0 %v3827
        %v4763 = vpop.f32.mrf.mxu0
        %v4764 = vadd.f32 %v4651, %v4763
        %4765 = vmatmul.f32.gmra.mxu0 %v3836
        %v4766 = vpop.f32.mrf.mxu0
        %v4767 = vadd.f32 %v4654, %v4766
        %4768 = vmatmul.f32.gmra.mxu0 %v3845
        %v4769 = vpop.f32.mrf.mxu0
        %v4770 = vadd.f32 %v4657, %v4769
        %4771 = vmatmul.f32.gmra.mxu0 %v3854
        %v4772 = vpop.f32.mrf.mxu0
        %v4773 = vadd.f32 %v4660, %v4772
        %4774 = vmatmul.f32.gmra.mxu0 %v3863
        %v4775 = vpop.f32.mrf.mxu0
        %v4776 = vadd.f32 %v4663, %v4775
        %4777 = vmatmul.f32.gmra.mxu0 %v3872
        %v4778 = vpop.f32.mrf.mxu0
        %v4779 = vadd.f32 %v4666, %v4778
        %4780 = vmatmul.f32.gmra.mxu0 %v3881
        %v4781 = vpop.f32.mrf.mxu0
        %v4782 = vadd.f32 %v4669, %v4781
        %4783 = vmatmul.f32.gmra.mxu0 %v3890
        %v4784 = vpop.f32.mrf.mxu0
        %v4785 = vadd.f32 %v4672, %v4784
        %4786 = vmatmul.f32.gmra.mxu0 %v3899
        %v4787 = vpop.f32.mrf.mxu0
        %v4788 = vadd.f32 %v4675, %v4787
        %4789 = vmatmul.f32.gmra.mxu0 %v3908
        %v4790 = vpop.f32.mrf.mxu0
        %v4791 = vadd.f32 %v4678, %v4790
        %4792 = vmatmul.f32.gmra.mxu0 %v3917
        %v4793 = vpop.f32.mrf.mxu0
        %v4794 = vadd.f32 %v4681, %v4793
        %4795 = vmatmul.f32.gmra.mxu0 %v3926
        %v4796 = vpop.f32.mrf.mxu0
        %v4797 = vadd.f32 %v4684, %v4796
        %4798 = vmatmul.f32.gmra.mxu0 %v3935
        %v4799 = vpop.f32.mrf.mxu0
        %v4800 = vadd.f32 %v4687, %v4799
        %4801 = vmatmul.f32.gmra.mxu0 %v3944
        %v4802 = vpop.f32.mrf.mxu0
        %v4803 = vadd.f32 %v4690, %v4802
        %4804 = vmatmul.f32.gmra.mxu0 %v3953
        %v4805 = vpop.f32.mrf.mxu0
        %v4806 = vadd.f32 %v4693, %v4805
        %4807 = vmatmul.f32.gmra.mxu0 %v3962
        %v4808 = vpop.f32.mrf.mxu0
        %v4809 = vadd.f32 %v4696, %v4808
        %4810 = vdwg.mxu0
        %4811 = vmatpush.msra.mxu0 %v4047
        %4812 = vmatpush.msra.mxu0 %v4046
        %4813 = vmatpush.msra.mxu0 %v4045
        %4814 = vmatpush.msra.mxu0 %v4044
        %4815 = vmatpush.msra.mxu0 %v4043
        %4816 = vmatpush.msra.mxu0 %v4042
        %4817 = vmatpush.msra.mxu0 %v4041
        %4818 = vmatpush.msra.mxu0 %v4040
        %4819 = vmatpush.msra.mxu0 %v4039
        %4820 = vmatpush.msra.mxu0 %v4038
        %4821 = vmatpush.msra.mxu0 %v4037
        %4822 = vmatpush.msra.mxu0 %v4036
        %4823 = vmatpush.msra.mxu0 %v4035
        %4824 = vmatpush.msra.mxu0 %v4034
        %4825 = vmatpush.msra.mxu0 %v4033
        %4826 = vmatpush.msra.mxu0 %v4032
        %4827 = vmatmul.f32.gmra.mxu0 %v3684
        %v4828 = vpop.f32.mrf.mxu0
        %v4829 = vadd.f32 %v4716, %v4828
        %4830 = vmatmul.f32.gmra.mxu0 %v3693
        %v4831 = vpop.f32.mrf.mxu0
        %v4832 = vadd.f32 %v4719, %v4831
        %4833 = vmatmul.f32.gmra.mxu0 %v3702
        %v4834 = vpop.f32.mrf.mxu0
        %v4835 = vadd.f32 %v4722, %v4834
        %4836 = vmatmul.f32.gmra.mxu0 %v3711
        %v4837 = vpop.f32.mrf.mxu0
        %v4838 = vadd.f32 %v4725, %v4837
        %4839 = vmatmul.f32.gmra.mxu0 %v3720
        %v4840 = vpop.f32.mrf.mxu0
        %v4841 = vadd.f32 %v4728, %v4840
        %4842 = vmatmul.f32.gmra.mxu0 %v3729
        %v4843 = vpop.f32.mrf.mxu0
        %v4844 = vadd.f32 %v4731, %v4843
        %4845 = vmatmul.f32.gmra.mxu0 %v3738
        %v4846 = vpop.f32.mrf.mxu0
        %v4847 = vadd.f32 %v4734, %v4846
        %4848 = vmatmul.f32.gmra.mxu0 %v3747
        %v4849 = vpop.f32.mrf.mxu0
        %v4850 = vadd.f32 %v4737, %v4849
        %4851 = vmatmul.f32.gmra.mxu0 %v3756
        %v4852 = vpop.f32.mrf.mxu0
        %v4853 = vadd.f32 %v4740, %v4852
        %4854 = vmatmul.f32.gmra.mxu0 %v3765
        %v4855 = vpop.f32.mrf.mxu0
        %v4856 = vadd.f32 %v4743, %v4855
        %4857 = vmatmul.f32.gmra.mxu0 %v3774
        %v4858 = vpop.f32.mrf.mxu0
        %v4859 = vadd.f32 %v4746, %v4858
        %4860 = vmatmul.f32.gmra.mxu0 %v3783
        %v4861 = vpop.f32.mrf.mxu0
        %v4862 = vadd.f32 %v4749, %v4861
        %4863 = vmatmul.f32.gmra.mxu0 %v3792
        %v4864 = vpop.f32.mrf.mxu0
        %v4865 = vadd.f32 %v4752, %v4864
        %4866 = vmatmul.f32.gmra.mxu0 %v3801
        %v4867 = vpop.f32.mrf.mxu0
        %v4868 = vadd.f32 %v4755, %v4867
        %4869 = vmatmul.f32.gmra.mxu0 %v3810
        %v4870 = vpop.f32.mrf.mxu0
        %v4871 = vadd.f32 %v4758, %v4870
        %4872 = vmatmul.f32.gmra.mxu0 %v3819
        %v4873 = vpop.f32.mrf.mxu0
        %v4874 = vadd.f32 %v4761, %v4873
        %4875 = vmatmul.f32.gmra.mxu0 %v3828
        %v4876 = vpop.f32.mrf.mxu0
        %v4877 = vadd.f32 %v4764, %v4876
        %4878 = vmatmul.f32.gmra.mxu0 %v3837
        %v4879 = vpop.f32.mrf.mxu0
        %v4880 = vadd.f32 %v4767, %v4879
        %4881 = vmatmul.f32.gmra.mxu0 %v3846
        %v4882 = vpop.f32.mrf.mxu0
        %v4883 = vadd.f32 %v4770, %v4882
        %4884 = vmatmul.f32.gmra.mxu0 %v3855
        %v4885 = vpop.f32.mrf.mxu0
        %v4886 = vadd.f32 %v4773, %v4885
        %4887 = vmatmul.f32.gmra.mxu0 %v3864
        %v4888 = vpop.f32.mrf.mxu0
        %v4889 = vadd.f32 %v4776, %v4888
        %4890 = vmatmul.f32.gmra.mxu0 %v3873
        %v4891 = vpop.f32.mrf.mxu0
        %v4892 = vadd.f32 %v4779, %v4891
        %4893 = vmatmul.f32.gmra.mxu0 %v3882
        %v4894 = vpop.f32.mrf.mxu0
        %v4895 = vadd.f32 %v4782, %v4894
        %4896 = vmatmul.f32.gmra.mxu0 %v3891
        %v4897 = vpop.f32.mrf.mxu0
        %v4898 = vadd.f32 %v4785, %v4897
        %4899 = vmatmul.f32.gmra.mxu0 %v3900
        %v4900 = vpop.f32.mrf.mxu0
        %v4901 = vadd.f32 %v4788, %v4900
        %4902 = vmatmul.f32.gmra.mxu0 %v3909
        %v4903 = vpop.f32.mrf.mxu0
        %v4904 = vadd.f32 %v4791, %v4903
        %4905 = vmatmul.f32.gmra.mxu0 %v3918
        %v4906 = vpop.f32.mrf.mxu0
        %v4907 = vadd.f32 %v4794, %v4906
        %4908 = vmatmul.f32.gmra.mxu0 %v3927
        %v4909 = vpop.f32.mrf.mxu0
        %v4910 = vadd.f32 %v4797, %v4909
        %4911 = vmatmul.f32.gmra.mxu0 %v3936
        %v4912 = vpop.f32.mrf.mxu0
        %v4913 = vadd.f32 %v4800, %v4912
        %4914 = vmatmul.f32.gmra.mxu0 %v3945
        %v4915 = vpop.f32.mrf.mxu0
        %v4916 = vadd.f32 %v4803, %v4915
        %4917 = vmatmul.f32.gmra.mxu0 %v3954
        %v4918 = vpop.f32.mrf.mxu0
        %v4919 = vadd.f32 %v4806, %v4918
        %4920 = vmatmul.f32.gmra.mxu0 %v3963
        %v4921 = vpop.f32.mrf.mxu0
        %v4922 = vadd.f32 %v4809, %v4921
        %4923 = vdwg.mxu0
        %4924 = vmatpush.msra.mxu0 %v4063
        %4925 = vmatpush.msra.mxu0 %v4062
        %4926 = vmatpush.msra.mxu0 %v4061
        %4927 = vmatpush.msra.mxu0 %v4060
        %4928 = vmatpush.msra.mxu0 %v4059
        %4929 = vmatpush.msra.mxu0 %v4058
        %4930 = vmatpush.msra.mxu0 %v4057
        %4931 = vmatpush.msra.mxu0 %v4056
        %4932 = vmatpush.msra.mxu0 %v4055
        %4933 = vmatpush.msra.mxu0 %v4054
        %4934 = vmatpush.msra.mxu0 %v4053
        %4935 = vmatpush.msra.mxu0 %v4052
        %4936 = vmatpush.msra.mxu0 %v4051
        %4937 = vmatpush.msra.mxu0 %v4050
        %4938 = vmatpush.msra.mxu0 %v4049
        %4939 = vmatpush.msra.mxu0 %v4048
        %4940 = vmatmul.f32.gmra.mxu0 %v3685
        %v4941 = vpop.f32.mrf.mxu0
        %v4942 = vadd.f32 %v4829, %v4941
        %4943 = vmatmul.f32.gmra.mxu0 %v3694
        %v4944 = vpop.f32.mrf.mxu0
        %v4945 = vadd.f32 %v4832, %v4944
        %4946 = vmatmul.f32.gmra.mxu0 %v3703
        %v4947 = vpop.f32.mrf.mxu0
        %v4948 = vadd.f32 %v4835, %v4947
        %4949 = vmatmul.f32.gmra.mxu0 %v3712
        %v4950 = vpop.f32.mrf.mxu0
        %v4951 = vadd.f32 %v4838, %v4950
        %4952 = vmatmul.f32.gmra.mxu0 %v3721
        %v4953 = vpop.f32.mrf.mxu0
        %v4954 = vadd.f32 %v4841, %v4953
        %4955 = vmatmul.f32.gmra.mxu0 %v3730
        %v4956 = vpop.f32.mrf.mxu0
        %v4957 = vadd.f32 %v4844, %v4956
        %4958 = vmatmul.f32.gmra.mxu0 %v3739
        %v4959 = vpop.f32.mrf.mxu0
        %v4960 = vadd.f32 %v4847, %v4959
        %4961 = vmatmul.f32.gmra.mxu0 %v3748
        %v4962 = vpop.f32.mrf.mxu0
        %v4963 = vadd.f32 %v4850, %v4962
        %4964 = vmatmul.f32.gmra.mxu0 %v3757
        %v4965 = vpop.f32.mrf.mxu0
        %v4966 = vadd.f32 %v4853, %v4965
        %4967 = vmatmul.f32.gmra.mxu0 %v3766
        %v4968 = vpop.f32.mrf.mxu0
        %v4969 = vadd.f32 %v4856, %v4968
        %4970 = vmatmul.f32.gmra.mxu0 %v3775
        %v4971 = vpop.f32.mrf.mxu0
        %v4972 = vadd.f32 %v4859, %v4971
        %4973 = vmatmul.f32.gmra.mxu0 %v3784
        %v4974 = vpop.f32.mrf.mxu0
        %v4975 = vadd.f32 %v4862, %v4974
        %4976 = vmatmul.f32.gmra.mxu0 %v3793
        %v4977 = vpop.f32.mrf.mxu0
        %v4978 = vadd.f32 %v4865, %v4977
        %4979 = vmatmul.f32.gmra.mxu0 %v3802
        %v4980 = vpop.f32.mrf.mxu0
        %v4981 = vadd.f32 %v4868, %v4980
        %4982 = vmatmul.f32.gmra.mxu0 %v3811
        %v4983 = vpop.f32.mrf.mxu0
        %v4984 = vadd.f32 %v4871, %v4983
        %4985 = vmatmul.f32.gmra.mxu0 %v3820
        %v4986 = vpop.f32.mrf.mxu0
        %v4987 = vadd.f32 %v4874, %v4986
        %4988 = vmatmul.f32.gmra.mxu0 %v3829
        %v4989 = vpop.f32.mrf.mxu0
        %v4990 = vadd.f32 %v4877, %v4989
        %4991 = vmatmul.f32.gmra.mxu0 %v3838
        %v4992 = vpop.f32.mrf.mxu0
        %v4993 = vadd.f32 %v4880, %v4992
        %4994 = vmatmul.f32.gmra.mxu0 %v3847
        %v4995 = vpop.f32.mrf.mxu0
        %v4996 = vadd.f32 %v4883, %v4995
        %4997 = vmatmul.f32.gmra.mxu0 %v3856
        %v4998 = vpop.f32.mrf.mxu0
        %v4999 = vadd.f32 %v4886, %v4998
        %5000 = vmatmul.f32.gmra.mxu0 %v3865
        %v5001 = vpop.f32.mrf.mxu0
        %v5002 = vadd.f32 %v4889, %v5001
        %5003 = vmatmul.f32.gmra.mxu0 %v3874
        %v5004 = vpop.f32.mrf.mxu0
        %v5005 = vadd.f32 %v4892, %v5004
        %5006 = vmatmul.f32.gmra.mxu0 %v3883
        %v5007 = vpop.f32.mrf.mxu0
        %v5008 = vadd.f32 %v4895, %v5007
        %5009 = vmatmul.f32.gmra.mxu0 %v3892
        %v5010 = vpop.f32.mrf.mxu0
        %v5011 = vadd.f32 %v4898, %v5010
        %5012 = vmatmul.f32.gmra.mxu0 %v3901
        %v5013 = vpop.f32.mrf.mxu0
        %v5014 = vadd.f32 %v4901, %v5013
        %5015 = vmatmul.f32.gmra.mxu0 %v3910
        %v5016 = vpop.f32.mrf.mxu0
        %v5017 = vadd.f32 %v4904, %v5016
        %5018 = vmatmul.f32.gmra.mxu0 %v3919
        %v5019 = vpop.f32.mrf.mxu0
        %v5020 = vadd.f32 %v4907, %v5019
        %5021 = vmatmul.f32.gmra.mxu0 %v3928
        %v5022 = vpop.f32.mrf.mxu0
        %v5023 = vadd.f32 %v4910, %v5022
        %5024 = vmatmul.f32.gmra.mxu0 %v3937
        %v5025 = vpop.f32.mrf.mxu0
        %v5026 = vadd.f32 %v4913, %v5025
        %5027 = vmatmul.f32.gmra.mxu0 %v3946
        %v5028 = vpop.f32.mrf.mxu0
        %v5029 = vadd.f32 %v4916, %v5028
        %5030 = vmatmul.f32.gmra.mxu0 %v3955
        %v5031 = vpop.f32.mrf.mxu0
        %v5032 = vadd.f32 %v4919, %v5031
        %5033 = vmatmul.f32.gmra.mxu0 %v3964
        %v5034 = vpop.f32.mrf.mxu0
        %v5035 = vadd.f32 %v4922, %v5034
        %5036 = vdwg.mxu0
        %5037 = vmatpush.msra.mxu0 %v4079
        %5038 = vmatpush.msra.mxu0 %v4078
        %5039 = vmatpush.msra.mxu0 %v4077
        %5040 = vmatpush.msra.mxu0 %v4076
        %5041 = vmatpush.msra.mxu0 %v4075
        %5042 = vmatpush.msra.mxu0 %v4074
        %5043 = vmatpush.msra.mxu0 %v4073
        %5044 = vmatpush.msra.mxu0 %v4072
        %5045 = vmatpush.msra.mxu0 %v4071
        %5046 = vmatpush.msra.mxu0 %v4070
        %5047 = vmatpush.msra.mxu0 %v4069
        %5048 = vmatpush.msra.mxu0 %v4068
        %5049 = vmatpush.msra.mxu0 %v4067
        %5050 = vmatpush.msra.mxu0 %v4066
        %5051 = vmatpush.msra.mxu0 %v4065
        %5052 = vmatpush.msra.mxu0 %v4064
        %5053 = vmatmul.f32.gmra.mxu0 %v3686
        %v5054 = vpop.f32.mrf.mxu0
        %v5055 = vadd.f32 %v4942, %v5054
        %5056 = vmatmul.f32.gmra.mxu0 %v3695
        %v5057 = vpop.f32.mrf.mxu0
        %v5058 = vadd.f32 %v4945, %v5057
        %5059 = vmatmul.f32.gmra.mxu0 %v3704
        %v5060 = vpop.f32.mrf.mxu0
        %v5061 = vadd.f32 %v4948, %v5060
        %5062 = vmatmul.f32.gmra.mxu0 %v3713
        %v5063 = vpop.f32.mrf.mxu0
        %v5064 = vadd.f32 %v4951, %v5063
        %5065 = vmatmul.f32.gmra.mxu0 %v3722
        %v5066 = vpop.f32.mrf.mxu0
        %v5067 = vadd.f32 %v4954, %v5066
        %5068 = vmatmul.f32.gmra.mxu0 %v3731
        %v5069 = vpop.f32.mrf.mxu0
        %v5070 = vadd.f32 %v4957, %v5069
        %5071 = vmatmul.f32.gmra.mxu0 %v3740
        %v5072 = vpop.f32.mrf.mxu0
        %v5073 = vadd.f32 %v4960, %v5072
        %5074 = vmatmul.f32.gmra.mxu0 %v3749
        %v5075 = vpop.f32.mrf.mxu0
        %v5076 = vadd.f32 %v4963, %v5075
        %5077 = vmatmul.f32.gmra.mxu0 %v3758
        %v5078 = vpop.f32.mrf.mxu0
        %v5079 = vadd.f32 %v4966, %v5078
        %5080 = vmatmul.f32.gmra.mxu0 %v3767
        %v5081 = vpop.f32.mrf.mxu0
        %v5082 = vadd.f32 %v4969, %v5081
        %5083 = vmatmul.f32.gmra.mxu0 %v3776
        %v5084 = vpop.f32.mrf.mxu0
        %v5085 = vadd.f32 %v4972, %v5084
        %5086 = vmatmul.f32.gmra.mxu0 %v3785
        %v5087 = vpop.f32.mrf.mxu0
        %v5088 = vadd.f32 %v4975, %v5087
        %5089 = vmatmul.f32.gmra.mxu0 %v3794
        %v5090 = vpop.f32.mrf.mxu0
        %v5091 = vadd.f32 %v4978, %v5090
        %5092 = vmatmul.f32.gmra.mxu0 %v3803
        %v5093 = vpop.f32.mrf.mxu0
        %v5094 = vadd.f32 %v4981, %v5093
        %5095 = vmatmul.f32.gmra.mxu0 %v3812
        %v5096 = vpop.f32.mrf.mxu0
        %v5097 = vadd.f32 %v4984, %v5096
        %5098 = vmatmul.f32.gmra.mxu0 %v3821
        %v5099 = vpop.f32.mrf.mxu0
        %v5100 = vadd.f32 %v4987, %v5099
        %5101 = vmatmul.f32.gmra.mxu0 %v3830
        %v5102 = vpop.f32.mrf.mxu0
        %v5103 = vadd.f32 %v4990, %v5102
        %5104 = vmatmul.f32.gmra.mxu0 %v3839
        %v5105 = vpop.f32.mrf.mxu0
        %v5106 = vadd.f32 %v4993, %v5105
        %5107 = vmatmul.f32.gmra.mxu0 %v3848
        %v5108 = vpop.f32.mrf.mxu0
        %v5109 = vadd.f32 %v4996, %v5108
        %5110 = vmatmul.f32.gmra.mxu0 %v3857
        %v5111 = vpop.f32.mrf.mxu0
        %v5112 = vadd.f32 %v4999, %v5111
        %5113 = vmatmul.f32.gmra.mxu0 %v3866
        %v5114 = vpop.f32.mrf.mxu0
        %v5115 = vadd.f32 %v5002, %v5114
        %5116 = vmatmul.f32.gmra.mxu0 %v3875
        %v5117 = vpop.f32.mrf.mxu0
        %v5118 = vadd.f32 %v5005, %v5117
        %5119 = vmatmul.f32.gmra.mxu0 %v3884
        %v5120 = vpop.f32.mrf.mxu0
        %v5121 = vadd.f32 %v5008, %v5120
        %5122 = vmatmul.f32.gmra.mxu0 %v3893
        %v5123 = vpop.f32.mrf.mxu0
        %v5124 = vadd.f32 %v5011, %v5123
        %5125 = vmatmul.f32.gmra.mxu0 %v3902
        %v5126 = vpop.f32.mrf.mxu0
        %v5127 = vadd.f32 %v5014, %v5126
        %5128 = vmatmul.f32.gmra.mxu0 %v3911
        %v5129 = vpop.f32.mrf.mxu0
        %v5130 = vadd.f32 %v5017, %v5129
        %5131 = vmatmul.f32.gmra.mxu0 %v3920
        %v5132 = vpop.f32.mrf.mxu0
        %v5133 = vadd.f32 %v5020, %v5132
        %5134 = vmatmul.f32.gmra.mxu0 %v3929
        %v5135 = vpop.f32.mrf.mxu0
        %v5136 = vadd.f32 %v5023, %v5135
        %5137 = vmatmul.f32.gmra.mxu0 %v3938
        %v5138 = vpop.f32.mrf.mxu0
        %v5139 = vadd.f32 %v5026, %v5138
        %5140 = vmatmul.f32.gmra.mxu0 %v3947
        %v5141 = vpop.f32.mrf.mxu0
        %v5142 = vadd.f32 %v5029, %v5141
        %5143 = vmatmul.f32.gmra.mxu0 %v3956
        %v5144 = vpop.f32.mrf.mxu0
        %v5145 = vadd.f32 %v5032, %v5144
        %5146 = vmatmul.f32.gmra.mxu0 %v3965
        %v5147 = vpop.f32.mrf.mxu0
        %v5148 = vadd.f32 %v5035, %v5147
        %5149 = vdwg.mxu0
        %5150 = vmatpush.msra.mxu0 %v4095
        %5151 = vmatpush.msra.mxu0 %v4094
        %5152 = vmatpush.msra.mxu0 %v4093
        %5153 = vmatpush.msra.mxu0 %v4092
        %5154 = vmatpush.msra.mxu0 %v4091
        %5155 = vmatpush.msra.mxu0 %v4090
        %5156 = vmatpush.msra.mxu0 %v4089
        %5157 = vmatpush.msra.mxu0 %v4088
        %5158 = vmatpush.msra.mxu0 %v4087
        %5159 = vmatpush.msra.mxu0 %v4086
        %5160 = vmatpush.msra.mxu0 %v4085
        %5161 = vmatpush.msra.mxu0 %v4084
        %5162 = vmatpush.msra.mxu0 %v4083
        %5163 = vmatpush.msra.mxu0 %v4082
        %5164 = vmatpush.msra.mxu0 %v4081
        %5165 = vmatpush.msra.mxu0 %v4080
        %5166 = vmatmul.f32.gmra.mxu0 %v3687
        %v5167 = vpop.f32.mrf.mxu0
        %v5168 = vadd.f32 %v5055, %v5167
        %5169 = vmatmul.f32.gmra.mxu0 %v3696
        %v5170 = vpop.f32.mrf.mxu0
        %v5171 = vadd.f32 %v5058, %v5170
        %5172 = vmatmul.f32.gmra.mxu0 %v3705
        %v5173 = vpop.f32.mrf.mxu0
        %v5174 = vadd.f32 %v5061, %v5173
        %5175 = vmatmul.f32.gmra.mxu0 %v3714
        %v5176 = vpop.f32.mrf.mxu0
        %v5177 = vadd.f32 %v5064, %v5176
        %5178 = vmatmul.f32.gmra.mxu0 %v3723
        %v5179 = vpop.f32.mrf.mxu0
        %v5180 = vadd.f32 %v5067, %v5179
        %5181 = vmatmul.f32.gmra.mxu0 %v3732
        %v5182 = vpop.f32.mrf.mxu0
        %v5183 = vadd.f32 %v5070, %v5182
        %5184 = vmatmul.f32.gmra.mxu0 %v3741
        %v5185 = vpop.f32.mrf.mxu0
        %v5186 = vadd.f32 %v5073, %v5185
        %5187 = vmatmul.f32.gmra.mxu0 %v3750
        %v5188 = vpop.f32.mrf.mxu0
        %v5189 = vadd.f32 %v5076, %v5188
        %5190 = vmatmul.f32.gmra.mxu0 %v3759
        %v5191 = vpop.f32.mrf.mxu0
        %v5192 = vadd.f32 %v5079, %v5191
        %5193 = vmatmul.f32.gmra.mxu0 %v3768
        %v5194 = vpop.f32.mrf.mxu0
        %v5195 = vadd.f32 %v5082, %v5194
        %5196 = vmatmul.f32.gmra.mxu0 %v3777
        %v5197 = vpop.f32.mrf.mxu0
        %v5198 = vadd.f32 %v5085, %v5197
        %5199 = vmatmul.f32.gmra.mxu0 %v3786
        %v5200 = vpop.f32.mrf.mxu0
        %v5201 = vadd.f32 %v5088, %v5200
        %5202 = vmatmul.f32.gmra.mxu0 %v3795
        %v5203 = vpop.f32.mrf.mxu0
        %v5204 = vadd.f32 %v5091, %v5203
        %5205 = vmatmul.f32.gmra.mxu0 %v3804
        %v5206 = vpop.f32.mrf.mxu0
        %v5207 = vadd.f32 %v5094, %v5206
        %5208 = vmatmul.f32.gmra.mxu0 %v3813
        %v5209 = vpop.f32.mrf.mxu0
        %v5210 = vadd.f32 %v5097, %v5209
        %5211 = vmatmul.f32.gmra.mxu0 %v3822
        %v5212 = vpop.f32.mrf.mxu0
        %v5213 = vadd.f32 %v5100, %v5212
        %5214 = vmatmul.f32.gmra.mxu0 %v3831
        %v5215 = vpop.f32.mrf.mxu0
        %v5216 = vadd.f32 %v5103, %v5215
        %5217 = vmatmul.f32.gmra.mxu0 %v3840
        %v5218 = vpop.f32.mrf.mxu0
        %v5219 = vadd.f32 %v5106, %v5218
        %5220 = vmatmul.f32.gmra.mxu0 %v3849
        %v5221 = vpop.f32.mrf.mxu0
        %v5222 = vadd.f32 %v5109, %v5221
        %5223 = vmatmul.f32.gmra.mxu0 %v3858
        %v5224 = vpop.f32.mrf.mxu0
        %v5225 = vadd.f32 %v5112, %v5224
        %5226 = vmatmul.f32.gmra.mxu0 %v3867
        %v5227 = vpop.f32.mrf.mxu0
        %v5228 = vadd.f32 %v5115, %v5227
        %5229 = vmatmul.f32.gmra.mxu0 %v3876
        %v5230 = vpop.f32.mrf.mxu0
        %v5231 = vadd.f32 %v5118, %v5230
        %5232 = vmatmul.f32.gmra.mxu0 %v3885
        %v5233 = vpop.f32.mrf.mxu0
        %v5234 = vadd.f32 %v5121, %v5233
        %5235 = vmatmul.f32.gmra.mxu0 %v3894
        %v5236 = vpop.f32.mrf.mxu0
        %v5237 = vadd.f32 %v5124, %v5236
        %5238 = vmatmul.f32.gmra.mxu0 %v3903
        %v5239 = vpop.f32.mrf.mxu0
        %v5240 = vadd.f32 %v5127, %v5239
        %5241 = vmatmul.f32.gmra.mxu0 %v3912
        %v5242 = vpop.f32.mrf.mxu0
        %v5243 = vadd.f32 %v5130, %v5242
        %5244 = vmatmul.f32.gmra.mxu0 %v3921
        %v5245 = vpop.f32.mrf.mxu0
        %v5246 = vadd.f32 %v5133, %v5245
        %5247 = vmatmul.f32.gmra.mxu0 %v3930
        %v5248 = vpop.f32.mrf.mxu0
        %v5249 = vadd.f32 %v5136, %v5248
        %5250 = vmatmul.f32.gmra.mxu0 %v3939
        %v5251 = vpop.f32.mrf.mxu0
        %v5252 = vadd.f32 %v5139, %v5251
        %5253 = vmatmul.f32.gmra.mxu0 %v3948
        %v5254 = vpop.f32.mrf.mxu0
        %v5255 = vadd.f32 %v5142, %v5254
        %5256 = vmatmul.f32.gmra.mxu0 %v3957
        %v5257 = vpop.f32.mrf.mxu0
        %v5258 = vadd.f32 %v5145, %v5257
        %5259 = vmatmul.f32.gmra.mxu0 %v3966
        %v5260 = vpop.f32.mrf.mxu0
        %v5261 = vadd.f32 %v5148, %v5260
        %5262 = vdwg.mxu0
        %5263 = vmatpush.msra.mxu0 %v4111
        %5264 = vmatpush.msra.mxu0 %v4110
        %5265 = vmatpush.msra.mxu0 %v4109
        %5266 = vmatpush.msra.mxu0 %v4108
        %5267 = vmatpush.msra.mxu0 %v4107
        %5268 = vmatpush.msra.mxu0 %v4106
        %5269 = vmatpush.msra.mxu0 %v4105
        %5270 = vmatpush.msra.mxu0 %v4104
        %5271 = vmatpush.msra.mxu0 %v4103
        %5272 = vmatpush.msra.mxu0 %v4102
        %5273 = vmatpush.msra.mxu0 %v4101
        %5274 = vmatpush.msra.mxu0 %v4100
        %5275 = vmatpush.msra.mxu0 %v4099
        %5276 = vmatpush.msra.mxu0 %v4098
        %5277 = vmatpush.msra.mxu0 %v4097
        %5278 = vmatpush.msra.mxu0 %v4096
        %5279 = vmatmul.f32.gmra.mxu0 %v3688
        %v5280 = vpop.f32.mrf.mxu0
        %v5281 = vadd.f32 %v5168, %v5280
        %5282 = vmatmul.f32.gmra.mxu0 %v3697
        %v5283 = vpop.f32.mrf.mxu0
        %v5284 = vadd.f32 %v5171, %v5283
        %5285 = vmatmul.f32.gmra.mxu0 %v3706
        %v5286 = vpop.f32.mrf.mxu0
        %v5287 = vadd.f32 %v5174, %v5286
        %5288 = vmatmul.f32.gmra.mxu0 %v3715
        %v5289 = vpop.f32.mrf.mxu0
        %v5290 = vadd.f32 %v5177, %v5289
        %5291 = vmatmul.f32.gmra.mxu0 %v3724
        %v5292 = vpop.f32.mrf.mxu0
        %v5293 = vadd.f32 %v5180, %v5292
        %5294 = vmatmul.f32.gmra.mxu0 %v3733
        %v5295 = vpop.f32.mrf.mxu0
        %v5296 = vadd.f32 %v5183, %v5295
        %5297 = vmatmul.f32.gmra.mxu0 %v3742
        %v5298 = vpop.f32.mrf.mxu0
        %v5299 = vadd.f32 %v5186, %v5298
        %5300 = vmatmul.f32.gmra.mxu0 %v3751
        %v5301 = vpop.f32.mrf.mxu0
        %v5302 = vadd.f32 %v5189, %v5301
        %5303 = vmatmul.f32.gmra.mxu0 %v3760
        %v5304 = vpop.f32.mrf.mxu0
        %v5305 = vadd.f32 %v5192, %v5304
        %5306 = vmatmul.f32.gmra.mxu0 %v3769
        %v5307 = vpop.f32.mrf.mxu0
        %v5308 = vadd.f32 %v5195, %v5307
        %5309 = vmatmul.f32.gmra.mxu0 %v3778
        %v5310 = vpop.f32.mrf.mxu0
        %v5311 = vadd.f32 %v5198, %v5310
        %5312 = vmatmul.f32.gmra.mxu0 %v3787
        %v5313 = vpop.f32.mrf.mxu0
        %v5314 = vadd.f32 %v5201, %v5313
        %5315 = vmatmul.f32.gmra.mxu0 %v3796
        %v5316 = vpop.f32.mrf.mxu0
        %v5317 = vadd.f32 %v5204, %v5316
        %5318 = vmatmul.f32.gmra.mxu0 %v3805
        %v5319 = vpop.f32.mrf.mxu0
        %v5320 = vadd.f32 %v5207, %v5319
        %5321 = vmatmul.f32.gmra.mxu0 %v3814
        %v5322 = vpop.f32.mrf.mxu0
        %v5323 = vadd.f32 %v5210, %v5322
        %5324 = vmatmul.f32.gmra.mxu0 %v3823
        %v5325 = vpop.f32.mrf.mxu0
        %v5326 = vadd.f32 %v5213, %v5325
        %5327 = vmatmul.f32.gmra.mxu0 %v3832
        %v5328 = vpop.f32.mrf.mxu0
        %v5329 = vadd.f32 %v5216, %v5328
        %5330 = vmatmul.f32.gmra.mxu0 %v3841
        %v5331 = vpop.f32.mrf.mxu0
        %v5332 = vadd.f32 %v5219, %v5331
        %5333 = vmatmul.f32.gmra.mxu0 %v3850
        %v5334 = vpop.f32.mrf.mxu0
        %v5335 = vadd.f32 %v5222, %v5334
        %5336 = vmatmul.f32.gmra.mxu0 %v3859
        %v5337 = vpop.f32.mrf.mxu0
        %v5338 = vadd.f32 %v5225, %v5337
        %5339 = vmatmul.f32.gmra.mxu0 %v3868
        %v5340 = vpop.f32.mrf.mxu0
        %v5341 = vadd.f32 %v5228, %v5340
        %5342 = vmatmul.f32.gmra.mxu0 %v3877
        %v5343 = vpop.f32.mrf.mxu0
        %v5344 = vadd.f32 %v5231, %v5343
        %5345 = vmatmul.f32.gmra.mxu0 %v3886
        %v5346 = vpop.f32.mrf.mxu0
        %v5347 = vadd.f32 %v5234, %v5346
        %5348 = vmatmul.f32.gmra.mxu0 %v3895
        %v5349 = vpop.f32.mrf.mxu0
        %v5350 = vadd.f32 %v5237, %v5349
        %5351 = vmatmul.f32.gmra.mxu0 %v3904
        %v5352 = vpop.f32.mrf.mxu0
        %v5353 = vadd.f32 %v5240, %v5352
        %5354 = vmatmul.f32.gmra.mxu0 %v3913
        %v5355 = vpop.f32.mrf.mxu0
        %v5356 = vadd.f32 %v5243, %v5355
        %5357 = vmatmul.f32.gmra.mxu0 %v3922
        %v5358 = vpop.f32.mrf.mxu0
        %v5359 = vadd.f32 %v5246, %v5358
        %5360 = vmatmul.f32.gmra.mxu0 %v3931
        %v5361 = vpop.f32.mrf.mxu0
        %v5362 = vadd.f32 %v5249, %v5361
        %5363 = vmatmul.f32.gmra.mxu0 %v3940
        %v5364 = vpop.f32.mrf.mxu0
        %v5365 = vadd.f32 %v5252, %v5364
        %5366 = vmatmul.f32.gmra.mxu0 %v3949
        %v5367 = vpop.f32.mrf.mxu0
        %v5368 = vadd.f32 %v5255, %v5367
        %5369 = vmatmul.f32.gmra.mxu0 %v3958
        %v5370 = vpop.f32.mrf.mxu0
        %v5371 = vadd.f32 %v5258, %v5370
        %5372 = vmatmul.f32.gmra.mxu0 %v3967
        %v5373 = vpop.f32.mrf.mxu0
        %v5374 = vadd.f32 %v5261, %v5373
        %5375 = vdwg.mxu0
        %v5376 = vadd.f32 %v5281, %v5287
        %v5377 = vadd.f32 %v5284, %v5290
        %v5378 = vadd.f32 %v5293, %v5299
        %v5379 = vadd.f32 %v5296, %v5302
        %v5380 = vadd.f32 %v5305, %v5311
        %v5381 = vadd.f32 %v5308, %v5314
        %v5382 = vadd.f32 %v5317, %v5323
        %v5383 = vadd.f32 %v5320, %v5326
        %v5384 = vadd.f32 %v5329, %v5335
        %v5385 = vadd.f32 %v5332, %v5338
        %v5386 = vadd.f32 %v5341, %v5347
        %v5387 = vadd.f32 %v5344, %v5350
        %v5388 = vadd.f32 %v5353, %v5359
        %v5389 = vadd.f32 %v5356, %v5362
        %v5390 = vadd.f32 %v5365, %v5371
        %v5391 = vadd.f32 %v5368, %v5374
        %5392 = vst [vmem:[#allocation5] sm:$0xff] %v5376
        %5393 = vst [vmem:[#allocation5 + $0x8] sm:$0xff] %v5377
        %5394 = vst [vmem:[#allocation5 + $0x10] sm:$0xff] %v5378
        %5395 = vst [vmem:[#allocation5 + $0x18] sm:$0xff] %v5379
        %5396 = vst [vmem:[#allocation5 + $0x20] sm:$0xff] %v5380
        %5397 = vst [vmem:[#allocation5 + $0x28] sm:$0xff] %v5381
        %5398 = vst [vmem:[#allocation5 + $0x30] sm:$0xff] %v5382
        %5399 = vst [vmem:[#allocation5 + $0x38] sm:$0xff] %v5383
        %5400 = vst [vmem:[#allocation5 + $0x40] sm:$0xff] %v5384
        %5401 = vst [vmem:[#allocation5 + $0x48] sm:$0xff] %v5385
        %5402 = vst [vmem:[#allocation5 + $0x50] sm:$0xff] %v5386
        %5403 = vst [vmem:[#allocation5 + $0x58] sm:$0xff] %v5387
        %5404 = vst [vmem:[#allocation5 + $0x60] sm:$0xff] %v5388
        %5405 = vst [vmem:[#allocation5 + $0x68] sm:$0xff] %v5389
        %5406 = vst [vmem:[#allocation5 + $0x70] sm:$0xff] %v5390
        %5407 = vst [vmem:[#allocation5 + $0x78] sm:$0xff] %v5391
        %v5408 = vld [vmem:[#allocation5] ss:$2 sm:$0xff]
        %s5409 = scalar_lea.vmem [#allocation5], 16
        %v5410 = vld [vmem:[%s5409] ss:$2 sm:$0xff]
        %s5411 = scalar_lea.vmem [#allocation5], 32
        %v5412 = vld [vmem:[%s5411] ss:$2 sm:$0xff]
        %s5413 = scalar_lea.vmem [#allocation5], 48
        %v5414 = vld [vmem:[%s5413] ss:$2 sm:$0xff]
        %s5415 = scalar_lea.vmem [#allocation5], 64
        %v5416 = vld [vmem:[%s5415] ss:$2 sm:$0xff]
        %s5417 = scalar_lea.vmem [#allocation5], 80
        %v5418 = vld [vmem:[%s5417] ss:$2 sm:$0xff]
        %s5419 = scalar_lea.vmem [#allocation5], 96
        %v5420 = vld [vmem:[%s5419] ss:$2 sm:$0xff]
        %s5421 = scalar_lea.vmem [#allocation5], 112
        %v5422 = vld [vmem:[%s5421] ss:$2 sm:$0xff]
        %s5423 = scalar_lea.vmem [#allocation5], 1
        %v5424 = vld [vmem:[%s5423] ss:$2 sm:$0xff]
        %s5425 = scalar_lea.vmem [#allocation5], 17
        %v5426 = vld [vmem:[%s5425] ss:$2 sm:$0xff]
        %s5427 = scalar_lea.vmem [#allocation5], 33
        %v5428 = vld [vmem:[%s5427] ss:$2 sm:$0xff]
        %s5429 = scalar_lea.vmem [#allocation5], 49
        %v5430 = vld [vmem:[%s5429] ss:$2 sm:$0xff]
        %s5431 = scalar_lea.vmem [#allocation5], 65
        %v5432 = vld [vmem:[%s5431] ss:$2 sm:$0xff]
        %s5433 = scalar_lea.vmem [#allocation5], 81
        %v5434 = vld [vmem:[%s5433] ss:$2 sm:$0xff]
        %s5435 = scalar_lea.vmem [#allocation5], 97
        %v5436 = vld [vmem:[%s5435] ss:$2 sm:$0xff]
        %s5437 = scalar_lea.vmem [#allocation5], 113
        %v5438 = vld [vmem:[%s5437] ss:$2 sm:$0xff]
        %v5439 = vadd.f32 %v5408, %v5424
        %v5440 = vadd.f32 %v5410, %v5426
        %v5441 = vadd.f32 %v5412, %v5428
        %v5442 = vadd.f32 %v5414, %v5430
        %v5443 = vadd.f32 %v5416, %v5432
        %v5444 = vadd.f32 %v5418, %v5434
        %v5445 = vadd.f32 %v5420, %v5436
        %v5446 = vadd.f32 %v5422, %v5438
        %v5447 = vmul.f32 %v5439, 0.25
        %v5448 = vmul.f32 %v5440, 0.25
        %v5449 = vmul.f32 %v5441, 0.25
        %v5450 = vmul.f32 %v5442, 0.25
        %v5451 = vmul.f32 %v5443, 0.25
        %v5452 = vmul.f32 %v5444, 0.25
        %v5453 = vmul.f32 %v5445, 0.25
        %v5454 = vmul.f32 %v5446, 0.25
        %v5455 = vld [vmem:[%s352] sm:$0x1]
        %v5457 = vperm.slane %v5455, 0
        %v5459 = vadd.f32 %v5447, %v5457
        %v5460 = vadd.f32 %v5448, %v5457
        %v5461 = vadd.f32 %v5449, %v5457
        %v5462 = vadd.f32 %v5450, %v5457
        %v5463 = vadd.f32 %v5451, %v5457
        %v5464 = vadd.f32 %v5452, %v5457
        %v5465 = vadd.f32 %v5453, %v5457
        %v5466 = vadd.f32 %v5454, %v5457
        %v5467 = vld [vmem:[%s359] sm:$0x1]
        %v5469 = vperm.slane %v5467, 0
        %v5471 = vadd.f32 %v5459, %v5469
        %v5472 = vadd.f32 %v5460, %v5469
        %v5473 = vadd.f32 %v5461, %v5469
        %v5474 = vadd.f32 %v5462, %v5469
        %v5475 = vadd.f32 %v5463, %v5469
        %v5476 = vadd.f32 %v5464, %v5469
        %v5477 = vadd.f32 %v5465, %v5469
        %v5478 = vadd.f32 %v5466, %v5469
        %5479 = vst [vmem:[%s344] sm:$0xff] %v5471
        %5480 = vst [vmem:[%s344 + $0x8] sm:$0xff] %v5472
        %5481 = vst [vmem:[%s344 + $0x10] sm:$0xff] %v5473
        %5482 = vst [vmem:[%s344 + $0x18] sm:$0xff] %v5474
        %5483 = vst [vmem:[%s344 + $0x20] sm:$0xff] %v5475
        %5484 = vst [vmem:[%s344 + $0x28] sm:$0xff] %v5476
        %5485 = vst [vmem:[%s344 + $0x30] sm:$0xff] %v5477
        %5486 = vst [vmem:[%s344 + $0x38] sm:$0xff] %v5478
        %s5487 = sand.u32 %s216, 1
        %s5488 = scalar_lea.sflag [#allocation8], %s5487
        %s5489 = sand.u32 %s216, 1
        %s5490 = smul.addr %s5489, 64
        %s5491 = scalar_lea.vmem [#allocation9], %s5490
        // Predicated region
        $region57: #{tpu_custom_call.1} parent=47 // pred_check
          %p5492 = pneg %p226
        $region58: #{tpu_custom_call.1} parent=47 // pred_check_branch
          %5494 = sbr.rel (%p5492) target = $region60
        $region59: #{tpu_custom_call.1} parent=47 // pred_region
          %5496 = vsyncadd %s5488, 0
          %s5497 = smul.addr %s26, 8
          %s5498 = sadd.s32 %s27, %s5497
          %s5499 = smul.addr %s5498, 8
          %s5500 = scalar_lea.hbm %s7, %s5499
          %s5501 = sshll.u32 %s5491, 4
          %s5502 = int_to_ptr.vmem [resolvable:$true] %s5501
          %s5503 = sshll.u32 %s5500, 4
          %s5504 = int_to_ptr.hbm [resolvable:$true] %s5503
          %5509 = dma.vmem_to_hbm [thread:$0]  %s5502, 1024, %s5504, %s5488, 128, 128, 8
        $region60: #{tpu_custom_call.1} parent=47 // pred_fallthru
          _
      $region48: #{tpu_custom_call.1} parent=5 // pred_fallthru
        _
      %p5510 = scmp.le.s32.totalorder 2, %s17
      // Predicated region
      $region61: #{tpu_custom_call.1} parent=5 // pred_check
        %p5511 = pneg %p5510
      $region62: #{tpu_custom_call.1} parent=5 // pred_check_branch
        %5513 = sbr.rel (%p5511) target = $region64
      $region63: #{tpu_custom_call.1} parent=5 // pred_region
        %s5514 = ssub.s32 %s17, 2
        // Predicated region
        $region65: #{tpu_custom_call.1} parent=63 // pred_check
          %p5515 = pneg %p232
        $region66: #{tpu_custom_call.1} parent=63 // pred_check_branch
          %5517 = sbr.rel (%p5515) target = $region68
        $region67: #{tpu_custom_call.1} parent=63 // pred_region
          %s5518 = sand.u32 %s217, 1
          %s5519 = scalar_lea.sflag [#allocation8], %s5518
          %s5520 = sand.u32 %s217, 1
          %s5521 = smul.addr %s5520, 64
          %s5522 = scalar_lea.vmem [#allocation9], %s5521
          %5524 = dma.done %s5519, 1024
        $region68: #{tpu_custom_call.1} parent=63 // pred_fallthru
          _
      $region64: #{tpu_custom_call.1} parent=5 // pred_fallthru
        _
    $region6: #{tpu_custom_call.1} parent=1 // loop_footer
      %s21 = sadd.s32 1, %s17
    $region7: #{tpu_custom_call.1} parent=1 // loop_footer_branch
      %16 = sbr.rel target = $region3
    $region8: #{tpu_custom_call.1} parent=1 // loop_exit
      _
    %5525 = vsyncpa [#allocation7], 1
    %s5526 = scalar_lea.sflag [#allocation7], 1
    %5527 = vsyncpa %s5526, 1
    %5528 = vsyncpa [#allocation8], 1
    %s5529 = scalar_lea.sflag [#allocation8], 1
    %5530 = vsyncpa %s5529, 1

</llo_original>
